<compile_context>
chip_gen: v7x
topology: tpu7x:2x2x1
jax: 0.10.0
libtpu: 0.0.40
codegen_flags: <defaults>
</compile_context>

<pallas_src>
import jax
import jax.numpy as jnp
from jax.experimental import pallas as pl
from jax.experimental.pallas import tpu as pltpu

# ---- scaled-down but structurally identical hyperparameters ----------------
VOCAB = 256          # INPUT_DIM = OUTPUT_DIM
EMB_DIM = 128
HIDDEN_DIM = 128     # spec uses 512; scaled down (same structure, lane-aligned)
N_LAYERS = 2         # kernels below are specialized for exactly 2 layers

# TODO(synk): nn.Dropout(0.2) is stochastic at train time; implemented here as
#             eval-mode identity (deterministic forward).


# ---------------------------------------------------------------------------
# In-kernel LSTM cell: one fused (B, E+H) x (E+H, 4H) bf16 matmul on the MXU,
# f32 accumulation, f32 gate math / state update.
# ---------------------------------------------------------------------------
def _lstm_cell(x, h, c, w_bf16, b_f32):
    xh = jnp.concatenate([x, h], axis=-1).astype(jnp.bfloat16)      # (B, E+H)
    gates = jnp.dot(xh, w_bf16, preferred_element_type=jnp.float32) + b_f32
    H = h.shape[-1]
    i_g = jax.nn.sigmoid(gates[:, 0 * H:1 * H])
    f_g = jax.nn.sigmoid(gates[:, 1 * H:2 * H])
    g_g = jnp.tanh(gates[:, 2 * H:3 * H])
    o_g = jax.nn.sigmoid(gates[:, 3 * H:4 * H])
    c_new = f_g * c + i_g * g_g
    h_new = o_g * jnp.tanh(c_new)
    return h_new, c_new


# ---------------------------------------------------------------------------
# Encoder: whole time loop in one kernel.  h/c live in the (resident) output
# blocks; weights resident in VMEM; per-step embedding streamed in.
# ---------------------------------------------------------------------------
def encoder_kernel(emb_ref, w0_ref, b0_ref, w1_ref, b1_ref, h_ref, c_ref):
    @pl.when(pl.program_id(0) == 0)
    def _():
        h_ref[...] = jnp.zeros_like(h_ref)
        c_ref[...] = jnp.zeros_like(c_ref)

    x = emb_ref[0]                                                   # (B, E)
    h0, c0 = _lstm_cell(x, h_ref[0], c_ref[0], w0_ref[...], b0_ref[...])
    h_ref[0] = h0
    c_ref[0] = c0
    h1, c1 = _lstm_cell(h0, h_ref[1], c_ref[1], w1_ref[...], b1_ref[...])
    h_ref[1] = h1
    c_ref[1] = c1


def encoder_forward(params, src):
    emb = params["enc_emb"][src]                     # (B, S, E)  (dropout = id)
    emb_seq = jnp.transpose(emb, (1, 0, 2))          # (S, B, E) — time-major
    S, B, E = emb_seq.shape
    H = HIDDEN_DIM
    w0, b0 = params["enc_lstm"][0]["w"], params["enc_lstm"][0]["b"]
    w1, b1 = params["enc_lstm"][1]["w"], params["enc_lstm"][1]["b"]

    grid_spec = pltpu.PrefetchScalarGridSpec(
        num_scalar_prefetch=0,
        grid=(S,),
        in_specs=[
            pl.BlockSpec((1, B, E), lambda t: (t, 0, 0)),     # streamed per step
            pl.BlockSpec(w0.shape, lambda t: (0, 0)),          # resident
            pl.BlockSpec(b0.shape, lambda t: (0, 0)),          # resident
            pl.BlockSpec(w1.shape, lambda t: (0, 0)),          # resident
            pl.BlockSpec(b1.shape, lambda t: (0, 0)),          # resident
        ],
        out_specs=(
            pl.BlockSpec((N_LAYERS, B, H), lambda t: (0, 0, 0)),   # h (resident)
            pl.BlockSpec((N_LAYERS, B, H), lambda t: (0, 0, 0)),   # c (resident)
        ),
    )
    h, c = pl.pallas_call(
        encoder_kernel,
        out_shape=(jax.ShapeDtypeStruct((N_LAYERS, B, H), jnp.float32),
                   jax.ShapeDtypeStruct((N_LAYERS, B, H), jnp.float32)),
        grid_spec=grid_spec,
        compiler_params=pltpu.CompilerParams(dimension_semantics=("arbitrary",)),
    )(emb_seq, w0, b0, w1, b1)
    return h, c


# ---------------------------------------------------------------------------
# Decoder: whole greedy-decoding loop in one kernel.  h/c and the current
# input embedding are VMEM scratch; argmax + next-token embedding (one-hot @
# dec_emb on the MXU) are done in-kernel, so nothing leaves the chip between
# steps except the per-step logits writeback.
# ---------------------------------------------------------------------------
def decoder_kernel(x0_ref, h0_ref, c0_ref, emb_ref,
                   w0_ref, b0_ref, w1_ref, b1_ref, fcw_ref, fcb_ref,
                   logits_ref, h_sc, c_sc, x_sc):
    @pl.when(pl.program_id(0) == 0)
    def _():
        h_sc[...] = h0_ref[...]
        c_sc[...] = c0_ref[...]
        x_sc[...] = x0_ref[...]

    x = x_sc[...]                                                    # (B, E)
    h0, c0 = _lstm_cell(x, h_sc[0], c_sc[0], w0_ref[...], b0_ref[...])
    h_sc[0] = h0
    c_sc[0] = c0
    h1, c1 = _lstm_cell(h0, h_sc[1], c_sc[1], w1_ref[...], b1_ref[...])
    h_sc[1] = h1
    c_sc[1] = c1

    logits = (jnp.dot(h1.astype(jnp.bfloat16), fcw_ref[...],
                      preferred_element_type=jnp.float32) + fcb_ref[...])
    logits_ref[0] = logits                                           # (B, V)

    # greedy feedback: first-occurrence argmax -> one-hot -> embedding lookup
    # (one-hot @ dec_emb on the MXU; dec_emb is resident in VMEM).
    B, V = logits.shape
    row_max = jnp.max(logits, axis=-1, keepdims=True)                # (B, 1)
    col_ids = jax.lax.broadcasted_iota(jnp.int32, (B, V), 1)
    amax = jnp.min(jnp.where(logits == row_max, col_ids, V),
                   axis=-1, keepdims=True)                           # (B, 1)
    onehot = (col_ids == amax).astype(jnp.bfloat16)                  # (B, V)
    x_sc[...] = jnp.dot(onehot, emb_ref[...],
                        preferred_element_type=jnp.float32)          # (B, E)


def decoder_forward(params, trg, h_init, c_init):
    B, T = trg.shape
    H, E, V = HIDDEN_DIM, EMB_DIM, VOCAB
    steps = T - 1

    dec_emb = params["dec_emb"]                                  # (V, E) bf16
    x0 = dec_emb[trg[:, 0]].astype(jnp.float32)                  # first input
    w0, b0 = params["dec_lstm"][0]["w"], params["dec_lstm"][0]["b"]
    w1, b1 = params["dec_lstm"][1]["w"], params["dec_lstm"][1]["b"]
    fcw, fcb = params["fc_w"], params["fc_b"]

    grid_spec = pltpu.PrefetchScalarGridSpec(
        num_scalar_prefetch=0,
        grid=(steps,),
        in_specs=[
            pl.BlockSpec((B, E), lambda t: (0, 0)),                  # x0
            pl.BlockSpec((N_LAYERS, B, H), lambda t: (0, 0, 0)),     # h_init
            pl.BlockSpec((N_LAYERS, B, H), lambda t: (0, 0, 0)),     # c_init
            pl.BlockSpec((V, E), lambda t: (0, 0)),                  # dec_emb
            pl.BlockSpec(w0.shape, lambda t: (0, 0)),
            pl.BlockSpec(b0.shape, lambda t: (0, 0)),
            pl.BlockSpec(w1.shape, lambda t: (0, 0)),
            pl.BlockSpec(b1.shape, lambda t: (0, 0)),
            pl.BlockSpec(fcw.shape, lambda t: (0, 0)),
            pl.BlockSpec(fcb.shape, lambda t: (0, 0)),
        ],
        out_specs=pl.BlockSpec((1, B, V), lambda t: (t, 0, 0)),      # logits[t]
        scratch_shapes=[
            pltpu.VMEM((N_LAYERS, B, H), jnp.float32),               # h state
            pltpu.VMEM((N_LAYERS, B, H), jnp.float32),               # c state
            pltpu.VMEM((B, E), jnp.float32),                         # next input
        ],
    )
    logits = pl.pallas_call(
        decoder_kernel,
        out_shape=jax.ShapeDtypeStruct((steps, B, V), jnp.float32),
        grid_spec=grid_spec,
        compiler_params=pltpu.CompilerParams(dimension_semantics=("arbitrary",)),
    )(x0, h_init, c_init, dec_emb, w0, b0, w1, b1, fcw, fcb)
    return jnp.transpose(logits, (1, 0, 2))                          # (B, T-1, V)


# ---------------------------------------------------------------------------
# Parameter init (deterministic, PyTorch-style).  LSTM weights are stored as a
# single fused [W_ih^T ; W_hh^T] matrix of shape (in_dim + H, 4H) in bf16;
# the bias is b_ih + b_hh (sum of two independent uniforms, like PyTorch).
# ---------------------------------------------------------------------------
def init_params(key):
    bound = 1.0 / jnp.sqrt(jnp.float32(HIDDEN_DIM))

    def uni(k, shape):
        return jax.random.uniform(k, shape, jnp.float32, -bound, bound)

    keys = iter(jax.random.split(key, 64))
    params = {
        "enc_emb": jax.random.normal(next(keys), (VOCAB, EMB_DIM), jnp.float32),
        "dec_emb": jax.random.normal(next(keys), (VOCAB, EMB_DIM),
                                     jnp.float32).astype(jnp.bfloat16),
        "fc_w": uni(next(keys), (HIDDEN_DIM, VOCAB)).astype(jnp.bfloat16),
        "fc_b": uni(next(keys), (1, VOCAB)),
        "enc_lstm": [],
        "dec_lstm": [],
    }
    for which in ("enc_lstm", "dec_lstm"):
        for layer in range(N_LAYERS):
            in_dim = EMB_DIM if layer == 0 else HIDDEN_DIM
            w = uni(next(keys), (in_dim + HIDDEN_DIM, 4 * HIDDEN_DIM))
            b = (uni(next(keys), (1, 4 * HIDDEN_DIM)) +
                 uni(next(keys), (1, 4 * HIDDEN_DIM)))
            params[which].append({"w": w.astype(jnp.bfloat16), "b": b})
    return params


# ---------------------------------------------------------------------------
# Model forward (mirrors ByteSeq2Seq.forward)
# ---------------------------------------------------------------------------
def seq2seq_forward(params, src, trg):
    hidden, cell = encoder_forward(params, src)
    return decoder_forward(params, trg, hidden, cell)   # (B, T-1, VOCAB)


# ---------------------------------------------------------------------------
if __name__ == "__main__":
    B, S_SRC, S_TRG = 8, 8, 6

    key = jax.random.PRNGKey(0)
    k_params, k_src, k_trg = jax.random.split(key, 3)

    params = init_params(k_params)
    src = jax.random.randint(k_src, (B, S_SRC), 0, VOCAB, dtype=jnp.int32)
    trg = jax.random.randint(k_trg, (B, S_TRG), 0, VOCAB, dtype=jnp.int32)

    fwd = jax.jit(seq2seq_forward)
    out = fwd(params, src, trg)
    out = jax.block_until_ready(out)

    assert out.shape == (B, S_TRG - 1, VOCAB), out.shape
    assert out.dtype == jnp.float32
    assert bool(jnp.all(jnp.isfinite(out)))
    print("KERNEL_OK")
</pallas_src>

<mosaic_0001>
module attributes {stable_mosaic.version = 11 : i64} {
  func.func @decoder_kernel(%arg0: i32, %arg1: memref<8x128xf32, #tpu.memory_space<vmem>>, %arg2: memref<2x8x128xf32, #tpu.memory_space<vmem>>, %arg3: memref<2x8x128xf32, #tpu.memory_space<vmem>>, %arg4: memref<256x128xbf16, #tpu.memory_space<vmem>>, %arg5: memref<256x512xbf16, #tpu.memory_space<vmem>>, %arg6: memref<1x512xf32, #tpu.memory_space<vmem>>, %arg7: memref<256x512xbf16, #tpu.memory_space<vmem>>, %arg8: memref<1x512xf32, #tpu.memory_space<vmem>>, %arg9: memref<128x256xbf16, #tpu.memory_space<vmem>>, %arg10: memref<1x256xf32, #tpu.memory_space<vmem>>, %arg11: memref<1x8x256xf32, #tpu.memory_space<vmem>>, %arg12: memref<2x8x128xf32, #tpu.memory_space<vmem>>, %arg13: memref<2x8x128xf32, #tpu.memory_space<vmem>>, %arg14: memref<8x128xf32, #tpu.memory_space<vmem>>) attributes {dimension_semantics = [#tpu.dimension_semantics<arbitrary>], iteration_bounds = array<i64: 5>, scalar_prefetch = 0 : i64, scratch_operands = 3 : i64, tpu.core_type = #tpu.core_type<tc>, window_params = [{pipeline_mode = #tpu.pipeline_mode<synchronous>, transform_indices = @transform_0, window_bounds = array<i64: 8, 128>}, {pipeline_mode = #tpu.pipeline_mode<synchronous>, transform_indices = @transform_1, window_bounds = array<i64: 2, 8, 128>}, {pipeline_mode = #tpu.pipeline_mode<synchronous>, transform_indices = @transform_2, window_bounds = array<i64: 2, 8, 128>}, {pipeline_mode = #tpu.pipeline_mode<synchronous>, transform_indices = @transform_3, window_bounds = array<i64: 256, 128>}, {pipeline_mode = #tpu.pipeline_mode<synchronous>, transform_indices = @transform_4, window_bounds = array<i64: 256, 512>}, {pipeline_mode = #tpu.pipeline_mode<synchronous>, transform_indices = @transform_5, window_bounds = array<i64: 1, 512>}, {pipeline_mode = #tpu.pipeline_mode<synchronous>, transform_indices = @transform_6, window_bounds = array<i64: 256, 512>}, {pipeline_mode = #tpu.pipeline_mode<synchronous>, transform_indices = @transform_7, window_bounds = array<i64: 1, 512>}, {pipeline_mode = #tpu.pipeline_mode<synchronous>, transform_indices = @transform_8, window_bounds = array<i64: 128, 256>}, {pipeline_mode = #tpu.pipeline_mode<synchronous>, transform_indices = @transform_9, window_bounds = array<i64: 1, 256>}, {transform_indices = @transform_10, window_bounds = array<i64: 1, 8, 256>}]} {
    %c0_i32 = arith.constant 0 : i32
    %0 = arith.cmpi eq, %arg0, %c0_i32 : i32
    %1 = arith.extui %0 : i1 to i32
    %c0_i32_0 = arith.constant 0 : i32
    %2 = arith.cmpi ne, %1, %c0_i32_0 : i32
    scf.if %2 {
      %c0_55 = arith.constant 0 : index
      %c0_56 = arith.constant 0 : index
      %c0_57 = arith.constant 0 : index
      %114 = vector.load %arg2[%c0_55, %c0_56, %c0_57] : memref<2x8x128xf32, #tpu.memory_space<vmem>>, vector<2x8x128xf32>
      %c0_58 = arith.constant 0 : index
      %c0_59 = arith.constant 0 : index
      %c0_60 = arith.constant 0 : index
      %115 = vector.load %arg12[%c0_58, %c0_59, %c0_60] : memref<2x8x128xf32, #tpu.memory_space<vmem>>, vector<2x8x128xf32>
      tpu.vector_store %arg12[%c0_58, %c0_59, %c0_60], %114 {strides = array<i32>} : memref<2x8x128xf32, #tpu.memory_space<vmem>>, vector<2x8x128xf32>,
      %c0_61 = arith.constant 0 : index
      %c0_62 = arith.constant 0 : index
      %c0_63 = arith.constant 0 : index
      %116 = vector.load %arg3[%c0_61, %c0_62, %c0_63] : memref<2x8x128xf32, #tpu.memory_space<vmem>>, vector<2x8x128xf32>
      %c0_64 = arith.constant 0 : index
      %c0_65 = arith.constant 0 : index
      %c0_66 = arith.constant 0 : index
      %117 = vector.load %arg13[%c0_64, %c0_65, %c0_66] : memref<2x8x128xf32, #tpu.memory_space<vmem>>, vector<2x8x128xf32>
      tpu.vector_store %arg13[%c0_64, %c0_65, %c0_66], %116 {strides = array<i32>} : memref<2x8x128xf32, #tpu.memory_space<vmem>>, vector<2x8x128xf32>,
      %c0_67 = arith.constant 0 : index
      %c0_68 = arith.constant 0 : index
      %118 = vector.load %arg1[%c0_67, %c0_68] : memref<8x128xf32, #tpu.memory_space<vmem>>, vector<8x128xf32>
      %c0_69 = arith.constant 0 : index
      %c0_70 = arith.constant 0 : index
      %119 = vector.load %arg14[%c0_69, %c0_70] : memref<8x128xf32, #tpu.memory_space<vmem>>, vector<8x128xf32>
      tpu.vector_store %arg14[%c0_69, %c0_70], %118 {strides = array<i32>} : memref<8x128xf32, #tpu.memory_space<vmem>>, vector<8x128xf32>,
    } else {
    }
    %c0 = arith.constant 0 : index
    %c0_1 = arith.constant 0 : index
    %3 = vector.load %arg14[%c0, %c0_1] : memref<8x128xf32, #tpu.memory_space<vmem>>, vector<8x128xf32>
    %c0_2 = arith.constant 0 : index
    %c0_3 = arith.constant 0 : index
    %c0_4 = arith.constant 0 : index
    %4 = vector.load %arg12[%c0_2, %c0_3, %c0_4] : memref<2x8x128xf32, #tpu.memory_space<vmem>>, vector<1x8x128xf32>
    %5 = vector.shape_cast %4 : vector<1x8x128xf32> to vector<8x128xf32>
    %c0_5 = arith.constant 0 : index
    %c0_6 = arith.constant 0 : index
    %c0_7 = arith.constant 0 : index
    %6 = vector.load %arg13[%c0_5, %c0_6, %c0_7] : memref<2x8x128xf32, #tpu.memory_space<vmem>>, vector<1x8x128xf32>
    %7 = vector.shape_cast %6 : vector<1x8x128xf32> to vector<8x128xf32>
    %c0_8 = arith.constant 0 : index
    %c0_9 = arith.constant 0 : index
    %8 = vector.load %arg5[%c0_8, %c0_9] : memref<256x512xbf16, #tpu.memory_space<vmem>>, vector<256x512xbf16>
    %c0_10 = arith.constant 0 : index
    %c0_11 = arith.constant 0 : index
    %9 = vector.load %arg6[%c0_10, %c0_11] : memref<1x512xf32, #tpu.memory_space<vmem>>, vector<1x512xf32>
    %10 = tpu.concatenate %3, %5 in 1 : vector<8x128xf32>, vector<8x128xf32> -> vector<8x256xf32>
    %11 = arith.truncf %10 : vector<8x256xf32> to vector<8x256xbf16>
    %cst = arith.constant dense<0.000000e+00> : vector<8x512xf32>
    %12 = tpu.matmul %11, %8, %cst {dimension_numbers = #tpu.dot_dimension_numbers<[1], [0], [0], [1], [0, 0, 1, 1], [], []>} : vector<8x256xbf16>, vector<256x512xbf16>, vector<8x512xf32> -> vector<8x512xf32>
    %13 = vector.broadcast %9 : vector<1x512xf32> to vector<8x512xf32>
    %14 = arith.addf %12, %13 : vector<8x512xf32>
    %15 = vector.extract_strided_slice %14 {offsets = [0, 0], sizes = [8, 128], strides = [1, 1]} : vector<8x512xf32> to vector<8x128xf32>
    %16 = arith.negf %15 : vector<8x128xf32>
    %17 = math.exp %16 : vector<8x128xf32>
    %cst_12 = arith.constant 1.000000e+00 : f32
    %18 = vector.broadcast %cst_12 : f32 to vector<8x128xf32>
    %19 = arith.addf %18, %17 : vector<8x128xf32>
    %20 = arith.divf %18, %19 : vector<8x128xf32>
    %21 = vector.extract_strided_slice %14 {offsets = [0, 128], sizes = [8, 128], strides = [1, 1]} : vector<8x512xf32> to vector<8x128xf32>
    %22 = arith.negf %21 : vector<8x128xf32>
    %23 = math.exp %22 : vector<8x128xf32>
    %cst_13 = arith.constant 1.000000e+00 : f32
    %24 = vector.broadcast %cst_13 : f32 to vector<8x128xf32>
    %25 = arith.addf %24, %23 : vector<8x128xf32>
    %26 = arith.divf %24, %25 : vector<8x128xf32>
    %27 = vector.extract_strided_slice %14 {offsets = [0, 256], sizes = [8, 128], strides = [1, 1]} : vector<8x512xf32> to vector<8x128xf32>
    %28 = math.tanh %27 : vector<8x128xf32>
    %29 = vector.extract_strided_slice %14 {offsets = [0, 384], sizes = [8, 128], strides = [1, 1]} : vector<8x512xf32> to vector<8x128xf32>
    %30 = arith.negf %29 : vector<8x128xf32>
    %31 = math.exp %30 : vector<8x128xf32>
    %cst_14 = arith.constant 1.000000e+00 : f32
    %32 = vector.broadcast %cst_14 : f32 to vector<8x128xf32>
    %33 = arith.addf %32, %31 : vector<8x128xf32>
    %34 = arith.divf %32, %33 : vector<8x128xf32>
    %35 = arith.mulf %26, %7 : vector<8x128xf32>
    %36 = arith.mulf %20, %28 : vector<8x128xf32>
    %37 = arith.addf %35, %36 : vector<8x128xf32>
    %38 = math.tanh %37 : vector<8x128xf32>
    %39 = arith.mulf %34, %38 : vector<8x128xf32>
    %c0_15 = arith.constant 0 : index
    %c0_16 = arith.constant 0 : index
    %c0_17 = arith.constant 0 : index
    %40 = vector.load %arg12[%c0_15, %c0_16, %c0_17] : memref<2x8x128xf32, #tpu.memory_space<vmem>>, vector<1x8x128xf32>
    %41 = vector.shape_cast %40 : vector<1x8x128xf32> to vector<8x128xf32>
    %42 = vector.shape_cast %39 : vector<8x128xf32> to vector<1x8x128xf32>
    tpu.vector_store %arg12[%c0_15, %c0_16, %c0_17], %42 {strides = array<i32>} : memref<2x8x128xf32, #tpu.memory_space<vmem>>, vector<1x8x128xf32>,
    %c0_18 = arith.constant 0 : index
    %c0_19 = arith.constant 0 : index
    %c0_20 = arith.constant 0 : index
    %43 = vector.load %arg13[%c0_18, %c0_19, %c0_20] : memref<2x8x128xf32, #tpu.memory_space<vmem>>, vector<1x8x128xf32>
    %44 = vector.shape_cast %43 : vector<1x8x128xf32> to vector<8x128xf32>
    %45 = vector.shape_cast %37 : vector<8x128xf32> to vector<1x8x128xf32>
    tpu.vector_store %arg13[%c0_18, %c0_19, %c0_20], %45 {strides = array<i32>} : memref<2x8x128xf32, #tpu.memory_space<vmem>>, vector<1x8x128xf32>,
    %c1 = arith.constant 1 : index
    %c0_21 = arith.constant 0 : index
    %c0_22 = arith.constant 0 : index
    %46 = vector.load %arg12[%c1, %c0_21, %c0_22] : memref<2x8x128xf32, #tpu.memory_space<vmem>>, vector<1x8x128xf32>
    %47 = vector.shape_cast %46 : vector<1x8x128xf32> to vector<8x128xf32>
    %c1_23 = arith.constant 1 : index
    %c0_24 = arith.constant 0 : index
    %c0_25 = arith.constant 0 : index
    %48 = vector.load %arg13[%c1_23, %c0_24, %c0_25] : memref<2x8x128xf32, #tpu.memory_space<vmem>>, vector<1x8x128xf32>
    %49 = vector.shape_cast %48 : vector<1x8x128xf32> to vector<8x128xf32>
    %c0_26 = arith.constant 0 : index
    %c0_27 = arith.constant 0 : index
    %50 = vector.load %arg7[%c0_26, %c0_27] : memref<256x512xbf16, #tpu.memory_space<vmem>>, vector<256x512xbf16>
    %c0_28 = arith.constant 0 : index
    %c0_29 = arith.constant 0 : index
    %51 = vector.load %arg8[%c0_28, %c0_29] : memref<1x512xf32, #tpu.memory_space<vmem>>, vector<1x512xf32>
    %52 = tpu.concatenate %39, %47 in 1 : vector<8x128xf32>, vector<8x128xf32> -> vector<8x256xf32>
    %53 = arith.truncf %52 : vector<8x256xf32> to vector<8x256xbf16>
    %cst_30 = arith.constant dense<0.000000e+00> : vector<8x512xf32>
    %54 = tpu.matmul %53, %50, %cst_30 {dimension_numbers = #tpu.dot_dimension_numbers<[1], [0], [0], [1], [0, 0, 1, 1], [], []>} : vector<8x256xbf16>, vector<256x512xbf16>, vector<8x512xf32> -> vector<8x512xf32>
    %55 = vector.broadcast %51 : vector<1x512xf32> to vector<8x512xf32>
    %56 = arith.addf %54, %55 : vector<8x512xf32>
    %57 = vector.extract_strided_slice %56 {offsets = [0, 0], sizes = [8, 128], strides = [1, 1]} : vector<8x512xf32> to vector<8x128xf32>
    %58 = arith.negf %57 : vector<8x128xf32>
    %59 = math.exp %58 : vector<8x128xf32>
    %cst_31 = arith.constant 1.000000e+00 : f32
    %60 = vector.broadcast %cst_31 : f32 to vector<8x128xf32>
    %61 = arith.addf %60, %59 : vector<8x128xf32>
    %62 = arith.divf %60, %61 : vector<8x128xf32>
    %63 = vector.extract_strided_slice %56 {offsets = [0, 128], sizes = [8, 128], strides = [1, 1]} : vector<8x512xf32> to vector<8x128xf32>
    %64 = arith.negf %63 : vector<8x128xf32>
    %65 = math.exp %64 : vector<8x128xf32>
    %cst_32 = arith.constant 1.000000e+00 : f32
    %66 = vector.broadcast %cst_32 : f32 to vector<8x128xf32>
    %67 = arith.addf %66, %65 : vector<8x128xf32>
    %68 = arith.divf %66, %67 : vector<8x128xf32>
    %69 = vector.extract_strided_slice %56 {offsets = [0, 256], sizes = [8, 128], strides = [1, 1]} : vector<8x512xf32> to vector<8x128xf32>
    %70 = math.tanh %69 : vector<8x128xf32>
    %71 = vector.extract_strided_slice %56 {offsets = [0, 384], sizes = [8, 128], strides = [1, 1]} : vector<8x512xf32> to vector<8x128xf32>
    %72 = arith.negf %71 : vector<8x128xf32>
    %73 = math.exp %72 : vector<8x128xf32>
    %cst_33 = arith.constant 1.000000e+00 : f32
    %74 = vector.broadcast %cst_33 : f32 to vector<8x128xf32>
    %75 = arith.addf %74, %73 : vector<8x128xf32>
    %76 = arith.divf %74, %75 : vector<8x128xf32>
    %77 = arith.mulf %68, %49 : vector<8x128xf32>
    %78 = arith.mulf %62, %70 : vector<8x128xf32>
    %79 = arith.addf %77, %78 : vector<8x128xf32>
    %80 = math.tanh %79 : vector<8x128xf32>
    %81 = arith.mulf %76, %80 : vector<8x128xf32>
    %c1_34 = arith.constant 1 : index
    %c0_35 = arith.constant 0 : index
    %c0_36 = arith.constant 0 : index
    %82 = vector.load %arg12[%c1_34, %c0_35, %c0_36] : memref<2x8x128xf32, #tpu.memory_space<vmem>>, vector<1x8x128xf32>
    %83 = vector.shape_cast %82 : vector<1x8x128xf32> to vector<8x128xf32>
    %84 = vector.shape_cast %81 : vector<8x128xf32> to vector<1x8x128xf32>
    tpu.vector_store %arg12[%c1_34, %c0_35, %c0_36], %84 {strides = array<i32>} : memref<2x8x128xf32, #tpu.memory_space<vmem>>, vector<1x8x128xf32>,
    %c1_37 = arith.constant 1 : index
    %c0_38 = arith.constant 0 : index
    %c0_39 = arith.constant 0 : index
    %85 = vector.load %arg13[%c1_37, %c0_38, %c0_39] : memref<2x8x128xf32, #tpu.memory_space<vmem>>, vector<1x8x128xf32>
    %86 = vector.shape_cast %85 : vector<1x8x128xf32> to vector<8x128xf32>
    %87 = vector.shape_cast %79 : vector<8x128xf32> to vector<1x8x128xf32>
    tpu.vector_store %arg13[%c1_37, %c0_38, %c0_39], %87 {strides = array<i32>} : memref<2x8x128xf32, #tpu.memory_space<vmem>>, vector<1x8x128xf32>,
    %88 = arith.truncf %81 : vector<8x128xf32> to vector<8x128xbf16>
    %c0_40 = arith.constant 0 : index
    %c0_41 = arith.constant 0 : index
    %89 = vector.load %arg9[%c0_40, %c0_41] : memref<128x256xbf16, #tpu.memory_space<vmem>>, vector<128x256xbf16>
    %cst_42 = arith.constant dense<0.000000e+00> : vector<8x256xf32>
    %90 = tpu.matmul %88, %89, %cst_42 {dimension_numbers = #tpu.dot_dimension_numbers<[1], [0], [0], [1], [0, 0, 1, 1], [], []>} : vector<8x128xbf16>, vector<128x256xbf16>, vector<8x256xf32> -> vector<8x256xf32>
    %c0_43 = arith.constant 0 : index
    %c0_44 = arith.constant 0 : index
    %91 = vector.load %arg10[%c0_43, %c0_44] : memref<1x256xf32, #tpu.memory_space<vmem>>, vector<1x256xf32>
    %92 = vector.broadcast %91 : vector<1x256xf32> to vector<8x256xf32>
    %93 = arith.addf %90, %92 : vector<8x256xf32>
    %c0_45 = arith.constant 0 : index
    %c0_46 = arith.constant 0 : index
    %c0_47 = arith.constant 0 : index
    %94 = vector.load %arg11[%c0_45, %c0_46, %c0_47] : memref<1x8x256xf32, #tpu.memory_space<vmem>>, vector<1x8x256xf32>
    %95 = vector.shape_cast %94 : vector<1x8x256xf32> to vector<8x256xf32>
    %96 = vector.shape_cast %93 : vector<8x256xf32> to vector<1x8x256xf32>
    tpu.vector_store %arg11[%c0_45, %c0_46, %c0_47], %96 {strides = array<i32>} : memref<1x8x256xf32, #tpu.memory_space<vmem>>, vector<1x8x256xf32>,
    %cst_48 = arith.constant dense<0xFF800000> : vector<8xf32>
    %97 = vector.multi_reduction <maximumf>, %93, %cst_48 [1] : vector<8x256xf32> to vector<8xf32>
    %98 = vector.shape_cast %97 : vector<8xf32> to vector<8x1xf32>
    %99 = tpu.iota {dimensions = array<i32: 1>} : vector<8x256xi32>
    %100 = vector.broadcast %98 : vector<8x1xf32> to vector<8x256xf32>
    %101 = arith.cmpf oeq, %93, %100 : vector<8x256xf32>
    %c256_i32 = arith.constant 256 : i32
    %102 = vector.broadcast %c256_i32 : i32 to vector<8x256xi32>
    %103 = arith.select %101, %99, %102 : vector<8x256xi1>, vector<8x256xi32>
    %cst_49 = arith.constant dense<2147483647> : vector<8xi32>
    %104 = vector.multi_reduction <minsi>, %103, %cst_49 [1] : vector<8x256xi32> to vector<8xi32>
    %105 = vector.shape_cast %104 : vector<8xi32> to vector<8x1xi32>
    %106 = vector.broadcast %105 : vector<8x1xi32> to vector<8x256xi32>
    %107 = arith.cmpi eq, %99, %106 : vector<8x256xi32>
    %108 = arith.extui %107 : vector<8x256xi1> to vector<8x256xi32>
    %109 = arith.sitofp %108 : vector<8x256xi32> to vector<8x256xf32>
    %110 = arith.truncf %109 : vector<8x256xf32> to vector<8x256xbf16>
    %c0_50 = arith.constant 0 : index
    %c0_51 = arith.constant 0 : index
    %111 = vector.load %arg4[%c0_50, %c0_51] : memref<256x128xbf16, #tpu.memory_space<vmem>>, vector<256x128xbf16>
    %cst_52 = arith.constant dense<0.000000e+00> : vector<8x128xf32>
    %112 = tpu.matmul %110, %111, %cst_52 {dimension_numbers = #tpu.dot_dimension_numbers<[1], [0], [0], [1], [0, 0, 1, 1], [], []>} : vector<8x256xbf16>, vector<256x128xbf16>, vector<8x128xf32> -> vector<8x128xf32>
    %c0_53 = arith.constant 0 : index
    %c0_54 = arith.constant 0 : index
    %113 = vector.load %arg14[%c0_53, %c0_54] : memref<8x128xf32, #tpu.memory_space<vmem>>, vector<8x128xf32>
    tpu.vector_store %arg14[%c0_53, %c0_54], %112 {strides = array<i32>} : memref<8x128xf32, #tpu.memory_space<vmem>>, vector<8x128xf32>,
    return
  }
  func.func @transform_0(%arg0: i32) -> (i32, i32) {
    %c0_i32 = arith.constant 0 : i32
    %c0_i32_0 = arith.constant 0 : i32
    %c0_i32_1 = arith.constant 0 : i32
    return %c0_i32, %c0_i32_0 : i32, i32
  }
  func.func @transform_1(%arg0: i32) -> (i32, i32, i32) {
    %c0_i32 = arith.constant 0 : i32
    %c0_i32_0 = arith.constant 0 : i32
    %c0_i32_1 = arith.constant 0 : i32
    %c0_i32_2 = arith.constant 0 : i32
    return %c0_i32, %c0_i32_0, %c0_i32_1 : i32, i32, i32
  }
  func.func @transform_2(%arg0: i32) -> (i32, i32, i32) {
    %c0_i32 = arith.constant 0 : i32
    %c0_i32_0 = arith.constant 0 : i32
    %c0_i32_1 = arith.constant 0 : i32
    %c0_i32_2 = arith.constant 0 : i32
    return %c0_i32, %c0_i32_0, %c0_i32_1 : i32, i32, i32
  }
  func.func @transform_3(%arg0: i32) -> (i32, i32) {
    %c0_i32 = arith.constant 0 : i32
    %c0_i32_0 = arith.constant 0 : i32
    %c0_i32_1 = arith.constant 0 : i32
    return %c0_i32, %c0_i32_0 : i32, i32
  }
  func.func @transform_4(%arg0: i32) -> (i32, i32) {
    %c0_i32 = arith.constant 0 : i32
    %c0_i32_0 = arith.constant 0 : i32
    %c0_i32_1 = arith.constant 0 : i32
    return %c0_i32, %c0_i32_0 : i32, i32
  }
  func.func @transform_5(%arg0: i32) -> (i32, i32) {
    %c0_i32 = arith.constant 0 : i32
    %c0_i32_0 = arith.constant 0 : i32
    %c0_i32_1 = arith.constant 0 : i32
    return %c0_i32, %c0_i32_0 : i32, i32
  }
  func.func @transform_6(%arg0: i32) -> (i32, i32) {
    %c0_i32 = arith.constant 0 : i32
    %c0_i32_0 = arith.constant 0 : i32
    %c0_i32_1 = arith.constant 0 : i32
    return %c0_i32, %c0_i32_0 : i32, i32
  }
  func.func @transform_7(%arg0: i32) -> (i32, i32) {
    %c0_i32 = arith.constant 0 : i32
    %c0_i32_0 = arith.constant 0 : i32
    %c0_i32_1 = arith.constant 0 : i32
    return %c0_i32, %c0_i32_0 : i32, i32
  }
  func.func @transform_8(%arg0: i32) -> (i32, i32) {
    %c0_i32 = arith.constant 0 : i32
    %c0_i32_0 = arith.constant 0 : i32
    %c0_i32_1 = arith.constant 0 : i32
    return %c0_i32, %c0_i32_0 : i32, i32
  }
  func.func @transform_9(%arg0: i32) -> (i32, i32) {
    %c0_i32 = arith.constant 0 : i32
    %c0_i32_0 = arith.constant 0 : i32
    %c0_i32_1 = arith.constant 0 : i32
    return %c0_i32, %c0_i32_0 : i32, i32
  }
  func.func @transform_10(%arg0: i32) -> (i32, i32, i32) {
    %c0_i32 = arith.constant 0 : i32
    %c0_i32_0 = arith.constant 0 : i32
    %c0_i32_1 = arith.constant 0 : i32
    return %arg0, %c0_i32, %c0_i32_0 : i32, i32, i32
  }
}

module attributes {stable_mosaic.version = 11 : i64} {
  func.func @encoder_kernel(%arg0: i32, %arg1: memref<1x8x128xf32, #tpu.memory_space<vmem>>, %arg2: memref<256x512xbf16, #tpu.memory_space<vmem>>, %arg3: memref<1x512xf32, #tpu.memory_space<vmem>>, %arg4: memref<256x512xbf16, #tpu.memory_space<vmem>>, %arg5: memref<1x512xf32, #tpu.memory_space<vmem>>, %arg6: memref<2x8x128xf32, #tpu.memory_space<vmem>>, %arg7: memref<2x8x128xf32, #tpu.memory_space<vmem>>) attributes {dimension_semantics = [#tpu.dimension_semantics<arbitrary>], iteration_bounds = array<i64: 8>, scalar_prefetch = 0 : i64, scratch_operands = 0 : i64, tpu.core_type = #tpu.core_type<tc>, window_params = [{transform_indices = @transform_0, window_bounds = array<i64: 1, 8, 128>}, {pipeline_mode = #tpu.pipeline_mode<synchronous>, transform_indices = @transform_1, window_bounds = array<i64: 256, 512>}, {pipeline_mode = #tpu.pipeline_mode<synchronous>, transform_indices = @transform_2, window_bounds = array<i64: 1, 512>}, {pipeline_mode = #tpu.pipeline_mode<synchronous>, transform_indices = @transform_3, window_bounds = array<i64: 256, 512>}, {pipeline_mode = #tpu.pipeline_mode<synchronous>, transform_indices = @transform_4, window_bounds = array<i64: 1, 512>}, {pipeline_mode = #tpu.pipeline_mode<synchronous>, transform_indices = @transform_5, window_bounds = array<i64: 2, 8, 128>}, {pipeline_mode = #tpu.pipeline_mode<synchronous>, transform_indices = @transform_6, window_bounds = array<i64: 2, 8, 128>}]} {
    %c0_i32 = arith.constant 0 : i32
    %0 = arith.cmpi eq, %arg0, %c0_i32 : i32
    %1 = arith.extui %0 : i1 to i32
    %c0_i32_0 = arith.constant 0 : i32
    %2 = arith.cmpi ne, %1, %c0_i32_0 : i32
    scf.if %2 {
      %cst_41 = arith.constant 0.000000e+00 : f32
      %89 = vector.broadcast %cst_41 : f32 to vector<2x8x128xf32>
      %c0_42 = arith.constant 0 : index
      %c0_43 = arith.constant 0 : index
      %c0_44 = arith.constant 0 : index
      %90 = vector.load %arg6[%c0_42, %c0_43, %c0_44] : memref<2x8x128xf32, #tpu.memory_space<vmem>>, vector<2x8x128xf32>
      tpu.vector_store %arg6[%c0_42, %c0_43, %c0_44], %89 {strides = array<i32>} : memref<2x8x128xf32, #tpu.memory_space<vmem>>, vector<2x8x128xf32>,
      %cst_45 = arith.constant 0.000000e+00 : f32
      %91 = vector.broadcast %cst_45 : f32 to vector<2x8x128xf32>
      %c0_46 = arith.constant 0 : index
      %c0_47 = arith.constant 0 : index
      %c0_48 = arith.constant 0 : index
      %92 = vector.load %arg7[%c0_46, %c0_47, %c0_48] : memref<2x8x128xf32, #tpu.memory_space<vmem>>, vector<2x8x128xf32>
      tpu.vector_store %arg7[%c0_46, %c0_47, %c0_48], %91 {strides = array<i32>} : memref<2x8x128xf32, #tpu.memory_space<vmem>>, vector<2x8x128xf32>,
    } else {
    }
    %c0 = arith.constant 0 : index
    %c0_1 = arith.constant 0 : index
    %c0_2 = arith.constant 0 : index
    %3 = vector.load %arg1[%c0, %c0_1, %c0_2] : memref<1x8x128xf32, #tpu.memory_space<vmem>>, vector<1x8x128xf32>
    %4 = vector.shape_cast %3 : vector<1x8x128xf32> to vector<8x128xf32>
    %c0_3 = arith.constant 0 : index
    %c0_4 = arith.constant 0 : index
    %c0_5 = arith.constant 0 : index
    %5 = vector.load %arg6[%c0_3, %c0_4, %c0_5] : memref<2x8x128xf32, #tpu.memory_space<vmem>>, vector<1x8x128xf32>
    %6 = vector.shape_cast %5 : vector<1x8x128xf32> to vector<8x128xf32>
    %c0_6 = arith.constant 0 : index
    %c0_7 = arith.constant 0 : index
    %c0_8 = arith.constant 0 : index
    %7 = vector.load %arg7[%c0_6, %c0_7, %c0_8] : memref<2x8x128xf32, #tpu.memory_space<vmem>>, vector<1x8x128xf32>
    %8 = vector.shape_cast %7 : vector<1x8x128xf32> to vector<8x128xf32>
    %c0_9 = arith.constant 0 : index
    %c0_10 = arith.constant 0 : index
    %9 = vector.load %arg2[%c0_9, %c0_10] : memref<256x512xbf16, #tpu.memory_space<vmem>>, vector<256x512xbf16>
    %c0_11 = arith.constant 0 : index
    %c0_12 = arith.constant 0 : index
    %10 = vector.load %arg3[%c0_11, %c0_12] : memref<1x512xf32, #tpu.memory_space<vmem>>, vector<1x512xf32>
    %11 = tpu.concatenate %4, %6 in 1 : vector<8x128xf32>, vector<8x128xf32> -> vector<8x256xf32>
    %12 = arith.truncf %11 : vector<8x256xf32> to vector<8x256xbf16>
    %cst = arith.constant dense<0.000000e+00> : vector<8x512xf32>
    %13 = tpu.matmul %12, %9, %cst {dimension_numbers = #tpu.dot_dimension_numbers<[1], [0], [0], [1], [0, 0, 1, 1], [], []>} : vector<8x256xbf16>, vector<256x512xbf16>, vector<8x512xf32> -> vector<8x512xf32>
    %14 = vector.broadcast %10 : vector<1x512xf32> to vector<8x512xf32>
    %15 = arith.addf %13, %14 : vector<8x512xf32>
    %16 = vector.extract_strided_slice %15 {offsets = [0, 0], sizes = [8, 128], strides = [1, 1]} : vector<8x512xf32> to vector<8x128xf32>
    %17 = arith.negf %16 : vector<8x128xf32>
    %18 = math.exp %17 : vector<8x128xf32>
    %cst_13 = arith.constant 1.000000e+00 : f32
    %19 = vector.broadcast %cst_13 : f32 to vector<8x128xf32>
    %20 = arith.addf %19, %18 : vector<8x128xf32>
    %21 = arith.divf %19, %20 : vector<8x128xf32>
    %22 = vector.extract_strided_slice %15 {offsets = [0, 128], sizes = [8, 128], strides = [1, 1]} : vector<8x512xf32> to vector<8x128xf32>
    %23 = arith.negf %22 : vector<8x128xf32>
    %24 = math.exp %23 : vector<8x128xf32>
    %cst_14 = arith.constant 1.000000e+00 : f32
    %25 = vector.broadcast %cst_14 : f32 to vector<8x128xf32>
    %26 = arith.addf %25, %24 : vector<8x128xf32>
    %27 = arith.divf %25, %26 : vector<8x128xf32>
    %28 = vector.extract_strided_slice %15 {offsets = [0, 256], sizes = [8, 128], strides = [1, 1]} : vector<8x512xf32> to vector<8x128xf32>
    %29 = math.tanh %28 : vector<8x128xf32>
    %30 = vector.extract_strided_slice %15 {offsets = [0, 384], sizes = [8, 128], strides = [1, 1]} : vector<8x512xf32> to vector<8x128xf32>
    %31 = arith.negf %30 : vector<8x128xf32>
    %32 = math.exp %31 : vector<8x128xf32>
    %cst_15 = arith.constant 1.000000e+00 : f32
    %33 = vector.broadcast %cst_15 : f32 to vector<8x128xf32>
    %34 = arith.addf %33, %32 : vector<8x128xf32>
    %35 = arith.divf %33, %34 : vector<8x128xf32>
    %36 = arith.mulf %27, %8 : vector<8x128xf32>
    %37 = arith.mulf %21, %29 : vector<8x128xf32>
    %38 = arith.addf %36, %37 : vector<8x128xf32>
    %39 = math.tanh %38 : vector<8x128xf32>
    %40 = arith.mulf %35, %39 : vector<8x128xf32>
    %c0_16 = arith.constant 0 : index
    %c0_17 = arith.constant 0 : index
    %c0_18 = arith.constant 0 : index
    %41 = vector.load %arg6[%c0_16, %c0_17, %c0_18] : memref<2x8x128xf32, #tpu.memory_space<vmem>>, vector<1x8x128xf32>
    %42 = vector.shape_cast %41 : vector<1x8x128xf32> to vector<8x128xf32>
    %43 = vector.shape_cast %40 : vector<8x128xf32> to vector<1x8x128xf32>
    tpu.vector_store %arg6[%c0_16, %c0_17, %c0_18], %43 {strides = array<i32>} : memref<2x8x128xf32, #tpu.memory_space<vmem>>, vector<1x8x128xf32>,
    %c0_19 = arith.constant 0 : index
    %c0_20 = arith.constant 0 : index
    %c0_21 = arith.constant 0 : index
    %44 = vector.load %arg7[%c0_19, %c0_20, %c0_21] : memref<2x8x128xf32, #tpu.memory_space<vmem>>, vector<1x8x128xf32>
    %45 = vector.shape_cast %44 : vector<1x8x128xf32> to vector<8x128xf32>
    %46 = vector.shape_cast %38 : vector<8x128xf32> to vector<1x8x128xf32>
    tpu.vector_store %arg7[%c0_19, %c0_20, %c0_21], %46 {strides = array<i32>} : memref<2x8x128xf32, #tpu.memory_space<vmem>>, vector<1x8x128xf32>,
    %c1 = arith.constant 1 : index
    %c0_22 = arith.constant 0 : index
    %c0_23 = arith.constant 0 : index
    %47 = vector.load %arg6[%c1, %c0_22, %c0_23] : memref<2x8x128xf32, #tpu.memory_space<vmem>>, vector<1x8x128xf32>
    %48 = vector.shape_cast %47 : vector<1x8x128xf32> to vector<8x128xf32>
    %c1_24 = arith.constant 1 : index
    %c0_25 = arith.constant 0 : index
    %c0_26 = arith.constant 0 : index
    %49 = vector.load %arg7[%c1_24, %c0_25, %c0_26] : memref<2x8x128xf32, #tpu.memory_space<vmem>>, vector<1x8x128xf32>
    %50 = vector.shape_cast %49 : vector<1x8x128xf32> to vector<8x128xf32>
    %c0_27 = arith.constant 0 : index
    %c0_28 = arith.constant 0 : index
    %51 = vector.load %arg4[%c0_27, %c0_28] : memref<256x512xbf16, #tpu.memory_space<vmem>>, vector<256x512xbf16>
    %c0_29 = arith.constant 0 : index
    %c0_30 = arith.constant 0 : index
    %52 = vector.load %arg5[%c0_29, %c0_30] : memref<1x512xf32, #tpu.memory_space<vmem>>, vector<1x512xf32>
    %53 = tpu.concatenate %40, %48 in 1 : vector<8x128xf32>, vector<8x128xf32> -> vector<8x256xf32>
    %54 = arith.truncf %53 : vector<8x256xf32> to vector<8x256xbf16>
    %cst_31 = arith.constant dense<0.000000e+00> : vector<8x512xf32>
    %55 = tpu.matmul %54, %51, %cst_31 {dimension_numbers = #tpu.dot_dimension_numbers<[1], [0], [0], [1], [0, 0, 1, 1], [], []>} : vector<8x256xbf16>, vector<256x512xbf16>, vector<8x512xf32> -> vector<8x512xf32>
    %56 = vector.broadcast %52 : vector<1x512xf32> to vector<8x512xf32>
    %57 = arith.addf %55, %56 : vector<8x512xf32>
    %58 = vector.extract_strided_slice %57 {offsets = [0, 0], sizes = [8, 128], strides = [1, 1]} : vector<8x512xf32> to vector<8x128xf32>
    %59 = arith.negf %58 : vector<8x128xf32>
    %60 = math.exp %59 : vector<8x128xf32>
    %cst_32 = arith.constant 1.000000e+00 : f32
    %61 = vector.broadcast %cst_32 : f32 to vector<8x128xf32>
    %62 = arith.addf %61, %60 : vector<8x128xf32>
    %63 = arith.divf %61, %62 : vector<8x128xf32>
    %64 = vector.extract_strided_slice %57 {offsets = [0, 128], sizes = [8, 128], strides = [1, 1]} : vector<8x512xf32> to vector<8x128xf32>
    %65 = arith.negf %64 : vector<8x128xf32>
    %66 = math.exp %65 : vector<8x128xf32>
    %cst_33 = arith.constant 1.000000e+00 : f32
    %67 = vector.broadcast %cst_33 : f32 to vector<8x128xf32>
    %68 = arith.addf %67, %66 : vector<8x128xf32>
    %69 = arith.divf %67, %68 : vector<8x128xf32>
    %70 = vector.extract_strided_slice %57 {offsets = [0, 256], sizes = [8, 128], strides = [1, 1]} : vector<8x512xf32> to vector<8x128xf32>
    %71 = math.tanh %70 : vector<8x128xf32>
    %72 = vector.extract_strided_slice %57 {offsets = [0, 384], sizes = [8, 128], strides = [1, 1]} : vector<8x512xf32> to vector<8x128xf32>
    %73 = arith.negf %72 : vector<8x128xf32>
    %74 = math.exp %73 : vector<8x128xf32>
    %cst_34 = arith.constant 1.000000e+00 : f32
    %75 = vector.broadcast %cst_34 : f32 to vector<8x128xf32>
    %76 = arith.addf %75, %74 : vector<8x128xf32>
    %77 = arith.divf %75, %76 : vector<8x128xf32>
    %78 = arith.mulf %69, %50 : vector<8x128xf32>
    %79 = arith.mulf %63, %71 : vector<8x128xf32>
    %80 = arith.addf %78, %79 : vector<8x128xf32>
    %81 = math.tanh %80 : vector<8x128xf32>
    %82 = arith.mulf %77, %81 : vector<8x128xf32>
    %c1_35 = arith.constant 1 : index
    %c0_36 = arith.constant 0 : index
    %c0_37 = arith.constant 0 : index
    %83 = vector.load %arg6[%c1_35, %c0_36, %c0_37] : memref<2x8x128xf32, #tpu.memory_space<vmem>>, vector<1x8x128xf32>
    %84 = vector.shape_cast %83 : vector<1x8x128xf32> to vector<8x128xf32>
    %85 = vector.shape_cast %82 : vector<8x128xf32> to vector<1x8x128xf32>
    tpu.vector_store %arg6[%c1_35, %c0_36, %c0_37], %85 {strides = array<i32>} : memref<2x8x128xf32, #tpu.memory_space<vmem>>, vector<1x8x128xf32>,
    %c1_38 = arith.constant 1 : index
    %c0_39 = arith.constant 0 : index
    %c0_40 = arith.constant 0 : index
    %86 = vector.load %arg7[%c1_38, %c0_39, %c0_40] : memref<2x8x128xf32, #tpu.memory_space<vmem>>, vector<1x8x128xf32>
    %87 = vector.shape_cast %86 : vector<1x8x128xf32> to vector<8x128xf32>
    %88 = vector.shape_cast %80 : vector<8x128xf32> to vector<1x8x128xf32>
    tpu.vector_store %arg7[%c1_38, %c0_39, %c0_40], %88 {strides = array<i32>} : memref<2x8x128xf32, #tpu.memory_space<vmem>>, vector<1x8x128xf32>,
    return
  }
  func.func @transform_0(%arg0: i32) -> (i32, i32, i32) {
    %c0_i32 = arith.constant 0 : i32
    %c0_i32_0 = arith.constant 0 : i32
    %c0_i32_1 = arith.constant 0 : i32
    return %arg0, %c0_i32, %c0_i32_0 : i32, i32, i32
  }
  func.func @transform_1(%arg0: i32) -> (i32, i32) {
    %c0_i32 = arith.constant 0 : i32
    %c0_i32_0 = arith.constant 0 : i32
    %c0_i32_1 = arith.constant 0 : i32
    return %c0_i32, %c0_i32_0 : i32, i32
  }
  func.func @transform_2(%arg0: i32) -> (i32, i32) {
    %c0_i32 = arith.constant 0 : i32
    %c0_i32_0 = arith.constant 0 : i32
    %c0_i32_1 = arith.constant 0 : i32
    return %c0_i32, %c0_i32_0 : i32, i32
  }
  func.func @transform_3(%arg0: i32) -> (i32, i32) {
    %c0_i32 = arith.constant 0 : i32
    %c0_i32_0 = arith.constant 0 : i32
    %c0_i32_1 = arith.constant 0 : i32
    return %c0_i32, %c0_i32_0 : i32, i32
  }
  func.func @transform_4(%arg0: i32) -> (i32, i32) {
    %c0_i32 = arith.constant 0 : i32
    %c0_i32_0 = arith.constant 0 : i32
    %c0_i32_1 = arith.constant 0 : i32
    return %c0_i32, %c0_i32_0 : i32, i32
  }
  func.func @transform_5(%arg0: i32) -> (i32, i32, i32) {
    %c0_i32 = arith.constant 0 : i32
    %c0_i32_0 = arith.constant 0 : i32
    %c0_i32_1 = arith.constant 0 : i32
    %c0_i32_2 = arith.constant 0 : i32
    return %c0_i32, %c0_i32_0, %c0_i32_1 : i32, i32, i32
  }
  func.func @transform_6(%arg0: i32) -> (i32, i32, i32) {
    %c0_i32 = arith.constant 0 : i32
    %c0_i32_0 = arith.constant 0 : i32
    %c0_i32_1 = arith.constant 0 : i32
    %c0_i32_2 = arith.constant 0 : i32
    return %c0_i32, %c0_i32_0, %c0_i32_1 : i32, i32, i32
  }
}

</mosaic_0001>

<llo_original>
// kernel: seq2seq_forward.2
$region0: #{seq2seq_forward.2}
  #allocation0 [shape = 'u32[]', space=smem, size = 0x4, offset = 0x4, fixed_abs, tag = 'smem constant byte address 0x4 - core index']
  #allocation1 [shape = 'u32[144,128]{1,0:T(1,128)}', space=vmem, size = 0x12000, scoped, tag = 'internal scratch']
  %s0 = inlined_call_operand.vmem [shape: f32[8,8,128], index: 0, kind: input, shape index: {}]
  %s1 = inlined_call_operand.vmem [shape: bf16[256,512], index: 1, kind: input, shape index: {}]
  %s2 = inlined_call_operand.vmem [shape: f32[1,512], index: 2, kind: input, shape index: {}]
  %s3 = inlined_call_operand.hbm [shape: bf16[256,512], index: 3, kind: input, shape index: {}]
  %s4 = inlined_call_operand.vmem [shape: f32[1,512], index: 4, kind: input, shape index: {}]
  %s5 = inlined_call_operand.vmem [shape: f32[2,8,128], index: 5, kind: output, shape index: {0}]
  %s6 = inlined_call_operand.vmem [shape: f32[2,8,128], index: 6, kind: output, shape index: {1}]
  %7 = xla_tuple %s5, %s6
  %s8 = sld [smem:[#allocation0]]
  $region69: #{seq2seq_forward.2} parent=0
    _
  %s10 = ssub.s32 1, %s8
  %s11 = scalar_select 0, %s10, %s8
  $region1: #{seq2seq_forward.2} parent=0
    #allocation2 [shape = 'u8[262144]{0}', space=vmem, size = 0x40000, scoped, tag = 'input window, operand 3, single buffered']
    #allocation3 [shape = 's32[2]{0}', space=sflag, size = 0x8, scoped, tag = 'scoped memory for seq2seq_forward.2']
    %12 = vsyncpa [#allocation3], 0
    loop: start=0, step=1, limit=10
    $region2: #{seq2seq_forward.2} parent=1 // loop_pre_header
      _
    $region3: #{seq2seq_forward.2} parent=1 // loop_header
      %s14 = sphi 0, %s18
      %p15 = scmp.ge.s32.totalorder %s14, 10
      %s24 = sphi 0, %s26
      %s27 = sphi 0, %s24
      %s28 = sphi 0, %s27
      %s44 = sphi 0, %s28
      %s48 = sphi 0, %s48
      %s50 = sphi 0, %s48
      %s51 = sphi 0, %s50
      %s65 = sphi 0, %s51
      %s69 = sphi 0, %s69
      %s71 = sphi 0, %s69
      %s72 = sphi 0, %s71
      %s86 = sphi 0, %s72
      %s90 = sphi 0, %s90
      %s92 = sphi 0, %s90
      %s93 = sphi 0, %s92
      %s107 = sphi 0, %s93
      %s111 = sphi 0, %s111
      %s113 = sphi 0, %s111
      %s114 = sphi 0, %s113
      %s128 = sphi 0, %s114
      %s132 = sphi 0, %s132
      %s134 = sphi 0, %s132
      %s135 = sphi 0, %s134
      %s149 = sphi 0, %s135
      %s153 = sphi 0, %s153
      %s155 = sphi 0, %s153
      %s156 = sphi 0, %s155
      %s170 = sphi 0, %s156
    $region4: #{seq2seq_forward.2} parent=1 // loop_header_branch
      %17 = sbr.rel (%p15) target = $region8
    $region5: #{seq2seq_forward.2} parent=1 // loop_body
      %s19 = ssub.s32 %s14, 1
      %s20 = ssub.s32 %s14, 2
      %s21 = sadd.s32 %s14, 1
      %s22 = ssub.s32 %s14, %s21
      %p23 = scmp.eq.s32.totalorder %s22, 0
      %s25 = sadd.s32 %s24, 1
      %s26 = scalar_select %p23, %s24, %s25
      %p29 = pneg %p23
      %p30 = scmp.eq.s32.totalorder %s14, 7
      %p31 = por %p29, %p30
      %p32 = scmp.ne.s32.totalorder %s24, %s27
      %p33 = scmp.eq.s32.totalorder %s14, 0
      %p34 = por %p32, %p33
      %p35 = scmp.ne.s32.totalorder %s24, %s27
      %p36 = scmp.eq.s32.totalorder %s19, 7
      %p37 = por %p35, %p36
      %p38 = scmp.ne.s32.totalorder %s27, %s28
      %p39 = scmp.eq.s32.totalorder %s19, 0
      %p40 = por %p38, %p39
      %p41 = scmp.ne.s32.totalorder %s27, %s28
      %p42 = scmp.eq.s32.totalorder %s20, 7
      %p43 = por %p41, %p42
      %p45 = scmp.ne.s32.totalorder %s28, %s44
      %p46 = scmp.eq.s32.totalorder %s20, 0
      %p47 = por %p45, %p46
      %s49 = sadd.s32 %s48, 1
      %p52 = scmp.eq.s32.totalorder %s14, 7
      %p53 = scmp.ne.s32.totalorder %s48, %s50
      %p54 = scmp.eq.s32.totalorder %s14, 0
      %p55 = por %p53, %p54
      %p56 = scmp.ne.s32.totalorder %s48, %s50
      %p57 = scmp.eq.s32.totalorder %s19, 7
      %p58 = por %p56, %p57
      %p59 = scmp.ne.s32.totalorder %s50, %s51
      %p60 = scmp.eq.s32.totalorder %s19, 0
      %p61 = por %p59, %p60
      %p62 = scmp.ne.s32.totalorder %s50, %s51
      %p63 = scmp.eq.s32.totalorder %s20, 7
      %p64 = por %p62, %p63
      %p66 = scmp.ne.s32.totalorder %s51, %s65
      %p67 = scmp.eq.s32.totalorder %s20, 0
      %p68 = por %p66, %p67
      %s70 = sadd.s32 %s69, 1
      %p73 = scmp.eq.s32.totalorder %s14, 7
      %p74 = scmp.ne.s32.totalorder %s69, %s71
      %p75 = scmp.eq.s32.totalorder %s14, 0
      %p76 = por %p74, %p75
      %p77 = scmp.ne.s32.totalorder %s69, %s71
      %p78 = scmp.eq.s32.totalorder %s19, 7
      %p79 = por %p77, %p78
      %p80 = scmp.ne.s32.totalorder %s71, %s72
      %p81 = scmp.eq.s32.totalorder %s19, 0
      %p82 = por %p80, %p81
      %p83 = scmp.ne.s32.totalorder %s71, %s72
      %p84 = scmp.eq.s32.totalorder %s20, 7
      %p85 = por %p83, %p84
      %p87 = scmp.ne.s32.totalorder %s72, %s86
      %p88 = scmp.eq.s32.totalorder %s20, 0
      %p89 = por %p87, %p88
      %s91 = sadd.s32 %s90, 1
      %p94 = scmp.eq.s32.totalorder %s14, 7
      %p95 = scmp.ne.s32.totalorder %s90, %s92
      %p96 = scmp.eq.s32.totalorder %s14, 0
      %p97 = por %p95, %p96
      %p98 = scmp.ne.s32.totalorder %s90, %s92
      %p99 = scmp.eq.s32.totalorder %s19, 7
      %p100 = por %p98, %p99
      %p101 = scmp.ne.s32.totalorder %s92, %s93
      %p102 = scmp.eq.s32.totalorder %s19, 0
      %p103 = por %p101, %p102
      %p104 = scmp.ne.s32.totalorder %s92, %s93
      %p105 = scmp.eq.s32.totalorder %s20, 7
      %p106 = por %p104, %p105
      %p108 = scmp.ne.s32.totalorder %s93, %s107
      %p109 = scmp.eq.s32.totalorder %s20, 0
      %p110 = por %p108, %p109
      %s112 = sadd.s32 %s111, 1
      %p115 = scmp.eq.s32.totalorder %s14, 7
      %p116 = scmp.ne.s32.totalorder %s111, %s113
      %p117 = scmp.eq.s32.totalorder %s14, 0
      %p118 = por %p116, %p117
      %p119 = scmp.ne.s32.totalorder %s111, %s113
      %p120 = scmp.eq.s32.totalorder %s19, 7
      %p121 = por %p119, %p120
      %p122 = scmp.ne.s32.totalorder %s113, %s114
      %p123 = scmp.eq.s32.totalorder %s19, 0
      %p124 = por %p122, %p123
      %p125 = scmp.ne.s32.totalorder %s113, %s114
      %p126 = scmp.eq.s32.totalorder %s20, 7
      %p127 = por %p125, %p126
      %p129 = scmp.ne.s32.totalorder %s114, %s128
      %p130 = scmp.eq.s32.totalorder %s20, 0
      %p131 = por %p129, %p130
      %s133 = sadd.s32 %s132, 1
      %p136 = scmp.eq.s32.totalorder %s14, 7
      %p137 = scmp.ne.s32.totalorder %s132, %s134
      %p138 = scmp.eq.s32.totalorder %s14, 0
      %p139 = por %p137, %p138
      %p140 = scmp.ne.s32.totalorder %s132, %s134
      %p141 = scmp.eq.s32.totalorder %s19, 7
      %p142 = por %p140, %p141
      %p143 = scmp.ne.s32.totalorder %s134, %s135
      %p144 = scmp.eq.s32.totalorder %s19, 0
      %p145 = por %p143, %p144
      %p146 = scmp.ne.s32.totalorder %s134, %s135
      %p147 = scmp.eq.s32.totalorder %s20, 7
      %p148 = por %p146, %p147
      %p150 = scmp.ne.s32.totalorder %s135, %s149
      %p151 = scmp.eq.s32.totalorder %s20, 0
      %p152 = por %p150, %p151
      %s154 = sadd.s32 %s153, 1
      %p157 = scmp.eq.s32.totalorder %s14, 7
      %p158 = scmp.ne.s32.totalorder %s153, %s155
      %p159 = scmp.eq.s32.totalorder %s14, 0
      %p160 = por %p158, %p159
      %p161 = scmp.ne.s32.totalorder %s153, %s155
      %p162 = scmp.eq.s32.totalorder %s19, 7
      %p163 = por %p161, %p162
      %p164 = scmp.ne.s32.totalorder %s155, %s156
      %p165 = scmp.eq.s32.totalorder %s19, 0
      %p166 = por %p164, %p165
      %p167 = scmp.ne.s32.totalorder %s155, %s156
      %p168 = scmp.eq.s32.totalorder %s20, 7
      %p169 = por %p167, %p168
      %p171 = scmp.ne.s32.totalorder %s156, %s170
      %p172 = scmp.eq.s32.totalorder %s20, 0
      %p173 = por %p171, %p172
      %p174 = scmp.le.s32.totalorder 1, %s14
      %p175 = scmp.lt.s32.totalorder %s14, 9
      %p176 = pnand %p174, %p175
      %p177 = pneg %p176
      // Predicated region
      $region9: #{seq2seq_forward.2} parent=5 // pred_check
        _
      $region10: #{seq2seq_forward.2} parent=5 // pred_check_branch
        %179 = sbr.rel (%p176) target = $region12
      $region11: #{seq2seq_forward.2} parent=5 // pred_region
        %s180 = ssub.s32 %s14, 1
        // Predicated region
        $region13: #{seq2seq_forward.2} parent=11 // pred_check
          %p181 = pneg %p61
        $region14: #{seq2seq_forward.2} parent=11 // pred_check_branch
          %183 = sbr.rel (%p181) target = $region16
        $region15: #{seq2seq_forward.2} parent=11 // pred_region
          _
        $region16: #{seq2seq_forward.2} parent=11 // pred_fallthru
          _
        // Predicated region
        $region17: #{seq2seq_forward.2} parent=11 // pred_check
          %p184 = pneg %p82
        $region18: #{seq2seq_forward.2} parent=11 // pred_check_branch
          %186 = sbr.rel (%p184) target = $region20
        $region19: #{seq2seq_forward.2} parent=11 // pred_region
          _
        $region20: #{seq2seq_forward.2} parent=11 // pred_fallthru
          _
        // Predicated region
        $region21: #{seq2seq_forward.2} parent=11 // pred_check
          %p187 = pneg %p103
        $region22: #{seq2seq_forward.2} parent=11 // pred_check_branch
          %189 = sbr.rel (%p187) target = $region24
        $region23: #{seq2seq_forward.2} parent=11 // pred_region
          %s191 = ssub.s32 8192, 8192
          %192 = vsyncadd [#allocation3], %s191
          %s193 = sshll.u32 [#allocation2], 4
          %s194 = int_to_ptr.vmem [resolvable:$true] %s193
          %199 = dma.hbm_to_vmem [thread:$0]  %s3, 8192, %s194, [#allocation3], 256, 256, 16
        $region24: #{seq2seq_forward.2} parent=11 // pred_fallthru
          _
        // Predicated region
        $region25: #{seq2seq_forward.2} parent=11 // pred_check
          %p200 = pneg %p124
        $region26: #{seq2seq_forward.2} parent=11 // pred_check_branch
          %202 = sbr.rel (%p200) target = $region28
        $region27: #{seq2seq_forward.2} parent=11 // pred_region
          _
        $region28: #{seq2seq_forward.2} parent=11 // pred_fallthru
          _
      $region12: #{seq2seq_forward.2} parent=5 // pred_fallthru
        _
      %p203 = scmp.lt.s32.totalorder %s14, 8
      // Predicated region
      $region29: #{seq2seq_forward.2} parent=5 // pred_check
        %p204 = pneg %p203
      $region30: #{seq2seq_forward.2} parent=5 // pred_check_branch
        %206 = sbr.rel (%p204) target = $region32
      $region31: #{seq2seq_forward.2} parent=5 // pred_region
        // Predicated region
        $region33: #{seq2seq_forward.2} parent=31 // pred_check
          %p207 = pneg %p34
        $region34: #{seq2seq_forward.2} parent=31 // pred_check_branch
          %209 = sbr.rel (%p207) target = $region36
        $region35: #{seq2seq_forward.2} parent=31 // pred_region
          %p210 = scmp.lt.s32.totalorder %s14, 7
          %s211 = scalar_select %p210, %s14, 7
          %s212 = smul.addr %s211, 8
          %s213 = scalar_lea.vmem %s0, %s212
        $region36: #{seq2seq_forward.2} parent=31 // pred_fallthru
          _
      $region32: #{seq2seq_forward.2} parent=5 // pred_fallthru
        _
      %p214 = scmp.le.s32.totalorder 1, %s14
      %p215 = scmp.lt.s32.totalorder %s14, 9
      %p216 = pnand %p214, %p215
      %p217 = pneg %p216
      // Predicated region
      $region37: #{seq2seq_forward.2} parent=5 // pred_check
        _
      $region38: #{seq2seq_forward.2} parent=5 // pred_check_branch
        %219 = sbr.rel (%p216) target = $region40
      $region39: #{seq2seq_forward.2} parent=5 // pred_region
        %s220 = ssub.s32 %s14, 1
        // Predicated region
        $region41: #{seq2seq_forward.2} parent=39 // pred_check
          %p221 = pneg %p103
        $region42: #{seq2seq_forward.2} parent=39 // pred_check_branch
          %223 = sbr.rel (%p221) target = $region44
        $region43: #{seq2seq_forward.2} parent=39 // pred_region
          %224 = dma.done [#allocation3], 8192
        $region44: #{seq2seq_forward.2} parent=39 // pred_fallthru
          _
        %p225 = scmp.lt.s32.totalorder %s19, 7
        %s226 = scalar_select %p225, %s19, 7
        %s227 = smul.addr %s226, 8
        %s228 = scalar_lea.vmem %s0, %s227
        %p229 = pneg %p40
        %p230 = pneg %p37
        %p231 = pneg %p61
        %p232 = pneg %p58
        %p233 = pneg %p82
        %p234 = pneg %p79
        %p235 = pneg %p103
        %p236 = pneg %p100
        %p237 = pneg %p124
        %p238 = pneg %p121
        %p239 = pneg %p145
        %p240 = pneg %p142
        %p241 = pneg %p166
        %p242 = pneg %p163
        %p243 = scmp.lt.s32.totalorder %s19, 7
        %s244 = scalar_select %p243, %s19, 7
        %s245 = smul.addr %s244, 8
        %s246 = scalar_lea.vmem %s0, %s245
        %p247 = scmp.eq.s32.totalorder %s19, 0
        // Predicated region
        $region45: #{seq2seq_forward.2} parent=39 // pred_check
          %p248 = pneg %p247
        $region46: #{seq2seq_forward.2} parent=39 // pred_check_branch
          %250 = sbr.rel (%p248) target = $region48
        $region47: #{seq2seq_forward.2} parent=39 // pred_region
          %251 = vst [vmem:[%s5] sm:$0xff] 0.0
          %252 = vst [vmem:[%s5 + $0x8] sm:$0xff] 0.0
          %253 = vst [vmem:[%s6] sm:$0xff] 0.0
          %254 = vst [vmem:[%s6 + $0x8] sm:$0xff] 0.0
        $region48: #{seq2seq_forward.2} parent=39 // pred_fallthru
          _
        %v255 = vld [vmem:[%s246] sm:$0xff]
        %v256 = vld [vmem:[%s5] sm:$0xff]
        %v257 = vld [vmem:[%s6] sm:$0xff]
        %v258 = vld [vmem:[%s1] sm:$0xff]
        %v259 = vld [vmem:[%s1 + $0x8] sm:$0xff]
        %v260 = vld [vmem:[%s1 + $0x10] sm:$0xff]
        %v261 = vld [vmem:[%s1 + $0x18] sm:$0xff]
        %v262 = vld [vmem:[%s1 + $0x20] sm:$0xff]
        %v263 = vld [vmem:[%s1 + $0x28] sm:$0xff]
        %v264 = vld [vmem:[%s1 + $0x30] sm:$0xff]
        %v265 = vld [vmem:[%s1 + $0x38] sm:$0xff]
        %v266 = vld [vmem:[%s1 + $0x40] sm:$0xff]
        %v267 = vld [vmem:[%s1 + $0x48] sm:$0xff]
        %v268 = vld [vmem:[%s1 + $0x50] sm:$0xff]
        %v269 = vld [vmem:[%s1 + $0x58] sm:$0xff]
        %v270 = vld [vmem:[%s1 + $0x60] sm:$0xff]
        %v271 = vld [vmem:[%s1 + $0x68] sm:$0xff]
        %v272 = vld [vmem:[%s1 + $0x70] sm:$0xff]
        %v273 = vld [vmem:[%s1 + $0x78] sm:$0xff]
        %v274 = vld [vmem:[%s1 + $0x80] sm:$0xff]
        %v275 = vld [vmem:[%s1 + $0x88] sm:$0xff]
        %v276 = vld [vmem:[%s1 + $0x90] sm:$0xff]
        %v277 = vld [vmem:[%s1 + $0x98] sm:$0xff]
        %v278 = vld [vmem:[%s1 + $0xa0] sm:$0xff]
        %v279 = vld [vmem:[%s1 + $0xa8] sm:$0xff]
        %v280 = vld [vmem:[%s1 + $0xb0] sm:$0xff]
        %v281 = vld [vmem:[%s1 + $0xb8] sm:$0xff]
        %v282 = vld [vmem:[%s1 + $0xc0] sm:$0xff]
        %v283 = vld [vmem:[%s1 + $0xc8] sm:$0xff]
        %v284 = vld [vmem:[%s1 + $0xd0] sm:$0xff]
        %v285 = vld [vmem:[%s1 + $0xd8] sm:$0xff]
        %v286 = vld [vmem:[%s1 + $0xe0] sm:$0xff]
        %v287 = vld [vmem:[%s1 + $0xe8] sm:$0xff]
        %v288 = vld [vmem:[%s1 + $0xf0] sm:$0xff]
        %v289 = vld [vmem:[%s1 + $0xf8] sm:$0xff]
        %v290 = vld [vmem:[%s1 + $0x100] sm:$0xff]
        %v291 = vld [vmem:[%s1 + $0x108] sm:$0xff]
        %v292 = vld [vmem:[%s1 + $0x110] sm:$0xff]
        %v293 = vld [vmem:[%s1 + $0x118] sm:$0xff]
        %v294 = vld [vmem:[%s1 + $0x120] sm:$0xff]
        %v295 = vld [vmem:[%s1 + $0x128] sm:$0xff]
        %v296 = vld [vmem:[%s1 + $0x130] sm:$0xff]
        %v297 = vld [vmem:[%s1 + $0x138] sm:$0xff]
        %v298 = vld [vmem:[%s1 + $0x140] sm:$0xff]
        %v299 = vld [vmem:[%s1 + $0x148] sm:$0xff]
        %v300 = vld [vmem:[%s1 + $0x150] sm:$0xff]
        %v301 = vld [vmem:[%s1 + $0x158] sm:$0xff]
        %v302 = vld [vmem:[%s1 + $0x160] sm:$0xff]
        %v303 = vld [vmem:[%s1 + $0x168] sm:$0xff]
        %v304 = vld [vmem:[%s1 + $0x170] sm:$0xff]
        %v305 = vld [vmem:[%s1 + $0x178] sm:$0xff]
        %v306 = vld [vmem:[%s1 + $0x180] sm:$0xff]
        %v307 = vld [vmem:[%s1 + $0x188] sm:$0xff]
        %v308 = vld [vmem:[%s1 + $0x190] sm:$0xff]
        %v309 = vld [vmem:[%s1 + $0x198] sm:$0xff]
        %v310 = vld [vmem:[%s1 + $0x1a0] sm:$0xff]
        %v311 = vld [vmem:[%s1 + $0x1a8] sm:$0xff]
        %v312 = vld [vmem:[%s1 + $0x1b0] sm:$0xff]
        %v313 = vld [vmem:[%s1 + $0x1b8] sm:$0xff]
        %v314 = vld [vmem:[%s1 + $0x1c0] sm:$0xff]
        %v315 = vld [vmem:[%s1 + $0x1c8] sm:$0xff]
        %v316 = vld [vmem:[%s1 + $0x1d0] sm:$0xff]
        %v317 = vld [vmem:[%s1 + $0x1d8] sm:$0xff]
        %v318 = vld [vmem:[%s1 + $0x1e0] sm:$0xff]
        %v319 = vld [vmem:[%s1 + $0x1e8] sm:$0xff]
        %v320 = vld [vmem:[%s1 + $0x1f0] sm:$0xff]
        %v321 = vld [vmem:[%s1 + $0x1f8] sm:$0xff]
        %v322 = vld [vmem:[%s2] sm:$0xf]
        %v323 = vpack.c.bf16 %v255, %v255
        %v324 = vpack.c.bf16 %v256, %v256
        %v326 = vlaneseq
        %v327 = vshrl.u32 %v326, 7
        %v328 = vsub.s32 0, %v327
        %v329 = vrot.slane %v322, %v328
        %v330 = vlaneseq
        %v331 = vshrl.u32 %v330, 7
        %v332 = vsub.s32 1, %v331
        %v333 = vrot.slane %v322, %v332
        %v334 = vlaneseq
        %v335 = vshrl.u32 %v334, 7
        %v336 = vsub.s32 2, %v335
        %v337 = vrot.slane %v322, %v336
        %v338 = vlaneseq
        %v339 = vshrl.u32 %v338, 7
        %v340 = vsub.s32 3, %v339
        %v341 = vrot.slane %v322, %v340
        %v410 = vunpack.c.l.b16 %v258
        %v411 = vunpack.c.h.b16 %v258
        %v412 = vunpack.c.l.b16 %v259
        %v413 = vunpack.c.h.b16 %v259
        %v414 = vunpack.c.l.b16 %v260
        %v415 = vunpack.c.h.b16 %v260
        %v416 = vunpack.c.l.b16 %v261
        %v417 = vunpack.c.h.b16 %v261
        %v418 = vunpack.c.l.b16 %v262
        %v419 = vunpack.c.h.b16 %v262
        %v420 = vunpack.c.l.b16 %v263
        %v421 = vunpack.c.h.b16 %v263
        %v422 = vunpack.c.l.b16 %v264
        %v423 = vunpack.c.h.b16 %v264
        %v424 = vunpack.c.l.b16 %v265
        %v425 = vunpack.c.h.b16 %v265
        %v426 = vunpack.c.l.b16 %v266
        %v427 = vunpack.c.h.b16 %v266
        %v428 = vunpack.c.l.b16 %v267
        %v429 = vunpack.c.h.b16 %v267
        %v430 = vunpack.c.l.b16 %v268
        %v431 = vunpack.c.h.b16 %v268
        %v432 = vunpack.c.l.b16 %v269
        %v433 = vunpack.c.h.b16 %v269
        %v434 = vunpack.c.l.b16 %v270
        %v435 = vunpack.c.h.b16 %v270
        %v436 = vunpack.c.l.b16 %v271
        %v437 = vunpack.c.h.b16 %v271
        %v438 = vunpack.c.l.b16 %v272
        %v439 = vunpack.c.h.b16 %v272
        %v440 = vunpack.c.l.b16 %v273
        %v441 = vunpack.c.h.b16 %v273
        %v442 = vunpack.c.l.b16 %v274
        %v443 = vunpack.c.h.b16 %v274
        %v444 = vunpack.c.l.b16 %v275
        %v445 = vunpack.c.h.b16 %v275
        %v446 = vunpack.c.l.b16 %v276
        %v447 = vunpack.c.h.b16 %v276
        %v448 = vunpack.c.l.b16 %v277
        %v449 = vunpack.c.h.b16 %v277
        %v450 = vunpack.c.l.b16 %v278
        %v451 = vunpack.c.h.b16 %v278
        %v452 = vunpack.c.l.b16 %v279
        %v453 = vunpack.c.h.b16 %v279
        %v454 = vunpack.c.l.b16 %v280
        %v455 = vunpack.c.h.b16 %v280
        %v456 = vunpack.c.l.b16 %v281
        %v457 = vunpack.c.h.b16 %v281
        %v458 = vunpack.c.l.b16 %v282
        %v459 = vunpack.c.h.b16 %v282
        %v460 = vunpack.c.l.b16 %v283
        %v461 = vunpack.c.h.b16 %v283
        %v462 = vunpack.c.l.b16 %v284
        %v463 = vunpack.c.h.b16 %v284
        %v464 = vunpack.c.l.b16 %v285
        %v465 = vunpack.c.h.b16 %v285
        %v466 = vunpack.c.l.b16 %v286
        %v467 = vunpack.c.h.b16 %v286
        %v468 = vunpack.c.l.b16 %v287
        %v469 = vunpack.c.h.b16 %v287
        %v470 = vunpack.c.l.b16 %v288
        %v471 = vunpack.c.h.b16 %v288
        %v472 = vunpack.c.l.b16 %v289
        %v473 = vunpack.c.h.b16 %v289
        %v474 = vunpack.c.l.b16 %v290
        %v475 = vunpack.c.h.b16 %v290
        %v476 = vunpack.c.l.b16 %v291
        %v477 = vunpack.c.h.b16 %v291
        %v478 = vunpack.c.l.b16 %v292
        %v479 = vunpack.c.h.b16 %v292
        %v480 = vunpack.c.l.b16 %v293
        %v481 = vunpack.c.h.b16 %v293
        %v482 = vunpack.c.l.b16 %v294
        %v483 = vunpack.c.h.b16 %v294
        %v484 = vunpack.c.l.b16 %v295
        %v485 = vunpack.c.h.b16 %v295
        %v486 = vunpack.c.l.b16 %v296
        %v487 = vunpack.c.h.b16 %v296
        %v488 = vunpack.c.l.b16 %v297
        %v489 = vunpack.c.h.b16 %v297
        %v490 = vunpack.c.l.b16 %v298
        %v491 = vunpack.c.h.b16 %v298
        %v492 = vunpack.c.l.b16 %v299
        %v493 = vunpack.c.h.b16 %v299
        %v494 = vunpack.c.l.b16 %v300
        %v495 = vunpack.c.h.b16 %v300
        %v496 = vunpack.c.l.b16 %v301
        %v497 = vunpack.c.h.b16 %v301
        %v498 = vunpack.c.l.b16 %v302
        %v499 = vunpack.c.h.b16 %v302
        %v500 = vunpack.c.l.b16 %v303
        %v501 = vunpack.c.h.b16 %v303
        %v502 = vunpack.c.l.b16 %v304
        %v503 = vunpack.c.h.b16 %v304
        %v504 = vunpack.c.l.b16 %v305
        %v505 = vunpack.c.h.b16 %v305
        %v506 = vunpack.c.l.b16 %v306
        %v507 = vunpack.c.h.b16 %v306
        %v508 = vunpack.c.l.b16 %v307
        %v509 = vunpack.c.h.b16 %v307
        %v510 = vunpack.c.l.b16 %v308
        %v511 = vunpack.c.h.b16 %v308
        %v512 = vunpack.c.l.b16 %v309
        %v513 = vunpack.c.h.b16 %v309
        %v514 = vunpack.c.l.b16 %v310
        %v515 = vunpack.c.h.b16 %v310
        %v516 = vunpack.c.l.b16 %v311
        %v517 = vunpack.c.h.b16 %v311
        %v518 = vunpack.c.l.b16 %v312
        %v519 = vunpack.c.h.b16 %v312
        %v520 = vunpack.c.l.b16 %v313
        %v521 = vunpack.c.h.b16 %v313
        %v522 = vunpack.c.l.b16 %v314
        %v523 = vunpack.c.h.b16 %v314
        %v524 = vunpack.c.l.b16 %v315
        %v525 = vunpack.c.h.b16 %v315
        %v526 = vunpack.c.l.b16 %v316
        %v527 = vunpack.c.h.b16 %v316
        %v528 = vunpack.c.l.b16 %v317
        %v529 = vunpack.c.h.b16 %v317
        %v530 = vunpack.c.l.b16 %v318
        %v531 = vunpack.c.h.b16 %v318
        %v532 = vunpack.c.l.b16 %v319
        %v533 = vunpack.c.h.b16 %v319
        %v534 = vunpack.c.l.b16 %v320
        %v535 = vunpack.c.h.b16 %v320
        %v536 = vunpack.c.l.b16 %v321
        %v537 = vunpack.c.h.b16 %v321
        %v538 = vpack.c.b16 %v414, %v410
        %v539 = vpack.c.b16 %v415, %v411
        %v540 = vpack.c.b16 %v416, %v412
        %v541 = vpack.c.b16 %v417, %v413
        %v542 = vpack.c.b16 %v422, %v418
        %v543 = vpack.c.b16 %v423, %v419
        %v544 = vpack.c.b16 %v424, %v420
        %v545 = vpack.c.b16 %v425, %v421
        %v546 = vpack.c.b16 %v430, %v426
        %v547 = vpack.c.b16 %v431, %v427
        %v548 = vpack.c.b16 %v432, %v428
        %v549 = vpack.c.b16 %v433, %v429
        %v550 = vpack.c.b16 %v438, %v434
        %v551 = vpack.c.b16 %v439, %v435
        %v552 = vpack.c.b16 %v440, %v436
        %v553 = vpack.c.b16 %v441, %v437
        %v554 = vpack.c.b16 %v446, %v442
        %v555 = vpack.c.b16 %v447, %v443
        %v556 = vpack.c.b16 %v448, %v444
        %v557 = vpack.c.b16 %v449, %v445
        %v558 = vpack.c.b16 %v454, %v450
        %v559 = vpack.c.b16 %v455, %v451
        %v560 = vpack.c.b16 %v456, %v452
        %v561 = vpack.c.b16 %v457, %v453
        %v562 = vpack.c.b16 %v462, %v458
        %v563 = vpack.c.b16 %v463, %v459
        %v564 = vpack.c.b16 %v464, %v460
        %v565 = vpack.c.b16 %v465, %v461
        %v566 = vpack.c.b16 %v470, %v466
        %v567 = vpack.c.b16 %v471, %v467
        %v568 = vpack.c.b16 %v472, %v468
        %v569 = vpack.c.b16 %v473, %v469
        %v570 = vpack.c.b16 %v478, %v474
        %v571 = vpack.c.b16 %v479, %v475
        %v572 = vpack.c.b16 %v480, %v476
        %v573 = vpack.c.b16 %v481, %v477
        %v574 = vpack.c.b16 %v486, %v482
        %v575 = vpack.c.b16 %v487, %v483
        %v576 = vpack.c.b16 %v488, %v484
        %v577 = vpack.c.b16 %v489, %v485
        %v578 = vpack.c.b16 %v494, %v490
        %v579 = vpack.c.b16 %v495, %v491
        %v580 = vpack.c.b16 %v496, %v492
        %v581 = vpack.c.b16 %v497, %v493
        %v582 = vpack.c.b16 %v502, %v498
        %v583 = vpack.c.b16 %v503, %v499
        %v584 = vpack.c.b16 %v504, %v500
        %v585 = vpack.c.b16 %v505, %v501
        %v586 = vpack.c.b16 %v510, %v506
        %v587 = vpack.c.b16 %v511, %v507
        %v588 = vpack.c.b16 %v512, %v508
        %v589 = vpack.c.b16 %v513, %v509
        %v590 = vpack.c.b16 %v518, %v514
        %v591 = vpack.c.b16 %v519, %v515
        %v592 = vpack.c.b16 %v520, %v516
        %v593 = vpack.c.b16 %v521, %v517
        %v594 = vpack.c.b16 %v526, %v522
        %v595 = vpack.c.b16 %v527, %v523
        %v596 = vpack.c.b16 %v528, %v524
        %v597 = vpack.c.b16 %v529, %v525
        %v598 = vpack.c.b16 %v534, %v530
        %v599 = vpack.c.b16 %v535, %v531
        %v600 = vpack.c.b16 %v536, %v532
        %v601 = vpack.c.b16 %v537, %v533
        %666 = vmatprep.subr.bf16.mxu0 %v539
        %667 = vmatpush1.bf16.msra.mxu0 %v538
        %668 = vmatprep.subr.bf16.mxu0 %v543
        %669 = vmatpush1.bf16.msra.mxu0 %v542
        %670 = vmatprep.subr.bf16.mxu0 %v547
        %671 = vmatpush1.bf16.msra.mxu0 %v546
        %672 = vmatprep.subr.bf16.mxu0 %v551
        %673 = vmatpush1.bf16.msra.mxu0 %v550
        %674 = vmatprep.subr.bf16.mxu0 %v555
        %675 = vmatpush1.bf16.msra.mxu0 %v554
        %676 = vmatprep.subr.bf16.mxu0 %v559
        %677 = vmatpush1.bf16.msra.mxu0 %v558
        %678 = vmatprep.subr.bf16.mxu0 %v563
        %679 = vmatpush1.bf16.msra.mxu0 %v562
        %680 = vmatprep.subr.bf16.mxu0 %v567
        %681 = vmatpush1.bf16.msra.mxu0 %v566
        %682 = vmatprep.subr.bf16.mxu0 %v571
        %683 = vmatpush1.bf16.msra.mxu0 %v570
        %684 = vmatprep.subr.bf16.mxu0 %v575
        %685 = vmatpush1.bf16.msra.mxu0 %v574
        %686 = vmatprep.subr.bf16.mxu0 %v579
        %687 = vmatpush1.bf16.msra.mxu0 %v578
        %688 = vmatprep.subr.bf16.mxu0 %v583
        %689 = vmatpush1.bf16.msra.mxu0 %v582
        %690 = vmatprep.subr.bf16.mxu0 %v587
        %691 = vmatpush1.bf16.msra.mxu0 %v586
        %692 = vmatprep.subr.bf16.mxu0 %v591
        %693 = vmatpush1.bf16.msra.mxu0 %v590
        %694 = vmatprep.subr.bf16.mxu0 %v595
        %695 = vmatpush1.bf16.msra.mxu0 %v594
        %696 = vmatprep.subr.bf16.mxu0 %v599
        %697 = vmatpush1.bf16.msra.mxu0 %v598
        %698 = vmatprep.mubr.bf16.mxu0 %v324
        %699 = vmatmul.mubr.bf16.gmra.mrb[0].mxu0 %v323
        %v700 = vpop.f32.mrb[0].mxu0
        %v701 = vadd.f32 %v329, %v700
        %v702 = vpop.f32.mrb[0].mxu0
        %v703 = vadd.f32 %v333, %v702
        %v704 = vpop.f32.mrb[0].mxu0
        %v705 = vpop.f32.mrb[0].mxu0
        %706 = vdwg.mxu0
        %707 = vmatprep.subr.bf16.mxu0 %v541
        %708 = vmatpush1.bf16.msra.mxu0 %v540
        %709 = vmatprep.subr.bf16.mxu0 %v545
        %710 = vmatpush1.bf16.msra.mxu0 %v544
        %711 = vmatprep.subr.bf16.mxu0 %v549
        %712 = vmatpush1.bf16.msra.mxu0 %v548
        %713 = vmatprep.subr.bf16.mxu0 %v553
        %714 = vmatpush1.bf16.msra.mxu0 %v552
        %715 = vmatprep.subr.bf16.mxu0 %v557
        %716 = vmatpush1.bf16.msra.mxu0 %v556
        %717 = vmatprep.subr.bf16.mxu0 %v561
        %718 = vmatpush1.bf16.msra.mxu0 %v560
        %719 = vmatprep.subr.bf16.mxu0 %v565
        %720 = vmatpush1.bf16.msra.mxu0 %v564
        %721 = vmatprep.subr.bf16.mxu0 %v569
        %722 = vmatpush1.bf16.msra.mxu0 %v568
        %723 = vmatprep.subr.bf16.mxu0 %v573
        %724 = vmatpush1.bf16.msra.mxu0 %v572
        %725 = vmatprep.subr.bf16.mxu0 %v577
        %726 = vmatpush1.bf16.msra.mxu0 %v576
        %727 = vmatprep.subr.bf16.mxu0 %v581
        %728 = vmatpush1.bf16.msra.mxu0 %v580
        %729 = vmatprep.subr.bf16.mxu0 %v585
        %730 = vmatpush1.bf16.msra.mxu0 %v584
        %731 = vmatprep.subr.bf16.mxu0 %v589
        %732 = vmatpush1.bf16.msra.mxu0 %v588
        %733 = vmatprep.subr.bf16.mxu0 %v593
        %734 = vmatpush1.bf16.msra.mxu0 %v592
        %735 = vmatprep.subr.bf16.mxu0 %v597
        %736 = vmatpush1.bf16.msra.mxu0 %v596
        %737 = vmatprep.subr.bf16.mxu0 %v601
        %738 = vmatpush1.bf16.msra.mxu0 %v600
        %739 = vmatprep.mubr.bf16.mxu0 %v324
        %740 = vmatmul.mubr.bf16.gmra.mrb[0].mxu0 %v323
        %v741 = vpop.f32.mrb[0].mxu0
        %v742 = vadd.f32 %v337, %v741
        %v743 = vpop.f32.mrb[0].mxu0
        %v744 = vadd.f32 %v341, %v743
        %v745 = vpop.f32.mrb[0].mxu0
        %v746 = vpop.f32.mrb[0].mxu0
        %747 = vdwg.mxu0
        %v748 = vxor.u32 %v701, 2147483648
        %v749 = vmul.f32 %v748, 1.442695
        %v750 = vpow.pop %v749
        %v751 = vadd.f32 %v750, 1.0
        %v752 = vrcp.pop %v751
        %v753 = vmul.f32 1.0, %v752
        %v754 = vxor.u32 %v703, 2147483648
        %v755 = vmul.f32 %v754, 1.442695
        %v756 = vpow.pop %v755
        %v757 = vadd.f32 %v756, 1.0
        %v758 = vrcp.pop %v757
        %v759 = vmul.f32 1.0, %v758
        %v760 = vtanh.pop %v742
        %v761 = vxor.u32 %v744, 2147483648
        %v762 = vmul.f32 %v761, 1.442695
        %v763 = vpow.pop %v762
        %v764 = vadd.f32 %v763, 1.0
        %v765 = vrcp.pop %v764
        %v766 = vmul.f32 1.0, %v765
        %v767 = vmul.f32 %v759, %v257
        %v768 = vmul.f32 %v753, %v760
        %v769 = vadd.f32 %v767, %v768
        %v770 = vtanh.pop %v769
        %v771 = vmul.f32 %v766, %v770
        %772 = vst [vmem:[%s5] sm:$0xff] %v771
        %773 = vst [vmem:[%s6] sm:$0xff] %v769
        %s774 = scalar_lea.vmem %s5, 8
        %v775 = vld [vmem:[%s774] sm:$0xff]
        %s776 = scalar_lea.vmem %s6, 8
        %v777 = vld [vmem:[%s776] sm:$0xff]
        %v778 = vld [vmem:[#allocation2] sm:$0xff]
        %v779 = vld [vmem:[#allocation2 + $0x8] sm:$0xff]
        %v780 = vld [vmem:[#allocation2 + $0x10] sm:$0xff]
        %v781 = vld [vmem:[#allocation2 + $0x18] sm:$0xff]
        %v782 = vld [vmem:[#allocation2 + $0x20] sm:$0xff]
        %v783 = vld [vmem:[#allocation2 + $0x28] sm:$0xff]
        %v784 = vld [vmem:[#allocation2 + $0x30] sm:$0xff]
        %v785 = vld [vmem:[#allocation2 + $0x38] sm:$0xff]
        %v786 = vld [vmem:[#allocation2 + $0x40] sm:$0xff]
        %v787 = vld [vmem:[#allocation2 + $0x48] sm:$0xff]
        %v788 = vld [vmem:[#allocation2 + $0x50] sm:$0xff]
        %v789 = vld [vmem:[#allocation2 + $0x58] sm:$0xff]
        %v790 = vld [vmem:[#allocation2 + $0x60] sm:$0xff]
        %v791 = vld [vmem:[#allocation2 + $0x68] sm:$0xff]
        %v792 = vld [vmem:[#allocation2 + $0x70] sm:$0xff]
        %v793 = vld [vmem:[#allocation2 + $0x78] sm:$0xff]
        %v794 = vld [vmem:[#allocation2 + $0x80] sm:$0xff]
        %v795 = vld [vmem:[#allocation2 + $0x88] sm:$0xff]
        %v796 = vld [vmem:[#allocation2 + $0x90] sm:$0xff]
        %v797 = vld [vmem:[#allocation2 + $0x98] sm:$0xff]
        %v798 = vld [vmem:[#allocation2 + $0xa0] sm:$0xff]
        %v799 = vld [vmem:[#allocation2 + $0xa8] sm:$0xff]
        %v800 = vld [vmem:[#allocation2 + $0xb0] sm:$0xff]
        %v801 = vld [vmem:[#allocation2 + $0xb8] sm:$0xff]
        %v802 = vld [vmem:[#allocation2 + $0xc0] sm:$0xff]
        %v803 = vld [vmem:[#allocation2 + $0xc8] sm:$0xff]
        %v804 = vld [vmem:[#allocation2 + $0xd0] sm:$0xff]
        %v805 = vld [vmem:[#allocation2 + $0xd8] sm:$0xff]
        %v806 = vld [vmem:[#allocation2 + $0xe0] sm:$0xff]
        %v807 = vld [vmem:[#allocation2 + $0xe8] sm:$0xff]
        %v808 = vld [vmem:[#allocation2 + $0xf0] sm:$0xff]
        %v809 = vld [vmem:[#allocation2 + $0xf8] sm:$0xff]
        %v810 = vld [vmem:[#allocation2 + $0x100] sm:$0xff]
        %v811 = vld [vmem:[#allocation2 + $0x108] sm:$0xff]
        %v812 = vld [vmem:[#allocation2 + $0x110] sm:$0xff]
        %v813 = vld [vmem:[#allocation2 + $0x118] sm:$0xff]
        %v814 = vld [vmem:[#allocation2 + $0x120] sm:$0xff]
        %v815 = vld [vmem:[#allocation2 + $0x128] sm:$0xff]
        %v816 = vld [vmem:[#allocation2 + $0x130] sm:$0xff]
        %v817 = vld [vmem:[#allocation2 + $0x138] sm:$0xff]
        %v818 = vld [vmem:[#allocation2 + $0x140] sm:$0xff]
        %v819 = vld [vmem:[#allocation2 + $0x148] sm:$0xff]
        %v820 = vld [vmem:[#allocation2 + $0x150] sm:$0xff]
        %v821 = vld [vmem:[#allocation2 + $0x158] sm:$0xff]
        %v822 = vld [vmem:[#allocation2 + $0x160] sm:$0xff]
        %v823 = vld [vmem:[#allocation2 + $0x168] sm:$0xff]
        %v824 = vld [vmem:[#allocation2 + $0x170] sm:$0xff]
        %v825 = vld [vmem:[#allocation2 + $0x178] sm:$0xff]
        %v826 = vld [vmem:[#allocation2 + $0x180] sm:$0xff]
        %v827 = vld [vmem:[#allocation2 + $0x188] sm:$0xff]
        %v828 = vld [vmem:[#allocation2 + $0x190] sm:$0xff]
        %v829 = vld [vmem:[#allocation2 + $0x198] sm:$0xff]
        %v830 = vld [vmem:[#allocation2 + $0x1a0] sm:$0xff]
        %v831 = vld [vmem:[#allocation2 + $0x1a8] sm:$0xff]
        %v832 = vld [vmem:[#allocation2 + $0x1b0] sm:$0xff]
        %v833 = vld [vmem:[#allocation2 + $0x1b8] sm:$0xff]
        %v834 = vld [vmem:[#allocation2 + $0x1c0] sm:$0xff]
        %v835 = vld [vmem:[#allocation2 + $0x1c8] sm:$0xff]
        %v836 = vld [vmem:[#allocation2 + $0x1d0] sm:$0xff]
        %v837 = vld [vmem:[#allocation2 + $0x1d8] sm:$0xff]
        %v838 = vld [vmem:[#allocation2 + $0x1e0] sm:$0xff]
        %v839 = vld [vmem:[#allocation2 + $0x1e8] sm:$0xff]
        %v840 = vld [vmem:[#allocation2 + $0x1f0] sm:$0xff]
        %v841 = vld [vmem:[#allocation2 + $0x1f8] sm:$0xff]
        %v842 = vld [vmem:[%s4] sm:$0xf]
        %v843 = vpack.c.bf16 %v771, %v771
        %v844 = vpack.c.bf16 %v775, %v775
        %v846 = vlaneseq
        %v847 = vshrl.u32 %v846, 7
        %v848 = vsub.s32 0, %v847
        %v849 = vrot.slane %v842, %v848
        %v850 = vlaneseq
        %v851 = vshrl.u32 %v850, 7
        %v852 = vsub.s32 1, %v851
        %v853 = vrot.slane %v842, %v852
        %v854 = vlaneseq
        %v855 = vshrl.u32 %v854, 7
        %v856 = vsub.s32 2, %v855
        %v857 = vrot.slane %v842, %v856
        %v858 = vlaneseq
        %v859 = vshrl.u32 %v858, 7
        %v860 = vsub.s32 3, %v859
        %v861 = vrot.slane %v842, %v860
        %v930 = vunpack.c.l.b16 %v778
        %v931 = vunpack.c.h.b16 %v778
        %v932 = vunpack.c.l.b16 %v779
        %v933 = vunpack.c.h.b16 %v779
        %v934 = vunpack.c.l.b16 %v780
        %v935 = vunpack.c.h.b16 %v780
        %v936 = vunpack.c.l.b16 %v781
        %v937 = vunpack.c.h.b16 %v781
        %v938 = vunpack.c.l.b16 %v782
        %v939 = vunpack.c.h.b16 %v782
        %v940 = vunpack.c.l.b16 %v783
        %v941 = vunpack.c.h.b16 %v783
        %v942 = vunpack.c.l.b16 %v784
        %v943 = vunpack.c.h.b16 %v784
        %v944 = vunpack.c.l.b16 %v785
        %v945 = vunpack.c.h.b16 %v785
        %v946 = vunpack.c.l.b16 %v786
        %v947 = vunpack.c.h.b16 %v786
        %v948 = vunpack.c.l.b16 %v787
        %v949 = vunpack.c.h.b16 %v787
        %v950 = vunpack.c.l.b16 %v788
        %v951 = vunpack.c.h.b16 %v788
        %v952 = vunpack.c.l.b16 %v789
        %v953 = vunpack.c.h.b16 %v789
        %v954 = vunpack.c.l.b16 %v790
        %v955 = vunpack.c.h.b16 %v790
        %v956 = vunpack.c.l.b16 %v791
        %v957 = vunpack.c.h.b16 %v791
        %v958 = vunpack.c.l.b16 %v792
        %v959 = vunpack.c.h.b16 %v792
        %v960 = vunpack.c.l.b16 %v793
        %v961 = vunpack.c.h.b16 %v793
        %v962 = vunpack.c.l.b16 %v794
        %v963 = vunpack.c.h.b16 %v794
        %v964 = vunpack.c.l.b16 %v795
        %v965 = vunpack.c.h.b16 %v795
        %v966 = vunpack.c.l.b16 %v796
        %v967 = vunpack.c.h.b16 %v796
        %v968 = vunpack.c.l.b16 %v797
        %v969 = vunpack.c.h.b16 %v797
        %v970 = vunpack.c.l.b16 %v798
        %v971 = vunpack.c.h.b16 %v798
        %v972 = vunpack.c.l.b16 %v799
        %v973 = vunpack.c.h.b16 %v799
        %v974 = vunpack.c.l.b16 %v800
        %v975 = vunpack.c.h.b16 %v800
        %v976 = vunpack.c.l.b16 %v801
        %v977 = vunpack.c.h.b16 %v801
        %v978 = vunpack.c.l.b16 %v802
        %v979 = vunpack.c.h.b16 %v802
        %v980 = vunpack.c.l.b16 %v803
        %v981 = vunpack.c.h.b16 %v803
        %v982 = vunpack.c.l.b16 %v804
        %v983 = vunpack.c.h.b16 %v804
        %v984 = vunpack.c.l.b16 %v805
        %v985 = vunpack.c.h.b16 %v805
        %v986 = vunpack.c.l.b16 %v806
        %v987 = vunpack.c.h.b16 %v806
        %v988 = vunpack.c.l.b16 %v807
        %v989 = vunpack.c.h.b16 %v807
        %v990 = vunpack.c.l.b16 %v808
        %v991 = vunpack.c.h.b16 %v808
        %v992 = vunpack.c.l.b16 %v809
        %v993 = vunpack.c.h.b16 %v809
        %v994 = vunpack.c.l.b16 %v810
        %v995 = vunpack.c.h.b16 %v810
        %v996 = vunpack.c.l.b16 %v811
        %v997 = vunpack.c.h.b16 %v811
        %v998 = vunpack.c.l.b16 %v812
        %v999 = vunpack.c.h.b16 %v812
        %v1000 = vunpack.c.l.b16 %v813
        %v1001 = vunpack.c.h.b16 %v813
        %v1002 = vunpack.c.l.b16 %v814
        %v1003 = vunpack.c.h.b16 %v814
        %v1004 = vunpack.c.l.b16 %v815
        %v1005 = vunpack.c.h.b16 %v815
        %v1006 = vunpack.c.l.b16 %v816
        %v1007 = vunpack.c.h.b16 %v816
        %v1008 = vunpack.c.l.b16 %v817
        %v1009 = vunpack.c.h.b16 %v817
        %v1010 = vunpack.c.l.b16 %v818
        %v1011 = vunpack.c.h.b16 %v818
        %v1012 = vunpack.c.l.b16 %v819
        %v1013 = vunpack.c.h.b16 %v819
        %v1014 = vunpack.c.l.b16 %v820
        %v1015 = vunpack.c.h.b16 %v820
        %v1016 = vunpack.c.l.b16 %v821
        %v1017 = vunpack.c.h.b16 %v821
        %v1018 = vunpack.c.l.b16 %v822
        %v1019 = vunpack.c.h.b16 %v822
        %v1020 = vunpack.c.l.b16 %v823
        %v1021 = vunpack.c.h.b16 %v823
        %v1022 = vunpack.c.l.b16 %v824
        %v1023 = vunpack.c.h.b16 %v824
        %v1024 = vunpack.c.l.b16 %v825
        %v1025 = vunpack.c.h.b16 %v825
        %v1026 = vunpack.c.l.b16 %v826
        %v1027 = vunpack.c.h.b16 %v826
        %v1028 = vunpack.c.l.b16 %v827
        %v1029 = vunpack.c.h.b16 %v827
        %v1030 = vunpack.c.l.b16 %v828
        %v1031 = vunpack.c.h.b16 %v828
        %v1032 = vunpack.c.l.b16 %v829
        %v1033 = vunpack.c.h.b16 %v829
        %v1034 = vunpack.c.l.b16 %v830
        %v1035 = vunpack.c.h.b16 %v830
        %v1036 = vunpack.c.l.b16 %v831
        %v1037 = vunpack.c.h.b16 %v831
        %v1038 = vunpack.c.l.b16 %v832
        %v1039 = vunpack.c.h.b16 %v832
        %v1040 = vunpack.c.l.b16 %v833
        %v1041 = vunpack.c.h.b16 %v833
        %v1042 = vunpack.c.l.b16 %v834
        %v1043 = vunpack.c.h.b16 %v834
        %v1044 = vunpack.c.l.b16 %v835
        %v1045 = vunpack.c.h.b16 %v835
        %v1046 = vunpack.c.l.b16 %v836
        %v1047 = vunpack.c.h.b16 %v836
        %v1048 = vunpack.c.l.b16 %v837
        %v1049 = vunpack.c.h.b16 %v837
        %v1050 = vunpack.c.l.b16 %v838
        %v1051 = vunpack.c.h.b16 %v838
        %v1052 = vunpack.c.l.b16 %v839
        %v1053 = vunpack.c.h.b16 %v839
        %v1054 = vunpack.c.l.b16 %v840
        %v1055 = vunpack.c.h.b16 %v840
        %v1056 = vunpack.c.l.b16 %v841
        %v1057 = vunpack.c.h.b16 %v841
        %v1058 = vpack.c.b16 %v934, %v930
        %v1059 = vpack.c.b16 %v935, %v931
        %v1060 = vpack.c.b16 %v936, %v932
        %v1061 = vpack.c.b16 %v937, %v933
        %v1062 = vpack.c.b16 %v942, %v938
        %v1063 = vpack.c.b16 %v943, %v939
        %v1064 = vpack.c.b16 %v944, %v940
        %v1065 = vpack.c.b16 %v945, %v941
        %v1066 = vpack.c.b16 %v950, %v946
        %v1067 = vpack.c.b16 %v951, %v947
        %v1068 = vpack.c.b16 %v952, %v948
        %v1069 = vpack.c.b16 %v953, %v949
        %v1070 = vpack.c.b16 %v958, %v954
        %v1071 = vpack.c.b16 %v959, %v955
        %v1072 = vpack.c.b16 %v960, %v956
        %v1073 = vpack.c.b16 %v961, %v957
        %v1074 = vpack.c.b16 %v966, %v962
        %v1075 = vpack.c.b16 %v967, %v963
        %v1076 = vpack.c.b16 %v968, %v964
        %v1077 = vpack.c.b16 %v969, %v965
        %v1078 = vpack.c.b16 %v974, %v970
        %v1079 = vpack.c.b16 %v975, %v971
        %v1080 = vpack.c.b16 %v976, %v972
        %v1081 = vpack.c.b16 %v977, %v973
        %v1082 = vpack.c.b16 %v982, %v978
        %v1083 = vpack.c.b16 %v983, %v979
        %v1084 = vpack.c.b16 %v984, %v980
        %v1085 = vpack.c.b16 %v985, %v981
        %v1086 = vpack.c.b16 %v990, %v986
        %v1087 = vpack.c.b16 %v991, %v987
        %v1088 = vpack.c.b16 %v992, %v988
        %v1089 = vpack.c.b16 %v993, %v989
        %v1090 = vpack.c.b16 %v998, %v994
        %v1091 = vpack.c.b16 %v999, %v995
        %v1092 = vpack.c.b16 %v1000, %v996
        %v1093 = vpack.c.b16 %v1001, %v997
        %v1094 = vpack.c.b16 %v1006, %v1002
        %v1095 = vpack.c.b16 %v1007, %v1003
        %v1096 = vpack.c.b16 %v1008, %v1004
        %v1097 = vpack.c.b16 %v1009, %v1005
        %v1098 = vpack.c.b16 %v1014, %v1010
        %v1099 = vpack.c.b16 %v1015, %v1011
        %v1100 = vpack.c.b16 %v1016, %v1012
        %v1101 = vpack.c.b16 %v1017, %v1013
        %v1102 = vpack.c.b16 %v1022, %v1018
        %v1103 = vpack.c.b16 %v1023, %v1019
        %v1104 = vpack.c.b16 %v1024, %v1020
        %v1105 = vpack.c.b16 %v1025, %v1021
        %v1106 = vpack.c.b16 %v1030, %v1026
        %v1107 = vpack.c.b16 %v1031, %v1027
        %v1108 = vpack.c.b16 %v1032, %v1028
        %v1109 = vpack.c.b16 %v1033, %v1029
        %v1110 = vpack.c.b16 %v1038, %v1034
        %v1111 = vpack.c.b16 %v1039, %v1035
        %v1112 = vpack.c.b16 %v1040, %v1036
        %v1113 = vpack.c.b16 %v1041, %v1037
        %v1114 = vpack.c.b16 %v1046, %v1042
        %v1115 = vpack.c.b16 %v1047, %v1043
        %v1116 = vpack.c.b16 %v1048, %v1044
        %v1117 = vpack.c.b16 %v1049, %v1045
        %v1118 = vpack.c.b16 %v1054, %v1050
        %v1119 = vpack.c.b16 %v1055, %v1051
        %v1120 = vpack.c.b16 %v1056, %v1052
        %v1121 = vpack.c.b16 %v1057, %v1053
        %1186 = vmatprep.subr.bf16.mxu0 %v1059
        %1187 = vmatpush1.bf16.msra.mxu0 %v1058
        %1188 = vmatprep.subr.bf16.mxu0 %v1063
        %1189 = vmatpush1.bf16.msra.mxu0 %v1062
        %1190 = vmatprep.subr.bf16.mxu0 %v1067
        %1191 = vmatpush1.bf16.msra.mxu0 %v1066
        %1192 = vmatprep.subr.bf16.mxu0 %v1071
        %1193 = vmatpush1.bf16.msra.mxu0 %v1070
        %1194 = vmatprep.subr.bf16.mxu0 %v1075
        %1195 = vmatpush1.bf16.msra.mxu0 %v1074
        %1196 = vmatprep.subr.bf16.mxu0 %v1079
        %1197 = vmatpush1.bf16.msra.mxu0 %v1078
        %1198 = vmatprep.subr.bf16.mxu0 %v1083
        %1199 = vmatpush1.bf16.msra.mxu0 %v1082
        %1200 = vmatprep.subr.bf16.mxu0 %v1087
        %1201 = vmatpush1.bf16.msra.mxu0 %v1086
        %1202 = vmatprep.subr.bf16.mxu0 %v1091
        %1203 = vmatpush1.bf16.msra.mxu0 %v1090
        %1204 = vmatprep.subr.bf16.mxu0 %v1095
        %1205 = vmatpush1.bf16.msra.mxu0 %v1094
        %1206 = vmatprep.subr.bf16.mxu0 %v1099
        %1207 = vmatpush1.bf16.msra.mxu0 %v1098
        %1208 = vmatprep.subr.bf16.mxu0 %v1103
        %1209 = vmatpush1.bf16.msra.mxu0 %v1102
        %1210 = vmatprep.subr.bf16.mxu0 %v1107
        %1211 = vmatpush1.bf16.msra.mxu0 %v1106
        %1212 = vmatprep.subr.bf16.mxu0 %v1111
        %1213 = vmatpush1.bf16.msra.mxu0 %v1110
        %1214 = vmatprep.subr.bf16.mxu0 %v1115
        %1215 = vmatpush1.bf16.msra.mxu0 %v1114
        %1216 = vmatprep.subr.bf16.mxu0 %v1119
        %1217 = vmatpush1.bf16.msra.mxu0 %v1118
        %1218 = vmatprep.mubr.bf16.mxu0 %v844
        %1219 = vmatmul.mubr.bf16.gmra.mrb[0].mxu0 %v843
        %v1220 = vpop.f32.mrb[0].mxu0
        %v1221 = vadd.f32 %v849, %v1220
        %v1222 = vpop.f32.mrb[0].mxu0
        %v1223 = vadd.f32 %v853, %v1222
        %v1224 = vpop.f32.mrb[0].mxu0
        %v1225 = vpop.f32.mrb[0].mxu0
        %1226 = vdwg.mxu0
        %1227 = vmatprep.subr.bf16.mxu0 %v1061
        %1228 = vmatpush1.bf16.msra.mxu0 %v1060
        %1229 = vmatprep.subr.bf16.mxu0 %v1065
        %1230 = vmatpush1.bf16.msra.mxu0 %v1064
        %1231 = vmatprep.subr.bf16.mxu0 %v1069
        %1232 = vmatpush1.bf16.msra.mxu0 %v1068
        %1233 = vmatprep.subr.bf16.mxu0 %v1073
        %1234 = vmatpush1.bf16.msra.mxu0 %v1072
        %1235 = vmatprep.subr.bf16.mxu0 %v1077
        %1236 = vmatpush1.bf16.msra.mxu0 %v1076
        %1237 = vmatprep.subr.bf16.mxu0 %v1081
        %1238 = vmatpush1.bf16.msra.mxu0 %v1080
        %1239 = vmatprep.subr.bf16.mxu0 %v1085
        %1240 = vmatpush1.bf16.msra.mxu0 %v1084
        %1241 = vmatprep.subr.bf16.mxu0 %v1089
        %1242 = vmatpush1.bf16.msra.mxu0 %v1088
        %1243 = vmatprep.subr.bf16.mxu0 %v1093
        %1244 = vmatpush1.bf16.msra.mxu0 %v1092
        %1245 = vmatprep.subr.bf16.mxu0 %v1097
        %1246 = vmatpush1.bf16.msra.mxu0 %v1096
        %1247 = vmatprep.subr.bf16.mxu0 %v1101
        %1248 = vmatpush1.bf16.msra.mxu0 %v1100
        %1249 = vmatprep.subr.bf16.mxu0 %v1105
        %1250 = vmatpush1.bf16.msra.mxu0 %v1104
        %1251 = vmatprep.subr.bf16.mxu0 %v1109
        %1252 = vmatpush1.bf16.msra.mxu0 %v1108
        %1253 = vmatprep.subr.bf16.mxu0 %v1113
        %1254 = vmatpush1.bf16.msra.mxu0 %v1112
        %1255 = vmatprep.subr.bf16.mxu0 %v1117
        %1256 = vmatpush1.bf16.msra.mxu0 %v1116
        %1257 = vmatprep.subr.bf16.mxu0 %v1121
        %1258 = vmatpush1.bf16.msra.mxu0 %v1120
        %1259 = vmatprep.mubr.bf16.mxu0 %v844
        %1260 = vmatmul.mubr.bf16.gmra.mrb[0].mxu0 %v843
        %v1261 = vpop.f32.mrb[0].mxu0
        %v1262 = vadd.f32 %v857, %v1261
        %v1263 = vpop.f32.mrb[0].mxu0
        %v1264 = vadd.f32 %v861, %v1263
        %v1265 = vpop.f32.mrb[0].mxu0
        %v1266 = vpop.f32.mrb[0].mxu0
        %1267 = vdwg.mxu0
        %v1268 = vxor.u32 %v1221, 2147483648
        %v1269 = vmul.f32 %v1268, 1.442695
        %v1270 = vpow.pop %v1269
        %v1271 = vadd.f32 %v1270, 1.0
        %v1272 = vrcp.pop %v1271
        %v1273 = vmul.f32 1.0, %v1272
        %v1274 = vxor.u32 %v1223, 2147483648
        %v1275 = vmul.f32 %v1274, 1.442695
        %v1276 = vpow.pop %v1275
        %v1277 = vadd.f32 %v1276, 1.0
        %v1278 = vrcp.pop %v1277
        %v1279 = vmul.f32 1.0, %v1278
        %v1280 = vtanh.pop %v1262
        %v1281 = vxor.u32 %v1264, 2147483648
        %v1282 = vmul.f32 %v1281, 1.442695
        %v1283 = vpow.pop %v1282
        %v1284 = vadd.f32 %v1283, 1.0
        %v1285 = vrcp.pop %v1284
        %v1286 = vmul.f32 1.0, %v1285
        %v1287 = vmul.f32 %v1279, %v777
        %v1288 = vmul.f32 %v1273, %v1280
        %v1289 = vadd.f32 %v1287, %v1288
        %v1290 = vtanh.pop %v1289
        %v1291 = vmul.f32 %v1286, %v1290
        %1292 = vst [vmem:[%s774] sm:$0xff] %v1291
        %1293 = vst [vmem:[%s776] sm:$0xff] %v1289
        // Predicated region
        $region49: #{seq2seq_forward.2} parent=39 // pred_check
          %p1294 = pneg %p142
        $region50: #{seq2seq_forward.2} parent=39 // pred_check_branch
          %1296 = sbr.rel (%p1294) target = $region52
        $region51: #{seq2seq_forward.2} parent=39 // pred_region
          _
        $region52: #{seq2seq_forward.2} parent=39 // pred_fallthru
          _
        // Predicated region
        $region53: #{seq2seq_forward.2} parent=39 // pred_check
          %p1297 = pneg %p163
        $region54: #{seq2seq_forward.2} parent=39 // pred_check_branch
          %1299 = sbr.rel (%p1297) target = $region56
        $region55: #{seq2seq_forward.2} parent=39 // pred_region
          _
        $region56: #{seq2seq_forward.2} parent=39 // pred_fallthru
          _
        // Predicated region
        $region57: #{seq2seq_forward.2} parent=39 // pred_check
          %p1300 = pneg %p142
        $region58: #{seq2seq_forward.2} parent=39 // pred_check_branch
          %1302 = sbr.rel (%p1300) target = $region60
        $region59: #{seq2seq_forward.2} parent=39 // pred_region
          _
        $region60: #{seq2seq_forward.2} parent=39 // pred_fallthru
          _
        // Predicated region
        $region61: #{seq2seq_forward.2} parent=39 // pred_check
          %p1303 = pneg %p163
        $region62: #{seq2seq_forward.2} parent=39 // pred_check_branch
          %1305 = sbr.rel (%p1303) target = $region64
        $region63: #{seq2seq_forward.2} parent=39 // pred_region
          _
        $region64: #{seq2seq_forward.2} parent=39 // pred_fallthru
          _
      $region40: #{seq2seq_forward.2} parent=5 // pred_fallthru
        _
      %p1306 = scmp.le.s32.totalorder 2, %s14
      // Predicated region
      $region65: #{seq2seq_forward.2} parent=5 // pred_check
        %p1307 = pneg %p1306
      $region66: #{seq2seq_forward.2} parent=5 // pred_check_branch
        %1309 = sbr.rel (%p1307) target = $region68
      $region67: #{seq2seq_forward.2} parent=5 // pred_region
        %s1310 = ssub.s32 %s14, 2
      $region68: #{seq2seq_forward.2} parent=5 // pred_fallthru
        _
    $region6: #{seq2seq_forward.2} parent=1 // loop_footer
      %s18 = sadd.s32 1, %s14
    $region7: #{seq2seq_forward.2} parent=1 // loop_footer_branch
      %13 = sbr.rel target = $region3
    $region8: #{seq2seq_forward.2} parent=1 // loop_exit
      _
    %1311 = vsyncpa [#allocation3], 1
    %s1312 = scalar_lea.sflag [#allocation3], 1
    %1313 = vsyncpa %s1312, 1

// kernel: seq2seq_forward.3
$region0: #{seq2seq_forward.3}
  #allocation0 [shape = 'u32[]', space=smem, size = 0x4, offset = 0x4, fixed_abs, tag = 'smem constant byte address 0x4 - core index']
  #allocation1 [shape = 'u32[144,128]{1,0:T(1,128)}', space=vmem, size = 0x12000, scoped, tag = 'internal scratch']
  #allocation2 [shape = 'f32[2,8,128]{2,1,0:T(8,128)}', space=vmem, size = 0x2000, scoped, tag = 'scratch operand']
  #allocation3 [shape = 'f32[2,8,128]{2,1,0:T(8,128)}', space=vmem, size = 0x2000, scoped, tag = 'scratch operand']
  #allocation4 [shape = 'f32[8,128]{1,0:T(8,128)}', space=vmem, size = 0x1000, scoped, tag = 'scratch operand']
  %s0 = inlined_call_operand.vmem [shape: f32[8,128], index: 0, kind: input, shape index: {}]
  %s1 = inlined_call_operand.vmem [shape: f32[2,8,128], index: 1, kind: input, shape index: {}]
  %s2 = inlined_call_operand.vmem [shape: f32[2,8,128], index: 2, kind: input, shape index: {}]
  %s3 = inlined_call_operand.vmem [shape: bf16[256,128], index: 3, kind: input, shape index: {}]
  %s4 = inlined_call_operand.vmem [shape: bf16[256,512], index: 4, kind: input, shape index: {}]
  %s5 = inlined_call_operand.vmem [shape: f32[1,512], index: 5, kind: input, shape index: {}]
  %s6 = inlined_call_operand.vmem [shape: bf16[256,512], index: 6, kind: input, shape index: {}]
  %s7 = inlined_call_operand.vmem [shape: f32[1,512], index: 7, kind: input, shape index: {}]
  %s8 = inlined_call_operand.vmem [shape: bf16[128,256], index: 8, kind: input, shape index: {}]
  %s9 = inlined_call_operand.vmem [shape: f32[1,256], index: 9, kind: input, shape index: {}]
  %s10 = inlined_call_operand.hbm [shape: f32[5,8,256], index: 10, kind: output, shape index: {}]
  %s11 = sld [smem:[#allocation0]]
  $region77: #{seq2seq_forward.3} parent=0
    _
  %s13 = ssub.s32 1, %s11
  %s14 = scalar_select 0, %s13, %s11
  $region1: #{seq2seq_forward.3} parent=0
    #allocation5 [shape = 'u8[16384]{0}', space=vmem, size = 0x4000, scoped, tag = 'output window, operand 0']
    #allocation6 [shape = 's32[2]{0}', space=sflag, size = 0x8, scoped, tag = 'scoped memory for seq2seq_forward.3']
    %15 = vsyncpa [#allocation6], 0
    %s16 = scalar_lea.sflag [#allocation6], 1
    %17 = vsyncpa %s16, 0
    loop: start=0, step=1, limit=7
    $region2: #{seq2seq_forward.3} parent=1 // loop_pre_header
      _
    $region3: #{seq2seq_forward.3} parent=1 // loop_header
      %s19 = sphi 0, %s23
      %p20 = scmp.ge.s32.totalorder %s19, 7
      %s27 = sphi 0, %s27
      %s29 = sphi 0, %s27
      %s30 = sphi 0, %s29
      %s44 = sphi 0, %s30
      %s48 = sphi 0, %s48
      %s50 = sphi 0, %s48
      %s51 = sphi 0, %s50
      %s65 = sphi 0, %s51
      %s69 = sphi 0, %s69
      %s71 = sphi 0, %s69
      %s72 = sphi 0, %s71
      %s86 = sphi 0, %s72
      %s90 = sphi 0, %s90
      %s92 = sphi 0, %s90
      %s93 = sphi 0, %s92
      %s107 = sphi 0, %s93
      %s111 = sphi 0, %s111
      %s113 = sphi 0, %s111
      %s114 = sphi 0, %s113
      %s128 = sphi 0, %s114
      %s132 = sphi 0, %s132
      %s134 = sphi 0, %s132
      %s135 = sphi 0, %s134
      %s149 = sphi 0, %s135
      %s153 = sphi 0, %s153
      %s155 = sphi 0, %s153
      %s156 = sphi 0, %s155
      %s170 = sphi 0, %s156
      %s174 = sphi 0, %s174
      %s176 = sphi 0, %s174
      %s177 = sphi 0, %s176
      %s191 = sphi 0, %s177
      %s195 = sphi 0, %s195
      %s197 = sphi 0, %s195
      %s198 = sphi 0, %s197
      %s212 = sphi 0, %s198
      %s216 = sphi 0, %s216
      %s218 = sphi 0, %s216
      %s219 = sphi 0, %s218
      %s233 = sphi 0, %s219
      %s239 = sphi 0, %s241
      %s242 = sphi 0, %s239
      %s243 = sphi 0, %s242
      %s259 = sphi 0, %s243
    $region4: #{seq2seq_forward.3} parent=1 // loop_header_branch
      %22 = sbr.rel (%p20) target = $region8
    $region5: #{seq2seq_forward.3} parent=1 // loop_body
      %s24 = ssub.s32 %s19, 1
      %s25 = ssub.s32 %s19, 2
      %s26 = sadd.s32 %s19, 1
      %s28 = sadd.s32 %s27, 1
      %p31 = scmp.eq.s32.totalorder %s19, 4
      %p32 = scmp.ne.s32.totalorder %s27, %s29
      %p33 = scmp.eq.s32.totalorder %s19, 0
      %p34 = por %p32, %p33
      %p35 = scmp.ne.s32.totalorder %s27, %s29
      %p36 = scmp.eq.s32.totalorder %s24, 4
      %p37 = por %p35, %p36
      %p38 = scmp.ne.s32.totalorder %s29, %s30
      %p39 = scmp.eq.s32.totalorder %s24, 0
      %p40 = por %p38, %p39
      %p41 = scmp.ne.s32.totalorder %s29, %s30
      %p42 = scmp.eq.s32.totalorder %s25, 4
      %p43 = por %p41, %p42
      %p45 = scmp.ne.s32.totalorder %s30, %s44
      %p46 = scmp.eq.s32.totalorder %s25, 0
      %p47 = por %p45, %p46
      %s49 = sadd.s32 %s48, 1
      %p52 = scmp.eq.s32.totalorder %s19, 4
      %p53 = scmp.ne.s32.totalorder %s48, %s50
      %p54 = scmp.eq.s32.totalorder %s19, 0
      %p55 = por %p53, %p54
      %p56 = scmp.ne.s32.totalorder %s48, %s50
      %p57 = scmp.eq.s32.totalorder %s24, 4
      %p58 = por %p56, %p57
      %p59 = scmp.ne.s32.totalorder %s50, %s51
      %p60 = scmp.eq.s32.totalorder %s24, 0
      %p61 = por %p59, %p60
      %p62 = scmp.ne.s32.totalorder %s50, %s51
      %p63 = scmp.eq.s32.totalorder %s25, 4
      %p64 = por %p62, %p63
      %p66 = scmp.ne.s32.totalorder %s51, %s65
      %p67 = scmp.eq.s32.totalorder %s25, 0
      %p68 = por %p66, %p67
      %s70 = sadd.s32 %s69, 1
      %p73 = scmp.eq.s32.totalorder %s19, 4
      %p74 = scmp.ne.s32.totalorder %s69, %s71
      %p75 = scmp.eq.s32.totalorder %s19, 0
      %p76 = por %p74, %p75
      %p77 = scmp.ne.s32.totalorder %s69, %s71
      %p78 = scmp.eq.s32.totalorder %s24, 4
      %p79 = por %p77, %p78
      %p80 = scmp.ne.s32.totalorder %s71, %s72
      %p81 = scmp.eq.s32.totalorder %s24, 0
      %p82 = por %p80, %p81
      %p83 = scmp.ne.s32.totalorder %s71, %s72
      %p84 = scmp.eq.s32.totalorder %s25, 4
      %p85 = por %p83, %p84
      %p87 = scmp.ne.s32.totalorder %s72, %s86
      %p88 = scmp.eq.s32.totalorder %s25, 0
      %p89 = por %p87, %p88
      %s91 = sadd.s32 %s90, 1
      %p94 = scmp.eq.s32.totalorder %s19, 4
      %p95 = scmp.ne.s32.totalorder %s90, %s92
      %p96 = scmp.eq.s32.totalorder %s19, 0
      %p97 = por %p95, %p96
      %p98 = scmp.ne.s32.totalorder %s90, %s92
      %p99 = scmp.eq.s32.totalorder %s24, 4
      %p100 = por %p98, %p99
      %p101 = scmp.ne.s32.totalorder %s92, %s93
      %p102 = scmp.eq.s32.totalorder %s24, 0
      %p103 = por %p101, %p102
      %p104 = scmp.ne.s32.totalorder %s92, %s93
      %p105 = scmp.eq.s32.totalorder %s25, 4
      %p106 = por %p104, %p105
      %p108 = scmp.ne.s32.totalorder %s93, %s107
      %p109 = scmp.eq.s32.totalorder %s25, 0
      %p110 = por %p108, %p109
      %s112 = sadd.s32 %s111, 1
      %p115 = scmp.eq.s32.totalorder %s19, 4
      %p116 = scmp.ne.s32.totalorder %s111, %s113
      %p117 = scmp.eq.s32.totalorder %s19, 0
      %p118 = por %p116, %p117
      %p119 = scmp.ne.s32.totalorder %s111, %s113
      %p120 = scmp.eq.s32.totalorder %s24, 4
      %p121 = por %p119, %p120
      %p122 = scmp.ne.s32.totalorder %s113, %s114
      %p123 = scmp.eq.s32.totalorder %s24, 0
      %p124 = por %p122, %p123
      %p125 = scmp.ne.s32.totalorder %s113, %s114
      %p126 = scmp.eq.s32.totalorder %s25, 4
      %p127 = por %p125, %p126
      %p129 = scmp.ne.s32.totalorder %s114, %s128
      %p130 = scmp.eq.s32.totalorder %s25, 0
      %p131 = por %p129, %p130
      %s133 = sadd.s32 %s132, 1
      %p136 = scmp.eq.s32.totalorder %s19, 4
      %p137 = scmp.ne.s32.totalorder %s132, %s134
      %p138 = scmp.eq.s32.totalorder %s19, 0
      %p139 = por %p137, %p138
      %p140 = scmp.ne.s32.totalorder %s132, %s134
      %p141 = scmp.eq.s32.totalorder %s24, 4
      %p142 = por %p140, %p141
      %p143 = scmp.ne.s32.totalorder %s134, %s135
      %p144 = scmp.eq.s32.totalorder %s24, 0
      %p145 = por %p143, %p144
      %p146 = scmp.ne.s32.totalorder %s134, %s135
      %p147 = scmp.eq.s32.totalorder %s25, 4
      %p148 = por %p146, %p147
      %p150 = scmp.ne.s32.totalorder %s135, %s149
      %p151 = scmp.eq.s32.totalorder %s25, 0
      %p152 = por %p150, %p151
      %s154 = sadd.s32 %s153, 1
      %p157 = scmp.eq.s32.totalorder %s19, 4
      %p158 = scmp.ne.s32.totalorder %s153, %s155
      %p159 = scmp.eq.s32.totalorder %s19, 0
      %p160 = por %p158, %p159
      %p161 = scmp.ne.s32.totalorder %s153, %s155
      %p162 = scmp.eq.s32.totalorder %s24, 4
      %p163 = por %p161, %p162
      %p164 = scmp.ne.s32.totalorder %s155, %s156
      %p165 = scmp.eq.s32.totalorder %s24, 0
      %p166 = por %p164, %p165
      %p167 = scmp.ne.s32.totalorder %s155, %s156
      %p168 = scmp.eq.s32.totalorder %s25, 4
      %p169 = por %p167, %p168
      %p171 = scmp.ne.s32.totalorder %s156, %s170
      %p172 = scmp.eq.s32.totalorder %s25, 0
      %p173 = por %p171, %p172
      %s175 = sadd.s32 %s174, 1
      %p178 = scmp.eq.s32.totalorder %s19, 4
      %p179 = scmp.ne.s32.totalorder %s174, %s176
      %p180 = scmp.eq.s32.totalorder %s19, 0
      %p181 = por %p179, %p180
      %p182 = scmp.ne.s32.totalorder %s174, %s176
      %p183 = scmp.eq.s32.totalorder %s24, 4
      %p184 = por %p182, %p183
      %p185 = scmp.ne.s32.totalorder %s176, %s177
      %p186 = scmp.eq.s32.totalorder %s24, 0
      %p187 = por %p185, %p186
      %p188 = scmp.ne.s32.totalorder %s176, %s177
      %p189 = scmp.eq.s32.totalorder %s25, 4
      %p190 = por %p188, %p189
      %p192 = scmp.ne.s32.totalorder %s177, %s191
      %p193 = scmp.eq.s32.totalorder %s25, 0
      %p194 = por %p192, %p193
      %s196 = sadd.s32 %s195, 1
      %p199 = scmp.eq.s32.totalorder %s19, 4
      %p200 = scmp.ne.s32.totalorder %s195, %s197
      %p201 = scmp.eq.s32.totalorder %s19, 0
      %p202 = por %p200, %p201
      %p203 = scmp.ne.s32.totalorder %s195, %s197
      %p204 = scmp.eq.s32.totalorder %s24, 4
      %p205 = por %p203, %p204
      %p206 = scmp.ne.s32.totalorder %s197, %s198
      %p207 = scmp.eq.s32.totalorder %s24, 0
      %p208 = por %p206, %p207
      %p209 = scmp.ne.s32.totalorder %s197, %s198
      %p210 = scmp.eq.s32.totalorder %s25, 4
      %p211 = por %p209, %p210
      %p213 = scmp.ne.s32.totalorder %s198, %s212
      %p214 = scmp.eq.s32.totalorder %s25, 0
      %p215 = por %p213, %p214
      %s217 = sadd.s32 %s216, 1
      %p220 = scmp.eq.s32.totalorder %s19, 4
      %p221 = scmp.ne.s32.totalorder %s216, %s218
      %p222 = scmp.eq.s32.totalorder %s19, 0
      %p223 = por %p221, %p222
      %p224 = scmp.ne.s32.totalorder %s216, %s218
      %p225 = scmp.eq.s32.totalorder %s24, 4
      %p226 = por %p224, %p225
      %p227 = scmp.ne.s32.totalorder %s218, %s219
      %p228 = scmp.eq.s32.totalorder %s24, 0
      %p229 = por %p227, %p228
      %p230 = scmp.ne.s32.totalorder %s218, %s219
      %p231 = scmp.eq.s32.totalorder %s25, 4
      %p232 = por %p230, %p231
      %p234 = scmp.ne.s32.totalorder %s219, %s233
      %p235 = scmp.eq.s32.totalorder %s25, 0
      %p236 = por %p234, %p235
      %s237 = ssub.s32 %s19, %s26
      %p238 = scmp.eq.s32.totalorder %s237, 0
      %s240 = sadd.s32 %s239, 1
      %s241 = scalar_select %p238, %s239, %s240
      %p244 = pneg %p238
      %p245 = scmp.eq.s32.totalorder %s19, 4
      %p246 = por %p244, %p245
      %p247 = scmp.ne.s32.totalorder %s239, %s242
      %p248 = scmp.eq.s32.totalorder %s19, 0
      %p249 = por %p247, %p248
      %p250 = scmp.ne.s32.totalorder %s239, %s242
      %p251 = scmp.eq.s32.totalorder %s24, 4
      %p252 = por %p250, %p251
      %p253 = scmp.ne.s32.totalorder %s242, %s243
      %p254 = scmp.eq.s32.totalorder %s24, 0
      %p255 = por %p253, %p254
      %p256 = scmp.ne.s32.totalorder %s242, %s243
      %p257 = scmp.eq.s32.totalorder %s25, 4
      %p258 = por %p256, %p257
      %p260 = scmp.ne.s32.totalorder %s243, %s259
      %p261 = scmp.eq.s32.totalorder %s25, 0
      %p262 = por %p260, %p261
      %p263 = scmp.le.s32.totalorder 1, %s19
      %p264 = scmp.lt.s32.totalorder %s19, 6
      %p265 = pnand %p263, %p264
      %p266 = pneg %p265
      // Predicated region
      $region9: #{seq2seq_forward.3} parent=5 // pred_check
        _
      $region10: #{seq2seq_forward.3} parent=5 // pred_check_branch
        %268 = sbr.rel (%p265) target = $region12
      $region11: #{seq2seq_forward.3} parent=5 // pred_region
        %s269 = ssub.s32 %s19, 1
        // Predicated region
        $region13: #{seq2seq_forward.3} parent=11 // pred_check
          %p270 = pneg %p40
        $region14: #{seq2seq_forward.3} parent=11 // pred_check_branch
          %272 = sbr.rel (%p270) target = $region16
        $region15: #{seq2seq_forward.3} parent=11 // pred_region
          _
        $region16: #{seq2seq_forward.3} parent=11 // pred_fallthru
          _
        // Predicated region
        $region17: #{seq2seq_forward.3} parent=11 // pred_check
          %p273 = pneg %p61
        $region18: #{seq2seq_forward.3} parent=11 // pred_check_branch
          %275 = sbr.rel (%p273) target = $region20
        $region19: #{seq2seq_forward.3} parent=11 // pred_region
          _
        $region20: #{seq2seq_forward.3} parent=11 // pred_fallthru
          _
        // Predicated region
        $region21: #{seq2seq_forward.3} parent=11 // pred_check
          %p276 = pneg %p82
        $region22: #{seq2seq_forward.3} parent=11 // pred_check_branch
          %278 = sbr.rel (%p276) target = $region24
        $region23: #{seq2seq_forward.3} parent=11 // pred_region
          _
        $region24: #{seq2seq_forward.3} parent=11 // pred_fallthru
          _
        // Predicated region
        $region25: #{seq2seq_forward.3} parent=11 // pred_check
          %p279 = pneg %p103
        $region26: #{seq2seq_forward.3} parent=11 // pred_check_branch
          %281 = sbr.rel (%p279) target = $region28
        $region27: #{seq2seq_forward.3} parent=11 // pred_region
          _
        $region28: #{seq2seq_forward.3} parent=11 // pred_fallthru
          _
        // Predicated region
        $region29: #{seq2seq_forward.3} parent=11 // pred_check
          %p282 = pneg %p124
        $region30: #{seq2seq_forward.3} parent=11 // pred_check_branch
          %284 = sbr.rel (%p282) target = $region32
        $region31: #{seq2seq_forward.3} parent=11 // pred_region
          _
        $region32: #{seq2seq_forward.3} parent=11 // pred_fallthru
          _
        // Predicated region
        $region33: #{seq2seq_forward.3} parent=11 // pred_check
          %p285 = pneg %p145
        $region34: #{seq2seq_forward.3} parent=11 // pred_check_branch
          %287 = sbr.rel (%p285) target = $region36
        $region35: #{seq2seq_forward.3} parent=11 // pred_region
          _
        $region36: #{seq2seq_forward.3} parent=11 // pred_fallthru
          _
        // Predicated region
        $region37: #{seq2seq_forward.3} parent=11 // pred_check
          %p288 = pneg %p166
        $region38: #{seq2seq_forward.3} parent=11 // pred_check_branch
          %290 = sbr.rel (%p288) target = $region40
        $region39: #{seq2seq_forward.3} parent=11 // pred_region
          _
        $region40: #{seq2seq_forward.3} parent=11 // pred_fallthru
          _
        // Predicated region
        $region41: #{seq2seq_forward.3} parent=11 // pred_check
          %p291 = pneg %p187
        $region42: #{seq2seq_forward.3} parent=11 // pred_check_branch
          %293 = sbr.rel (%p291) target = $region44
        $region43: #{seq2seq_forward.3} parent=11 // pred_region
          _
        $region44: #{seq2seq_forward.3} parent=11 // pred_fallthru
          _
        // Predicated region
        $region45: #{seq2seq_forward.3} parent=11 // pred_check
          %p294 = pneg %p208
        $region46: #{seq2seq_forward.3} parent=11 // pred_check_branch
          %296 = sbr.rel (%p294) target = $region48
        $region47: #{seq2seq_forward.3} parent=11 // pred_region
          _
        $region48: #{seq2seq_forward.3} parent=11 // pred_fallthru
          _
        // Predicated region
        $region49: #{seq2seq_forward.3} parent=11 // pred_check
          %p297 = pneg %p229
        $region50: #{seq2seq_forward.3} parent=11 // pred_check_branch
          %299 = sbr.rel (%p297) target = $region52
        $region51: #{seq2seq_forward.3} parent=11 // pred_region
          _
        $region52: #{seq2seq_forward.3} parent=11 // pred_fallthru
          _
      $region12: #{seq2seq_forward.3} parent=5 // pred_fallthru
        _
      %p300 = scmp.lt.s32.totalorder %s19, 5
      // Predicated region
      $region53: #{seq2seq_forward.3} parent=5 // pred_check
        %p301 = pneg %p300
      $region54: #{seq2seq_forward.3} parent=5 // pred_check_branch
        %303 = sbr.rel (%p301) target = $region56
      $region55: #{seq2seq_forward.3} parent=5 // pred_region
        _
      $region56: #{seq2seq_forward.3} parent=5 // pred_fallthru
        _
      %p304 = scmp.le.s32.totalorder 1, %s19
      %p305 = scmp.lt.s32.totalorder %s19, 6
      %p306 = pnand %p304, %p305
      %p307 = pneg %p306
      // Predicated region
      $region57: #{seq2seq_forward.3} parent=5 // pred_check
        _
      $region58: #{seq2seq_forward.3} parent=5 // pred_check_branch
        %309 = sbr.rel (%p306) target = $region60
      $region59: #{seq2seq_forward.3} parent=5 // pred_region
        %s310 = ssub.s32 %s19, 1
        %p311 = pneg %p40
        %p312 = pneg %p37
        %p313 = pneg %p61
        %p314 = pneg %p58
        %p315 = pneg %p82
        %p316 = pneg %p79
        %p317 = pneg %p103
        %p318 = pneg %p100
        %p319 = pneg %p124
        %p320 = pneg %p121
        %p321 = pneg %p145
        %p322 = pneg %p142
        %p323 = pneg %p166
        %p324 = pneg %p163
        %p325 = pneg %p187
        %p326 = pneg %p184
        %p327 = pneg %p208
        %p328 = pneg %p205
        %p329 = pneg %p229
        %p330 = pneg %p226
        %p331 = pneg %p255
        %p332 = pneg %p252
        %s333 = sand.u32 %s242, 1
        %s334 = scalar_lea.sflag [#allocation6], %s333
        %s335 = sand.u32 %s242, 1
        %s336 = smul.addr %s335, 16
        %s337 = scalar_lea.vmem [#allocation5], %s336
        %p339 = scmp.eq.s32.totalorder %s24, 0
        // Predicated region
        $region61: #{seq2seq_forward.3} parent=59 // pred_check
          %p340 = pneg %p339
        $region62: #{seq2seq_forward.3} parent=59 // pred_check_branch
          %342 = sbr.rel (%p340) target = $region64
        $region63: #{seq2seq_forward.3} parent=59 // pred_region
          %v343 = vld [vmem:[%s1] sm:$0xff]
          %v344 = vld [vmem:[%s1 + $0x8] sm:$0xff]
          %345 = vst [vmem:[#allocation2] sm:$0xff] %v343
          %346 = vst [vmem:[#allocation2 + $0x8] sm:$0xff] %v344
          %v347 = vld [vmem:[%s2] sm:$0xff]
          %v348 = vld [vmem:[%s2 + $0x8] sm:$0xff]
          %349 = vst [vmem:[#allocation3] sm:$0xff] %v347
          %350 = vst [vmem:[#allocation3 + $0x8] sm:$0xff] %v348
          %v351 = vld [vmem:[%s0] sm:$0xff]
          %352 = vst [vmem:[#allocation4] sm:$0xff] %v351
        $region64: #{seq2seq_forward.3} parent=59 // pred_fallthru
          _
        %v353 = vld [vmem:[#allocation4] sm:$0xff]
        %v354 = vld [vmem:[#allocation2] sm:$0xff]
        %v355 = vld [vmem:[#allocation3] sm:$0xff]
        %v356 = vld [vmem:[%s4] sm:$0xff]
        %v357 = vld [vmem:[%s4 + $0x8] sm:$0xff]
        %v358 = vld [vmem:[%s4 + $0x10] sm:$0xff]
        %v359 = vld [vmem:[%s4 + $0x18] sm:$0xff]
        %v360 = vld [vmem:[%s4 + $0x20] sm:$0xff]
        %v361 = vld [vmem:[%s4 + $0x28] sm:$0xff]
        %v362 = vld [vmem:[%s4 + $0x30] sm:$0xff]
        %v363 = vld [vmem:[%s4 + $0x38] sm:$0xff]
        %v364 = vld [vmem:[%s4 + $0x40] sm:$0xff]
        %v365 = vld [vmem:[%s4 + $0x48] sm:$0xff]
        %v366 = vld [vmem:[%s4 + $0x50] sm:$0xff]
        %v367 = vld [vmem:[%s4 + $0x58] sm:$0xff]
        %v368 = vld [vmem:[%s4 + $0x60] sm:$0xff]
        %v369 = vld [vmem:[%s4 + $0x68] sm:$0xff]
        %v370 = vld [vmem:[%s4 + $0x70] sm:$0xff]
        %v371 = vld [vmem:[%s4 + $0x78] sm:$0xff]
        %v372 = vld [vmem:[%s4 + $0x80] sm:$0xff]
        %v373 = vld [vmem:[%s4 + $0x88] sm:$0xff]
        %v374 = vld [vmem:[%s4 + $0x90] sm:$0xff]
        %v375 = vld [vmem:[%s4 + $0x98] sm:$0xff]
        %v376 = vld [vmem:[%s4 + $0xa0] sm:$0xff]
        %v377 = vld [vmem:[%s4 + $0xa8] sm:$0xff]
        %v378 = vld [vmem:[%s4 + $0xb0] sm:$0xff]
        %v379 = vld [vmem:[%s4 + $0xb8] sm:$0xff]
        %v380 = vld [vmem:[%s4 + $0xc0] sm:$0xff]
        %v381 = vld [vmem:[%s4 + $0xc8] sm:$0xff]
        %v382 = vld [vmem:[%s4 + $0xd0] sm:$0xff]
        %v383 = vld [vmem:[%s4 + $0xd8] sm:$0xff]
        %v384 = vld [vmem:[%s4 + $0xe0] sm:$0xff]
        %v385 = vld [vmem:[%s4 + $0xe8] sm:$0xff]
        %v386 = vld [vmem:[%s4 + $0xf0] sm:$0xff]
        %v387 = vld [vmem:[%s4 + $0xf8] sm:$0xff]
        %v388 = vld [vmem:[%s4 + $0x100] sm:$0xff]
        %v389 = vld [vmem:[%s4 + $0x108] sm:$0xff]
        %v390 = vld [vmem:[%s4 + $0x110] sm:$0xff]
        %v391 = vld [vmem:[%s4 + $0x118] sm:$0xff]
        %v392 = vld [vmem:[%s4 + $0x120] sm:$0xff]
        %v393 = vld [vmem:[%s4 + $0x128] sm:$0xff]
        %v394 = vld [vmem:[%s4 + $0x130] sm:$0xff]
        %v395 = vld [vmem:[%s4 + $0x138] sm:$0xff]
        %v396 = vld [vmem:[%s4 + $0x140] sm:$0xff]
        %v397 = vld [vmem:[%s4 + $0x148] sm:$0xff]
        %v398 = vld [vmem:[%s4 + $0x150] sm:$0xff]
        %v399 = vld [vmem:[%s4 + $0x158] sm:$0xff]
        %v400 = vld [vmem:[%s4 + $0x160] sm:$0xff]
        %v401 = vld [vmem:[%s4 + $0x168] sm:$0xff]
        %v402 = vld [vmem:[%s4 + $0x170] sm:$0xff]
        %v403 = vld [vmem:[%s4 + $0x178] sm:$0xff]
        %v404 = vld [vmem:[%s4 + $0x180] sm:$0xff]
        %v405 = vld [vmem:[%s4 + $0x188] sm:$0xff]
        %v406 = vld [vmem:[%s4 + $0x190] sm:$0xff]
        %v407 = vld [vmem:[%s4 + $0x198] sm:$0xff]
        %v408 = vld [vmem:[%s4 + $0x1a0] sm:$0xff]
        %v409 = vld [vmem:[%s4 + $0x1a8] sm:$0xff]
        %v410 = vld [vmem:[%s4 + $0x1b0] sm:$0xff]
        %v411 = vld [vmem:[%s4 + $0x1b8] sm:$0xff]
        %v412 = vld [vmem:[%s4 + $0x1c0] sm:$0xff]
        %v413 = vld [vmem:[%s4 + $0x1c8] sm:$0xff]
        %v414 = vld [vmem:[%s4 + $0x1d0] sm:$0xff]
        %v415 = vld [vmem:[%s4 + $0x1d8] sm:$0xff]
        %v416 = vld [vmem:[%s4 + $0x1e0] sm:$0xff]
        %v417 = vld [vmem:[%s4 + $0x1e8] sm:$0xff]
        %v418 = vld [vmem:[%s4 + $0x1f0] sm:$0xff]
        %v419 = vld [vmem:[%s4 + $0x1f8] sm:$0xff]
        %v420 = vld [vmem:[%s5] sm:$0xf]
        %v421 = vpack.c.bf16 %v353, %v353
        %v422 = vpack.c.bf16 %v354, %v354
        %v424 = vlaneseq
        %v425 = vshrl.u32 %v424, 7
        %v426 = vsub.s32 0, %v425
        %v427 = vrot.slane %v420, %v426
        %v428 = vlaneseq
        %v429 = vshrl.u32 %v428, 7
        %v430 = vsub.s32 1, %v429
        %v431 = vrot.slane %v420, %v430
        %v432 = vlaneseq
        %v433 = vshrl.u32 %v432, 7
        %v434 = vsub.s32 2, %v433
        %v435 = vrot.slane %v420, %v434
        %v436 = vlaneseq
        %v437 = vshrl.u32 %v436, 7
        %v438 = vsub.s32 3, %v437
        %v439 = vrot.slane %v420, %v438
        %v508 = vunpack.c.l.b16 %v356
        %v509 = vunpack.c.h.b16 %v356
        %v510 = vunpack.c.l.b16 %v357
        %v511 = vunpack.c.h.b16 %v357
        %v512 = vunpack.c.l.b16 %v358
        %v513 = vunpack.c.h.b16 %v358
        %v514 = vunpack.c.l.b16 %v359
        %v515 = vunpack.c.h.b16 %v359
        %v516 = vunpack.c.l.b16 %v360
        %v517 = vunpack.c.h.b16 %v360
        %v518 = vunpack.c.l.b16 %v361
        %v519 = vunpack.c.h.b16 %v361
        %v520 = vunpack.c.l.b16 %v362
        %v521 = vunpack.c.h.b16 %v362
        %v522 = vunpack.c.l.b16 %v363
        %v523 = vunpack.c.h.b16 %v363
        %v524 = vunpack.c.l.b16 %v364
        %v525 = vunpack.c.h.b16 %v364
        %v526 = vunpack.c.l.b16 %v365
        %v527 = vunpack.c.h.b16 %v365
        %v528 = vunpack.c.l.b16 %v366
        %v529 = vunpack.c.h.b16 %v366
        %v530 = vunpack.c.l.b16 %v367
        %v531 = vunpack.c.h.b16 %v367
        %v532 = vunpack.c.l.b16 %v368
        %v533 = vunpack.c.h.b16 %v368
        %v534 = vunpack.c.l.b16 %v369
        %v535 = vunpack.c.h.b16 %v369
        %v536 = vunpack.c.l.b16 %v370
        %v537 = vunpack.c.h.b16 %v370
        %v538 = vunpack.c.l.b16 %v371
        %v539 = vunpack.c.h.b16 %v371
        %v540 = vunpack.c.l.b16 %v372
        %v541 = vunpack.c.h.b16 %v372
        %v542 = vunpack.c.l.b16 %v373
        %v543 = vunpack.c.h.b16 %v373
        %v544 = vunpack.c.l.b16 %v374
        %v545 = vunpack.c.h.b16 %v374
        %v546 = vunpack.c.l.b16 %v375
        %v547 = vunpack.c.h.b16 %v375
        %v548 = vunpack.c.l.b16 %v376
        %v549 = vunpack.c.h.b16 %v376
        %v550 = vunpack.c.l.b16 %v377
        %v551 = vunpack.c.h.b16 %v377
        %v552 = vunpack.c.l.b16 %v378
        %v553 = vunpack.c.h.b16 %v378
        %v554 = vunpack.c.l.b16 %v379
        %v555 = vunpack.c.h.b16 %v379
        %v556 = vunpack.c.l.b16 %v380
        %v557 = vunpack.c.h.b16 %v380
        %v558 = vunpack.c.l.b16 %v381
        %v559 = vunpack.c.h.b16 %v381
        %v560 = vunpack.c.l.b16 %v382
        %v561 = vunpack.c.h.b16 %v382
        %v562 = vunpack.c.l.b16 %v383
        %v563 = vunpack.c.h.b16 %v383
        %v564 = vunpack.c.l.b16 %v384
        %v565 = vunpack.c.h.b16 %v384
        %v566 = vunpack.c.l.b16 %v385
        %v567 = vunpack.c.h.b16 %v385
        %v568 = vunpack.c.l.b16 %v386
        %v569 = vunpack.c.h.b16 %v386
        %v570 = vunpack.c.l.b16 %v387
        %v571 = vunpack.c.h.b16 %v387
        %v572 = vunpack.c.l.b16 %v388
        %v573 = vunpack.c.h.b16 %v388
        %v574 = vunpack.c.l.b16 %v389
        %v575 = vunpack.c.h.b16 %v389
        %v576 = vunpack.c.l.b16 %v390
        %v577 = vunpack.c.h.b16 %v390
        %v578 = vunpack.c.l.b16 %v391
        %v579 = vunpack.c.h.b16 %v391
        %v580 = vunpack.c.l.b16 %v392
        %v581 = vunpack.c.h.b16 %v392
        %v582 = vunpack.c.l.b16 %v393
        %v583 = vunpack.c.h.b16 %v393
        %v584 = vunpack.c.l.b16 %v394
        %v585 = vunpack.c.h.b16 %v394
        %v586 = vunpack.c.l.b16 %v395
        %v587 = vunpack.c.h.b16 %v395
        %v588 = vunpack.c.l.b16 %v396
        %v589 = vunpack.c.h.b16 %v396
        %v590 = vunpack.c.l.b16 %v397
        %v591 = vunpack.c.h.b16 %v397
        %v592 = vunpack.c.l.b16 %v398
        %v593 = vunpack.c.h.b16 %v398
        %v594 = vunpack.c.l.b16 %v399
        %v595 = vunpack.c.h.b16 %v399
        %v596 = vunpack.c.l.b16 %v400
        %v597 = vunpack.c.h.b16 %v400
        %v598 = vunpack.c.l.b16 %v401
        %v599 = vunpack.c.h.b16 %v401
        %v600 = vunpack.c.l.b16 %v402
        %v601 = vunpack.c.h.b16 %v402
        %v602 = vunpack.c.l.b16 %v403
        %v603 = vunpack.c.h.b16 %v403
        %v604 = vunpack.c.l.b16 %v404
        %v605 = vunpack.c.h.b16 %v404
        %v606 = vunpack.c.l.b16 %v405
        %v607 = vunpack.c.h.b16 %v405
        %v608 = vunpack.c.l.b16 %v406
        %v609 = vunpack.c.h.b16 %v406
        %v610 = vunpack.c.l.b16 %v407
        %v611 = vunpack.c.h.b16 %v407
        %v612 = vunpack.c.l.b16 %v408
        %v613 = vunpack.c.h.b16 %v408
        %v614 = vunpack.c.l.b16 %v409
        %v615 = vunpack.c.h.b16 %v409
        %v616 = vunpack.c.l.b16 %v410
        %v617 = vunpack.c.h.b16 %v410
        %v618 = vunpack.c.l.b16 %v411
        %v619 = vunpack.c.h.b16 %v411
        %v620 = vunpack.c.l.b16 %v412
        %v621 = vunpack.c.h.b16 %v412
        %v622 = vunpack.c.l.b16 %v413
        %v623 = vunpack.c.h.b16 %v413
        %v624 = vunpack.c.l.b16 %v414
        %v625 = vunpack.c.h.b16 %v414
        %v626 = vunpack.c.l.b16 %v415
        %v627 = vunpack.c.h.b16 %v415
        %v628 = vunpack.c.l.b16 %v416
        %v629 = vunpack.c.h.b16 %v416
        %v630 = vunpack.c.l.b16 %v417
        %v631 = vunpack.c.h.b16 %v417
        %v632 = vunpack.c.l.b16 %v418
        %v633 = vunpack.c.h.b16 %v418
        %v634 = vunpack.c.l.b16 %v419
        %v635 = vunpack.c.h.b16 %v419
        %v636 = vpack.c.b16 %v512, %v508
        %v637 = vpack.c.b16 %v513, %v509
        %v638 = vpack.c.b16 %v514, %v510
        %v639 = vpack.c.b16 %v515, %v511
        %v640 = vpack.c.b16 %v520, %v516
        %v641 = vpack.c.b16 %v521, %v517
        %v642 = vpack.c.b16 %v522, %v518
        %v643 = vpack.c.b16 %v523, %v519
        %v644 = vpack.c.b16 %v528, %v524
        %v645 = vpack.c.b16 %v529, %v525
        %v646 = vpack.c.b16 %v530, %v526
        %v647 = vpack.c.b16 %v531, %v527
        %v648 = vpack.c.b16 %v536, %v532
        %v649 = vpack.c.b16 %v537, %v533
        %v650 = vpack.c.b16 %v538, %v534
        %v651 = vpack.c.b16 %v539, %v535
        %v652 = vpack.c.b16 %v544, %v540
        %v653 = vpack.c.b16 %v545, %v541
        %v654 = vpack.c.b16 %v546, %v542
        %v655 = vpack.c.b16 %v547, %v543
        %v656 = vpack.c.b16 %v552, %v548
        %v657 = vpack.c.b16 %v553, %v549
        %v658 = vpack.c.b16 %v554, %v550
        %v659 = vpack.c.b16 %v555, %v551
        %v660 = vpack.c.b16 %v560, %v556
        %v661 = vpack.c.b16 %v561, %v557
        %v662 = vpack.c.b16 %v562, %v558
        %v663 = vpack.c.b16 %v563, %v559
        %v664 = vpack.c.b16 %v568, %v564
        %v665 = vpack.c.b16 %v569, %v565
        %v666 = vpack.c.b16 %v570, %v566
        %v667 = vpack.c.b16 %v571, %v567
        %v668 = vpack.c.b16 %v576, %v572
        %v669 = vpack.c.b16 %v577, %v573
        %v670 = vpack.c.b16 %v578, %v574
        %v671 = vpack.c.b16 %v579, %v575
        %v672 = vpack.c.b16 %v584, %v580
        %v673 = vpack.c.b16 %v585, %v581
        %v674 = vpack.c.b16 %v586, %v582
        %v675 = vpack.c.b16 %v587, %v583
        %v676 = vpack.c.b16 %v592, %v588
        %v677 = vpack.c.b16 %v593, %v589
        %v678 = vpack.c.b16 %v594, %v590
        %v679 = vpack.c.b16 %v595, %v591
        %v680 = vpack.c.b16 %v600, %v596
        %v681 = vpack.c.b16 %v601, %v597
        %v682 = vpack.c.b16 %v602, %v598
        %v683 = vpack.c.b16 %v603, %v599
        %v684 = vpack.c.b16 %v608, %v604
        %v685 = vpack.c.b16 %v609, %v605
        %v686 = vpack.c.b16 %v610, %v606
        %v687 = vpack.c.b16 %v611, %v607
        %v688 = vpack.c.b16 %v616, %v612
        %v689 = vpack.c.b16 %v617, %v613
        %v690 = vpack.c.b16 %v618, %v614
        %v691 = vpack.c.b16 %v619, %v615
        %v692 = vpack.c.b16 %v624, %v620
        %v693 = vpack.c.b16 %v625, %v621
        %v694 = vpack.c.b16 %v626, %v622
        %v695 = vpack.c.b16 %v627, %v623
        %v696 = vpack.c.b16 %v632, %v628
        %v697 = vpack.c.b16 %v633, %v629
        %v698 = vpack.c.b16 %v634, %v630
        %v699 = vpack.c.b16 %v635, %v631
        %764 = vmatprep.subr.bf16.mxu0 %v637
        %765 = vmatpush1.bf16.msra.mxu0 %v636
        %766 = vmatprep.subr.bf16.mxu0 %v641
        %767 = vmatpush1.bf16.msra.mxu0 %v640
        %768 = vmatprep.subr.bf16.mxu0 %v645
        %769 = vmatpush1.bf16.msra.mxu0 %v644
        %770 = vmatprep.subr.bf16.mxu0 %v649
        %771 = vmatpush1.bf16.msra.mxu0 %v648
        %772 = vmatprep.subr.bf16.mxu0 %v653
        %773 = vmatpush1.bf16.msra.mxu0 %v652
        %774 = vmatprep.subr.bf16.mxu0 %v657
        %775 = vmatpush1.bf16.msra.mxu0 %v656
        %776 = vmatprep.subr.bf16.mxu0 %v661
        %777 = vmatpush1.bf16.msra.mxu0 %v660
        %778 = vmatprep.subr.bf16.mxu0 %v665
        %779 = vmatpush1.bf16.msra.mxu0 %v664
        %780 = vmatprep.subr.bf16.mxu0 %v669
        %781 = vmatpush1.bf16.msra.mxu0 %v668
        %782 = vmatprep.subr.bf16.mxu0 %v673
        %783 = vmatpush1.bf16.msra.mxu0 %v672
        %784 = vmatprep.subr.bf16.mxu0 %v677
        %785 = vmatpush1.bf16.msra.mxu0 %v676
        %786 = vmatprep.subr.bf16.mxu0 %v681
        %787 = vmatpush1.bf16.msra.mxu0 %v680
        %788 = vmatprep.subr.bf16.mxu0 %v685
        %789 = vmatpush1.bf16.msra.mxu0 %v684
        %790 = vmatprep.subr.bf16.mxu0 %v689
        %791 = vmatpush1.bf16.msra.mxu0 %v688
        %792 = vmatprep.subr.bf16.mxu0 %v693
        %793 = vmatpush1.bf16.msra.mxu0 %v692
        %794 = vmatprep.subr.bf16.mxu0 %v697
        %795 = vmatpush1.bf16.msra.mxu0 %v696
        %796 = vmatprep.mubr.bf16.mxu0 %v422
        %797 = vmatmul.mubr.bf16.gmra.mrb[0].mxu0 %v421
        %v798 = vpop.f32.mrb[0].mxu0
        %v799 = vadd.f32 %v427, %v798
        %v800 = vpop.f32.mrb[0].mxu0
        %v801 = vadd.f32 %v431, %v800
        %v802 = vpop.f32.mrb[0].mxu0
        %v803 = vpop.f32.mrb[0].mxu0
        %804 = vdwg.mxu0
        %805 = vmatprep.subr.bf16.mxu0 %v639
        %806 = vmatpush1.bf16.msra.mxu0 %v638
        %807 = vmatprep.subr.bf16.mxu0 %v643
        %808 = vmatpush1.bf16.msra.mxu0 %v642
        %809 = vmatprep.subr.bf16.mxu0 %v647
        %810 = vmatpush1.bf16.msra.mxu0 %v646
        %811 = vmatprep.subr.bf16.mxu0 %v651
        %812 = vmatpush1.bf16.msra.mxu0 %v650
        %813 = vmatprep.subr.bf16.mxu0 %v655
        %814 = vmatpush1.bf16.msra.mxu0 %v654
        %815 = vmatprep.subr.bf16.mxu0 %v659
        %816 = vmatpush1.bf16.msra.mxu0 %v658
        %817 = vmatprep.subr.bf16.mxu0 %v663
        %818 = vmatpush1.bf16.msra.mxu0 %v662
        %819 = vmatprep.subr.bf16.mxu0 %v667
        %820 = vmatpush1.bf16.msra.mxu0 %v666
        %821 = vmatprep.subr.bf16.mxu0 %v671
        %822 = vmatpush1.bf16.msra.mxu0 %v670
        %823 = vmatprep.subr.bf16.mxu0 %v675
        %824 = vmatpush1.bf16.msra.mxu0 %v674
        %825 = vmatprep.subr.bf16.mxu0 %v679
        %826 = vmatpush1.bf16.msra.mxu0 %v678
        %827 = vmatprep.subr.bf16.mxu0 %v683
        %828 = vmatpush1.bf16.msra.mxu0 %v682
        %829 = vmatprep.subr.bf16.mxu0 %v687
        %830 = vmatpush1.bf16.msra.mxu0 %v686
        %831 = vmatprep.subr.bf16.mxu0 %v691
        %832 = vmatpush1.bf16.msra.mxu0 %v690
        %833 = vmatprep.subr.bf16.mxu0 %v695
        %834 = vmatpush1.bf16.msra.mxu0 %v694
        %835 = vmatprep.subr.bf16.mxu0 %v699
        %836 = vmatpush1.bf16.msra.mxu0 %v698
        %837 = vmatprep.mubr.bf16.mxu0 %v422
        %838 = vmatmul.mubr.bf16.gmra.mrb[0].mxu0 %v421
        %v839 = vpop.f32.mrb[0].mxu0
        %v840 = vadd.f32 %v435, %v839
        %v841 = vpop.f32.mrb[0].mxu0
        %v842 = vadd.f32 %v439, %v841
        %v843 = vpop.f32.mrb[0].mxu0
        %v844 = vpop.f32.mrb[0].mxu0
        %845 = vdwg.mxu0
        %v846 = vxor.u32 %v799, 2147483648
        %v847 = vmul.f32 %v846, 1.442695
        %v848 = vpow.pop %v847
        %v849 = vadd.f32 %v848, 1.0
        %v850 = vrcp.pop %v849
        %v851 = vmul.f32 1.0, %v850
        %v852 = vxor.u32 %v801, 2147483648
        %v853 = vmul.f32 %v852, 1.442695
        %v854 = vpow.pop %v853
        %v855 = vadd.f32 %v854, 1.0
        %v856 = vrcp.pop %v855
        %v857 = vmul.f32 1.0, %v856
        %v858 = vtanh.pop %v840
        %v859 = vxor.u32 %v842, 2147483648
        %v860 = vmul.f32 %v859, 1.442695
        %v861 = vpow.pop %v860
        %v862 = vadd.f32 %v861, 1.0
        %v863 = vrcp.pop %v862
        %v864 = vmul.f32 1.0, %v863
        %v865 = vmul.f32 %v857, %v355
        %v866 = vmul.f32 %v851, %v858
        %v867 = vadd.f32 %v865, %v866
        %v868 = vtanh.pop %v867
        %v869 = vmul.f32 %v864, %v868
        %870 = vst [vmem:[#allocation2] sm:$0xff] %v869
        %871 = vst [vmem:[#allocation3] sm:$0xff] %v867
        %s872 = scalar_lea.vmem [#allocation2], 8
        %v873 = vld [vmem:[%s872] sm:$0xff]
        %s874 = scalar_lea.vmem [#allocation3], 8
        %v875 = vld [vmem:[%s874] sm:$0xff]
        %v876 = vld [vmem:[%s6] sm:$0xff]
        %v877 = vld [vmem:[%s6 + $0x8] sm:$0xff]
        %v878 = vld [vmem:[%s6 + $0x10] sm:$0xff]
        %v879 = vld [vmem:[%s6 + $0x18] sm:$0xff]
        %v880 = vld [vmem:[%s6 + $0x20] sm:$0xff]
        %v881 = vld [vmem:[%s6 + $0x28] sm:$0xff]
        %v882 = vld [vmem:[%s6 + $0x30] sm:$0xff]
        %v883 = vld [vmem:[%s6 + $0x38] sm:$0xff]
        %v884 = vld [vmem:[%s6 + $0x40] sm:$0xff]
        %v885 = vld [vmem:[%s6 + $0x48] sm:$0xff]
        %v886 = vld [vmem:[%s6 + $0x50] sm:$0xff]
        %v887 = vld [vmem:[%s6 + $0x58] sm:$0xff]
        %v888 = vld [vmem:[%s6 + $0x60] sm:$0xff]
        %v889 = vld [vmem:[%s6 + $0x68] sm:$0xff]
        %v890 = vld [vmem:[%s6 + $0x70] sm:$0xff]
        %v891 = vld [vmem:[%s6 + $0x78] sm:$0xff]
        %v892 = vld [vmem:[%s6 + $0x80] sm:$0xff]
        %v893 = vld [vmem:[%s6 + $0x88] sm:$0xff]
        %v894 = vld [vmem:[%s6 + $0x90] sm:$0xff]
        %v895 = vld [vmem:[%s6 + $0x98] sm:$0xff]
        %v896 = vld [vmem:[%s6 + $0xa0] sm:$0xff]
        %v897 = vld [vmem:[%s6 + $0xa8] sm:$0xff]
        %v898 = vld [vmem:[%s6 + $0xb0] sm:$0xff]
        %v899 = vld [vmem:[%s6 + $0xb8] sm:$0xff]
        %v900 = vld [vmem:[%s6 + $0xc0] sm:$0xff]
        %v901 = vld [vmem:[%s6 + $0xc8] sm:$0xff]
        %v902 = vld [vmem:[%s6 + $0xd0] sm:$0xff]
        %v903 = vld [vmem:[%s6 + $0xd8] sm:$0xff]
        %v904 = vld [vmem:[%s6 + $0xe0] sm:$0xff]
        %v905 = vld [vmem:[%s6 + $0xe8] sm:$0xff]
        %v906 = vld [vmem:[%s6 + $0xf0] sm:$0xff]
        %v907 = vld [vmem:[%s6 + $0xf8] sm:$0xff]
        %v908 = vld [vmem:[%s6 + $0x100] sm:$0xff]
        %v909 = vld [vmem:[%s6 + $0x108] sm:$0xff]
        %v910 = vld [vmem:[%s6 + $0x110] sm:$0xff]
        %v911 = vld [vmem:[%s6 + $0x118] sm:$0xff]
        %v912 = vld [vmem:[%s6 + $0x120] sm:$0xff]
        %v913 = vld [vmem:[%s6 + $0x128] sm:$0xff]
        %v914 = vld [vmem:[%s6 + $0x130] sm:$0xff]
        %v915 = vld [vmem:[%s6 + $0x138] sm:$0xff]
        %v916 = vld [vmem:[%s6 + $0x140] sm:$0xff]
        %v917 = vld [vmem:[%s6 + $0x148] sm:$0xff]
        %v918 = vld [vmem:[%s6 + $0x150] sm:$0xff]
        %v919 = vld [vmem:[%s6 + $0x158] sm:$0xff]
        %v920 = vld [vmem:[%s6 + $0x160] sm:$0xff]
        %v921 = vld [vmem:[%s6 + $0x168] sm:$0xff]
        %v922 = vld [vmem:[%s6 + $0x170] sm:$0xff]
        %v923 = vld [vmem:[%s6 + $0x178] sm:$0xff]
        %v924 = vld [vmem:[%s6 + $0x180] sm:$0xff]
        %v925 = vld [vmem:[%s6 + $0x188] sm:$0xff]
        %v926 = vld [vmem:[%s6 + $0x190] sm:$0xff]
        %v927 = vld [vmem:[%s6 + $0x198] sm:$0xff]
        %v928 = vld [vmem:[%s6 + $0x1a0] sm:$0xff]
        %v929 = vld [vmem:[%s6 + $0x1a8] sm:$0xff]
        %v930 = vld [vmem:[%s6 + $0x1b0] sm:$0xff]
        %v931 = vld [vmem:[%s6 + $0x1b8] sm:$0xff]
        %v932 = vld [vmem:[%s6 + $0x1c0] sm:$0xff]
        %v933 = vld [vmem:[%s6 + $0x1c8] sm:$0xff]
        %v934 = vld [vmem:[%s6 + $0x1d0] sm:$0xff]
        %v935 = vld [vmem:[%s6 + $0x1d8] sm:$0xff]
        %v936 = vld [vmem:[%s6 + $0x1e0] sm:$0xff]
        %v937 = vld [vmem:[%s6 + $0x1e8] sm:$0xff]
        %v938 = vld [vmem:[%s6 + $0x1f0] sm:$0xff]
        %v939 = vld [vmem:[%s6 + $0x1f8] sm:$0xff]
        %v940 = vld [vmem:[%s7] sm:$0xf]
        %v941 = vpack.c.bf16 %v869, %v869
        %v942 = vpack.c.bf16 %v873, %v873
        %v944 = vlaneseq
        %v945 = vshrl.u32 %v944, 7
        %v946 = vsub.s32 0, %v945
        %v947 = vrot.slane %v940, %v946
        %v948 = vlaneseq
        %v949 = vshrl.u32 %v948, 7
        %v950 = vsub.s32 1, %v949
        %v951 = vrot.slane %v940, %v950
        %v952 = vlaneseq
        %v953 = vshrl.u32 %v952, 7
        %v954 = vsub.s32 2, %v953
        %v955 = vrot.slane %v940, %v954
        %v956 = vlaneseq
        %v957 = vshrl.u32 %v956, 7
        %v958 = vsub.s32 3, %v957
        %v959 = vrot.slane %v940, %v958
        %v1028 = vunpack.c.l.b16 %v876
        %v1029 = vunpack.c.h.b16 %v876
        %v1030 = vunpack.c.l.b16 %v877
        %v1031 = vunpack.c.h.b16 %v877
        %v1032 = vunpack.c.l.b16 %v878
        %v1033 = vunpack.c.h.b16 %v878
        %v1034 = vunpack.c.l.b16 %v879
        %v1035 = vunpack.c.h.b16 %v879
        %v1036 = vunpack.c.l.b16 %v880
        %v1037 = vunpack.c.h.b16 %v880
        %v1038 = vunpack.c.l.b16 %v881
        %v1039 = vunpack.c.h.b16 %v881
        %v1040 = vunpack.c.l.b16 %v882
        %v1041 = vunpack.c.h.b16 %v882
        %v1042 = vunpack.c.l.b16 %v883
        %v1043 = vunpack.c.h.b16 %v883
        %v1044 = vunpack.c.l.b16 %v884
        %v1045 = vunpack.c.h.b16 %v884
        %v1046 = vunpack.c.l.b16 %v885
        %v1047 = vunpack.c.h.b16 %v885
        %v1048 = vunpack.c.l.b16 %v886
        %v1049 = vunpack.c.h.b16 %v886
        %v1050 = vunpack.c.l.b16 %v887
        %v1051 = vunpack.c.h.b16 %v887
        %v1052 = vunpack.c.l.b16 %v888
        %v1053 = vunpack.c.h.b16 %v888
        %v1054 = vunpack.c.l.b16 %v889
        %v1055 = vunpack.c.h.b16 %v889
        %v1056 = vunpack.c.l.b16 %v890
        %v1057 = vunpack.c.h.b16 %v890
        %v1058 = vunpack.c.l.b16 %v891
        %v1059 = vunpack.c.h.b16 %v891
        %v1060 = vunpack.c.l.b16 %v892
        %v1061 = vunpack.c.h.b16 %v892
        %v1062 = vunpack.c.l.b16 %v893
        %v1063 = vunpack.c.h.b16 %v893
        %v1064 = vunpack.c.l.b16 %v894
        %v1065 = vunpack.c.h.b16 %v894
        %v1066 = vunpack.c.l.b16 %v895
        %v1067 = vunpack.c.h.b16 %v895
        %v1068 = vunpack.c.l.b16 %v896
        %v1069 = vunpack.c.h.b16 %v896
        %v1070 = vunpack.c.l.b16 %v897
        %v1071 = vunpack.c.h.b16 %v897
        %v1072 = vunpack.c.l.b16 %v898
        %v1073 = vunpack.c.h.b16 %v898
        %v1074 = vunpack.c.l.b16 %v899
        %v1075 = vunpack.c.h.b16 %v899
        %v1076 = vunpack.c.l.b16 %v900
        %v1077 = vunpack.c.h.b16 %v900
        %v1078 = vunpack.c.l.b16 %v901
        %v1079 = vunpack.c.h.b16 %v901
        %v1080 = vunpack.c.l.b16 %v902
        %v1081 = vunpack.c.h.b16 %v902
        %v1082 = vunpack.c.l.b16 %v903
        %v1083 = vunpack.c.h.b16 %v903
        %v1084 = vunpack.c.l.b16 %v904
        %v1085 = vunpack.c.h.b16 %v904
        %v1086 = vunpack.c.l.b16 %v905
        %v1087 = vunpack.c.h.b16 %v905
        %v1088 = vunpack.c.l.b16 %v906
        %v1089 = vunpack.c.h.b16 %v906
        %v1090 = vunpack.c.l.b16 %v907
        %v1091 = vunpack.c.h.b16 %v907
        %v1092 = vunpack.c.l.b16 %v908
        %v1093 = vunpack.c.h.b16 %v908
        %v1094 = vunpack.c.l.b16 %v909
        %v1095 = vunpack.c.h.b16 %v909
        %v1096 = vunpack.c.l.b16 %v910
        %v1097 = vunpack.c.h.b16 %v910
        %v1098 = vunpack.c.l.b16 %v911
        %v1099 = vunpack.c.h.b16 %v911
        %v1100 = vunpack.c.l.b16 %v912
        %v1101 = vunpack.c.h.b16 %v912
        %v1102 = vunpack.c.l.b16 %v913
        %v1103 = vunpack.c.h.b16 %v913
        %v1104 = vunpack.c.l.b16 %v914
        %v1105 = vunpack.c.h.b16 %v914
        %v1106 = vunpack.c.l.b16 %v915
        %v1107 = vunpack.c.h.b16 %v915
        %v1108 = vunpack.c.l.b16 %v916
        %v1109 = vunpack.c.h.b16 %v916
        %v1110 = vunpack.c.l.b16 %v917
        %v1111 = vunpack.c.h.b16 %v917
        %v1112 = vunpack.c.l.b16 %v918
        %v1113 = vunpack.c.h.b16 %v918
        %v1114 = vunpack.c.l.b16 %v919
        %v1115 = vunpack.c.h.b16 %v919
        %v1116 = vunpack.c.l.b16 %v920
        %v1117 = vunpack.c.h.b16 %v920
        %v1118 = vunpack.c.l.b16 %v921
        %v1119 = vunpack.c.h.b16 %v921
        %v1120 = vunpack.c.l.b16 %v922
        %v1121 = vunpack.c.h.b16 %v922
        %v1122 = vunpack.c.l.b16 %v923
        %v1123 = vunpack.c.h.b16 %v923
        %v1124 = vunpack.c.l.b16 %v924
        %v1125 = vunpack.c.h.b16 %v924
        %v1126 = vunpack.c.l.b16 %v925
        %v1127 = vunpack.c.h.b16 %v925
        %v1128 = vunpack.c.l.b16 %v926
        %v1129 = vunpack.c.h.b16 %v926
        %v1130 = vunpack.c.l.b16 %v927
        %v1131 = vunpack.c.h.b16 %v927
        %v1132 = vunpack.c.l.b16 %v928
        %v1133 = vunpack.c.h.b16 %v928
        %v1134 = vunpack.c.l.b16 %v929
        %v1135 = vunpack.c.h.b16 %v929
        %v1136 = vunpack.c.l.b16 %v930
        %v1137 = vunpack.c.h.b16 %v930
        %v1138 = vunpack.c.l.b16 %v931
        %v1139 = vunpack.c.h.b16 %v931
        %v1140 = vunpack.c.l.b16 %v932
        %v1141 = vunpack.c.h.b16 %v932
        %v1142 = vunpack.c.l.b16 %v933
        %v1143 = vunpack.c.h.b16 %v933
        %v1144 = vunpack.c.l.b16 %v934
        %v1145 = vunpack.c.h.b16 %v934
        %v1146 = vunpack.c.l.b16 %v935
        %v1147 = vunpack.c.h.b16 %v935
        %v1148 = vunpack.c.l.b16 %v936
        %v1149 = vunpack.c.h.b16 %v936
        %v1150 = vunpack.c.l.b16 %v937
        %v1151 = vunpack.c.h.b16 %v937
        %v1152 = vunpack.c.l.b16 %v938
        %v1153 = vunpack.c.h.b16 %v938
        %v1154 = vunpack.c.l.b16 %v939
        %v1155 = vunpack.c.h.b16 %v939
        %v1156 = vpack.c.b16 %v1032, %v1028
        %v1157 = vpack.c.b16 %v1033, %v1029
        %v1158 = vpack.c.b16 %v1034, %v1030
        %v1159 = vpack.c.b16 %v1035, %v1031
        %v1160 = vpack.c.b16 %v1040, %v1036
        %v1161 = vpack.c.b16 %v1041, %v1037
        %v1162 = vpack.c.b16 %v1042, %v1038
        %v1163 = vpack.c.b16 %v1043, %v1039
        %v1164 = vpack.c.b16 %v1048, %v1044
        %v1165 = vpack.c.b16 %v1049, %v1045
        %v1166 = vpack.c.b16 %v1050, %v1046
        %v1167 = vpack.c.b16 %v1051, %v1047
        %v1168 = vpack.c.b16 %v1056, %v1052
        %v1169 = vpack.c.b16 %v1057, %v1053
        %v1170 = vpack.c.b16 %v1058, %v1054
        %v1171 = vpack.c.b16 %v1059, %v1055
        %v1172 = vpack.c.b16 %v1064, %v1060
        %v1173 = vpack.c.b16 %v1065, %v1061
        %v1174 = vpack.c.b16 %v1066, %v1062
        %v1175 = vpack.c.b16 %v1067, %v1063
        %v1176 = vpack.c.b16 %v1072, %v1068
        %v1177 = vpack.c.b16 %v1073, %v1069
        %v1178 = vpack.c.b16 %v1074, %v1070
        %v1179 = vpack.c.b16 %v1075, %v1071
        %v1180 = vpack.c.b16 %v1080, %v1076
        %v1181 = vpack.c.b16 %v1081, %v1077
        %v1182 = vpack.c.b16 %v1082, %v1078
        %v1183 = vpack.c.b16 %v1083, %v1079
        %v1184 = vpack.c.b16 %v1088, %v1084
        %v1185 = vpack.c.b16 %v1089, %v1085
        %v1186 = vpack.c.b16 %v1090, %v1086
        %v1187 = vpack.c.b16 %v1091, %v1087
        %v1188 = vpack.c.b16 %v1096, %v1092
        %v1189 = vpack.c.b16 %v1097, %v1093
        %v1190 = vpack.c.b16 %v1098, %v1094
        %v1191 = vpack.c.b16 %v1099, %v1095
        %v1192 = vpack.c.b16 %v1104, %v1100
        %v1193 = vpack.c.b16 %v1105, %v1101
        %v1194 = vpack.c.b16 %v1106, %v1102
        %v1195 = vpack.c.b16 %v1107, %v1103
        %v1196 = vpack.c.b16 %v1112, %v1108
        %v1197 = vpack.c.b16 %v1113, %v1109
        %v1198 = vpack.c.b16 %v1114, %v1110
        %v1199 = vpack.c.b16 %v1115, %v1111
        %v1200 = vpack.c.b16 %v1120, %v1116
        %v1201 = vpack.c.b16 %v1121, %v1117
        %v1202 = vpack.c.b16 %v1122, %v1118
        %v1203 = vpack.c.b16 %v1123, %v1119
        %v1204 = vpack.c.b16 %v1128, %v1124
        %v1205 = vpack.c.b16 %v1129, %v1125
        %v1206 = vpack.c.b16 %v1130, %v1126
        %v1207 = vpack.c.b16 %v1131, %v1127
        %v1208 = vpack.c.b16 %v1136, %v1132
        %v1209 = vpack.c.b16 %v1137, %v1133
        %v1210 = vpack.c.b16 %v1138, %v1134
        %v1211 = vpack.c.b16 %v1139, %v1135
        %v1212 = vpack.c.b16 %v1144, %v1140
        %v1213 = vpack.c.b16 %v1145, %v1141
        %v1214 = vpack.c.b16 %v1146, %v1142
        %v1215 = vpack.c.b16 %v1147, %v1143
        %v1216 = vpack.c.b16 %v1152, %v1148
        %v1217 = vpack.c.b16 %v1153, %v1149
        %v1218 = vpack.c.b16 %v1154, %v1150
        %v1219 = vpack.c.b16 %v1155, %v1151
        %1284 = vmatprep.subr.bf16.mxu0 %v1157
        %1285 = vmatpush1.bf16.msra.mxu0 %v1156
        %1286 = vmatprep.subr.bf16.mxu0 %v1161
        %1287 = vmatpush1.bf16.msra.mxu0 %v1160
        %1288 = vmatprep.subr.bf16.mxu0 %v1165
        %1289 = vmatpush1.bf16.msra.mxu0 %v1164
        %1290 = vmatprep.subr.bf16.mxu0 %v1169
        %1291 = vmatpush1.bf16.msra.mxu0 %v1168
        %1292 = vmatprep.subr.bf16.mxu0 %v1173
        %1293 = vmatpush1.bf16.msra.mxu0 %v1172
        %1294 = vmatprep.subr.bf16.mxu0 %v1177
        %1295 = vmatpush1.bf16.msra.mxu0 %v1176
        %1296 = vmatprep.subr.bf16.mxu0 %v1181
        %1297 = vmatpush1.bf16.msra.mxu0 %v1180
        %1298 = vmatprep.subr.bf16.mxu0 %v1185
        %1299 = vmatpush1.bf16.msra.mxu0 %v1184
        %1300 = vmatprep.subr.bf16.mxu0 %v1189
        %1301 = vmatpush1.bf16.msra.mxu0 %v1188
        %1302 = vmatprep.subr.bf16.mxu0 %v1193
        %1303 = vmatpush1.bf16.msra.mxu0 %v1192
        %1304 = vmatprep.subr.bf16.mxu0 %v1197
        %1305 = vmatpush1.bf16.msra.mxu0 %v1196
        %1306 = vmatprep.subr.bf16.mxu0 %v1201
        %1307 = vmatpush1.bf16.msra.mxu0 %v1200
        %1308 = vmatprep.subr.bf16.mxu0 %v1205
        %1309 = vmatpush1.bf16.msra.mxu0 %v1204
        %1310 = vmatprep.subr.bf16.mxu0 %v1209
        %1311 = vmatpush1.bf16.msra.mxu0 %v1208
        %1312 = vmatprep.subr.bf16.mxu0 %v1213
        %1313 = vmatpush1.bf16.msra.mxu0 %v1212
        %1314 = vmatprep.subr.bf16.mxu0 %v1217
        %1315 = vmatpush1.bf16.msra.mxu0 %v1216
        %1316 = vmatprep.mubr.bf16.mxu0 %v942
        %1317 = vmatmul.mubr.bf16.gmra.mrb[0].mxu0 %v941
        %v1318 = vpop.f32.mrb[0].mxu0
        %v1319 = vadd.f32 %v947, %v1318
        %v1320 = vpop.f32.mrb[0].mxu0
        %v1321 = vadd.f32 %v951, %v1320
        %v1322 = vpop.f32.mrb[0].mxu0
        %v1323 = vpop.f32.mrb[0].mxu0
        %1324 = vdwg.mxu0
        %1325 = vmatprep.subr.bf16.mxu0 %v1159
        %1326 = vmatpush1.bf16.msra.mxu0 %v1158
        %1327 = vmatprep.subr.bf16.mxu0 %v1163
        %1328 = vmatpush1.bf16.msra.mxu0 %v1162
        %1329 = vmatprep.subr.bf16.mxu0 %v1167
        %1330 = vmatpush1.bf16.msra.mxu0 %v1166
        %1331 = vmatprep.subr.bf16.mxu0 %v1171
        %1332 = vmatpush1.bf16.msra.mxu0 %v1170
        %1333 = vmatprep.subr.bf16.mxu0 %v1175
        %1334 = vmatpush1.bf16.msra.mxu0 %v1174
        %1335 = vmatprep.subr.bf16.mxu0 %v1179
        %1336 = vmatpush1.bf16.msra.mxu0 %v1178
        %1337 = vmatprep.subr.bf16.mxu0 %v1183
        %1338 = vmatpush1.bf16.msra.mxu0 %v1182
        %1339 = vmatprep.subr.bf16.mxu0 %v1187
        %1340 = vmatpush1.bf16.msra.mxu0 %v1186
        %1341 = vmatprep.subr.bf16.mxu0 %v1191
        %1342 = vmatpush1.bf16.msra.mxu0 %v1190
        %1343 = vmatprep.subr.bf16.mxu0 %v1195
        %1344 = vmatpush1.bf16.msra.mxu0 %v1194
        %1345 = vmatprep.subr.bf16.mxu0 %v1199
        %1346 = vmatpush1.bf16.msra.mxu0 %v1198
        %1347 = vmatprep.subr.bf16.mxu0 %v1203
        %1348 = vmatpush1.bf16.msra.mxu0 %v1202
        %1349 = vmatprep.subr.bf16.mxu0 %v1207
        %1350 = vmatpush1.bf16.msra.mxu0 %v1206
        %1351 = vmatprep.subr.bf16.mxu0 %v1211
        %1352 = vmatpush1.bf16.msra.mxu0 %v1210
        %1353 = vmatprep.subr.bf16.mxu0 %v1215
        %1354 = vmatpush1.bf16.msra.mxu0 %v1214
        %1355 = vmatprep.subr.bf16.mxu0 %v1219
        %1356 = vmatpush1.bf16.msra.mxu0 %v1218
        %1357 = vmatprep.mubr.bf16.mxu0 %v942
        %1358 = vmatmul.mubr.bf16.gmra.mrb[0].mxu0 %v941
        %v1359 = vpop.f32.mrb[0].mxu0
        %v1360 = vadd.f32 %v955, %v1359
        %v1361 = vpop.f32.mrb[0].mxu0
        %v1362 = vadd.f32 %v959, %v1361
        %v1363 = vpop.f32.mrb[0].mxu0
        %v1364 = vpop.f32.mrb[0].mxu0
        %1365 = vdwg.mxu0
        %v1366 = vxor.u32 %v1319, 2147483648
        %v1367 = vmul.f32 %v1366, 1.442695
        %v1368 = vpow.pop %v1367
        %v1369 = vadd.f32 %v1368, 1.0
        %v1370 = vrcp.pop %v1369
        %v1371 = vmul.f32 1.0, %v1370
        %v1372 = vxor.u32 %v1321, 2147483648
        %v1373 = vmul.f32 %v1372, 1.442695
        %v1374 = vpow.pop %v1373
        %v1375 = vadd.f32 %v1374, 1.0
        %v1376 = vrcp.pop %v1375
        %v1377 = vmul.f32 1.0, %v1376
        %v1378 = vtanh.pop %v1360
        %v1379 = vxor.u32 %v1362, 2147483648
        %v1380 = vmul.f32 %v1379, 1.442695
        %v1381 = vpow.pop %v1380
        %v1382 = vadd.f32 %v1381, 1.0
        %v1383 = vrcp.pop %v1382
        %v1384 = vmul.f32 1.0, %v1383
        %v1385 = vmul.f32 %v1377, %v875
        %v1386 = vmul.f32 %v1371, %v1378
        %v1387 = vadd.f32 %v1385, %v1386
        %v1388 = vtanh.pop %v1387
        %v1389 = vmul.f32 %v1384, %v1388
        %1390 = vst [vmem:[%s872] sm:$0xff] %v1389
        %1391 = vst [vmem:[%s874] sm:$0xff] %v1387
        %v1392 = vpack.c.bf16 %v1389, %v1389
        %v1393 = vld [vmem:[%s8] sm:$0xff]
        %v1394 = vld [vmem:[%s8 + $0x8] sm:$0xff]
        %v1395 = vld [vmem:[%s8 + $0x10] sm:$0xff]
        %v1396 = vld [vmem:[%s8 + $0x18] sm:$0xff]
        %v1397 = vld [vmem:[%s8 + $0x20] sm:$0xff]
        %v1398 = vld [vmem:[%s8 + $0x28] sm:$0xff]
        %v1399 = vld [vmem:[%s8 + $0x30] sm:$0xff]
        %v1400 = vld [vmem:[%s8 + $0x38] sm:$0xff]
        %v1401 = vld [vmem:[%s8 + $0x40] sm:$0xff]
        %v1402 = vld [vmem:[%s8 + $0x48] sm:$0xff]
        %v1403 = vld [vmem:[%s8 + $0x50] sm:$0xff]
        %v1404 = vld [vmem:[%s8 + $0x58] sm:$0xff]
        %v1405 = vld [vmem:[%s8 + $0x60] sm:$0xff]
        %v1406 = vld [vmem:[%s8 + $0x68] sm:$0xff]
        %v1407 = vld [vmem:[%s8 + $0x70] sm:$0xff]
        %v1408 = vld [vmem:[%s8 + $0x78] sm:$0xff]
        %v1409 = vld [vmem:[%s9] sm:$0x3]
        %v1411 = vlaneseq
        %v1412 = vshrl.u32 %v1411, 7
        %v1413 = vsub.s32 0, %v1412
        %v1414 = vrot.slane %v1409, %v1413
        %v1415 = vlaneseq
        %v1416 = vshrl.u32 %v1415, 7
        %v1417 = vsub.s32 1, %v1416
        %v1418 = vrot.slane %v1409, %v1417
        %v1437 = vunpack.c.l.b16 %v1393
        %v1438 = vunpack.c.h.b16 %v1393
        %v1439 = vunpack.c.l.b16 %v1394
        %v1440 = vunpack.c.h.b16 %v1394
        %v1441 = vunpack.c.l.b16 %v1395
        %v1442 = vunpack.c.h.b16 %v1395
        %v1443 = vunpack.c.l.b16 %v1396
        %v1444 = vunpack.c.h.b16 %v1396
        %v1445 = vunpack.c.l.b16 %v1397
        %v1446 = vunpack.c.h.b16 %v1397
        %v1447 = vunpack.c.l.b16 %v1398
        %v1448 = vunpack.c.h.b16 %v1398
        %v1449 = vunpack.c.l.b16 %v1399
        %v1450 = vunpack.c.h.b16 %v1399
        %v1451 = vunpack.c.l.b16 %v1400
        %v1452 = vunpack.c.h.b16 %v1400
        %v1453 = vunpack.c.l.b16 %v1401
        %v1454 = vunpack.c.h.b16 %v1401
        %v1455 = vunpack.c.l.b16 %v1402
        %v1456 = vunpack.c.h.b16 %v1402
        %v1457 = vunpack.c.l.b16 %v1403
        %v1458 = vunpack.c.h.b16 %v1403
        %v1459 = vunpack.c.l.b16 %v1404
        %v1460 = vunpack.c.h.b16 %v1404
        %v1461 = vunpack.c.l.b16 %v1405
        %v1462 = vunpack.c.h.b16 %v1405
        %v1463 = vunpack.c.l.b16 %v1406
        %v1464 = vunpack.c.h.b16 %v1406
        %v1465 = vunpack.c.l.b16 %v1407
        %v1466 = vunpack.c.h.b16 %v1407
        %v1467 = vunpack.c.l.b16 %v1408
        %v1468 = vunpack.c.h.b16 %v1408
        %v1469 = vpack.c.b16 %v1439, %v1437
        %v1470 = vpack.c.b16 %v1440, %v1438
        %v1471 = vpack.c.b16 %v1443, %v1441
        %v1472 = vpack.c.b16 %v1444, %v1442
        %v1473 = vpack.c.b16 %v1447, %v1445
        %v1474 = vpack.c.b16 %v1448, %v1446
        %v1475 = vpack.c.b16 %v1451, %v1449
        %v1476 = vpack.c.b16 %v1452, %v1450
        %v1477 = vpack.c.b16 %v1455, %v1453
        %v1478 = vpack.c.b16 %v1456, %v1454
        %v1479 = vpack.c.b16 %v1459, %v1457
        %v1480 = vpack.c.b16 %v1460, %v1458
        %v1481 = vpack.c.b16 %v1463, %v1461
        %v1482 = vpack.c.b16 %v1464, %v1462
        %v1483 = vpack.c.b16 %v1467, %v1465
        %v1484 = vpack.c.b16 %v1468, %v1466
        %1501 = vmatprep.subr.bf16.mxu0 %v1470
        %1502 = vmatpush1.bf16.msra.mxu0 %v1469
        %1503 = vmatprep.subr.bf16.mxu0 %v1472
        %1504 = vmatpush1.bf16.msra.mxu0 %v1471
        %1505 = vmatprep.subr.bf16.mxu0 %v1474
        %1506 = vmatpush1.bf16.msra.mxu0 %v1473
        %1507 = vmatprep.subr.bf16.mxu0 %v1476
        %1508 = vmatpush1.bf16.msra.mxu0 %v1475
        %1509 = vmatprep.subr.bf16.mxu0 %v1478
        %1510 = vmatpush1.bf16.msra.mxu0 %v1477
        %1511 = vmatprep.subr.bf16.mxu0 %v1480
        %1512 = vmatpush1.bf16.msra.mxu0 %v1479
        %1513 = vmatprep.subr.bf16.mxu0 %v1482
        %1514 = vmatpush1.bf16.msra.mxu0 %v1481
        %1515 = vmatprep.subr.bf16.mxu0 %v1484
        %1516 = vmatpush1.bf16.msra.mxu0 %v1483
        %1517 = vmatprep.subr.bf16.mxu0 0
        %1518 = vmatpush1.bf16.msra.mxu0 0
        %1519 = vmatprep.subr.bf16.mxu0 0
        %1520 = vmatpush1.bf16.msra.mxu0 0
        %1521 = vmatprep.subr.bf16.mxu0 0
        %1522 = vmatpush1.bf16.msra.mxu0 0
        %1523 = vmatprep.subr.bf16.mxu0 0
        %1524 = vmatpush1.bf16.msra.mxu0 0
        %1525 = vmatprep.subr.bf16.mxu0 0
        %1526 = vmatpush1.bf16.msra.mxu0 0
        %1527 = vmatprep.subr.bf16.mxu0 0
        %1528 = vmatpush1.bf16.msra.mxu0 0
        %1529 = vmatprep.subr.bf16.mxu0 0
        %1530 = vmatpush1.bf16.msra.mxu0 0
        %1531 = vmatprep.subr.bf16.mxu0 0
        %1532 = vmatpush1.bf16.msra.mxu0 0
        %1533 = vmatprep.mubr.bf16.mxu0 0
        %1534 = vmatmul.mubr.bf16.gmra.mrb[0].mxu0 %v1392
        %v1535 = vpop.f32.mrb[0].mxu0
        %v1536 = vadd.f32 %v1414, %v1535
        %v1537 = vpop.f32.mrb[0].mxu0
        %v1538 = vadd.f32 %v1418, %v1537
        %v1539 = vpop.f32.mrb[0].mxu0
        %v1540 = vpop.f32.mrb[0].mxu0
        %1541 = vdwg.mxu0
        %1542 = vst [vmem:[%s337] sm:$0xff] %v1536
        %1543 = vst [vmem:[%s337 + $0x8] sm:$0xff] %v1538
        %v1544 = vmax.f32 %v1536, %v1538
        %1545 = vmax.xlane.f32.xlu0 %v1544
        %v1546 = vpop.xlane.xlu0 %1545
        %v1547 = vlaneseq
        %v1548 = vand.u32 %v1547, 127
        %v1549 = vadd.s32 %v1548, 128
        %vm1550 = vcmp.eq.f32.partialorder %v1536, %v1546
        %vm1551 = vcmp.eq.f32.partialorder %v1538, %v1546
        %v1552 = vsel %vm1550, %v1548, 256
        %v1553 = vsel %vm1551, %v1549, 256
        %vm1554 = vcmp.lt.s32.totalorder %v1552, %v1553
        %v1555 = vsel %vm1554, %v1552, %v1553
        %v1556 = vand.u32 %v1555, 65535
        %v1557 = vshra.s32 %v1555, 16
        %v1558 = vcvt.s32.f32 %v1556
        %v1559 = vcvt.s32.f32 %v1557
        %1560 = vmin.xlane.f32.xlu0 %v1559
        %v1561 = vpop.xlane.xlu0 %1560
        %vm1562 = vcmp.eq.f32.partialorder %v1559, %v1561
        %v1563 = vsel %vm1562, %v1558, inf
        %1564 = vmin.xlane.f32.xlu0 %v1563
        %v1565 = vpop.xlane.xlu0 %1564
        %v1566 = vcvt.f32.s32 %v1565
        %v1567 = vcvt.f32.s32 %v1561
        %v1568 = vshll.u32 %v1567, 16
        %v1569 = vadd.s32 %v1568, %v1566
        %vm1570 = vcmp.eq.s32.totalorder %v1548, %v1569
        %vm1571 = vcmp.eq.s32.totalorder %v1549, %v1569
        %v1572 = vsel %vm1570, 1, 0
        %v1573 = vsel %vm1571, 1, 0
        %v1574 = vcvt.s32.f32 %v1572
        %v1575 = vcvt.s32.f32 %v1573
        %v1576 = vpack.c.bf16 %v1574, %v1574
        %v1577 = vpack.c.bf16 %v1575, %v1575
        %v1578 = vld [vmem:[%s3] sm:$0xf]
        %v1579 = vld [vmem:[%s3 + $0x4] sm:$0xf]
        %v1580 = vld [vmem:[%s3 + $0x8] sm:$0xf]
        %v1581 = vld [vmem:[%s3 + $0xc] sm:$0xf]
        %v1582 = vld [vmem:[%s3 + $0x10] sm:$0xf]
        %v1583 = vld [vmem:[%s3 + $0x14] sm:$0xf]
        %v1584 = vld [vmem:[%s3 + $0x18] sm:$0xf]
        %v1585 = vld [vmem:[%s3 + $0x1c] sm:$0xf]
        %v1586 = vld [vmem:[%s3 + $0x20] sm:$0xf]
        %v1587 = vld [vmem:[%s3 + $0x24] sm:$0xf]
        %v1588 = vld [vmem:[%s3 + $0x28] sm:$0xf]
        %v1589 = vld [vmem:[%s3 + $0x2c] sm:$0xf]
        %v1590 = vld [vmem:[%s3 + $0x30] sm:$0xf]
        %v1591 = vld [vmem:[%s3 + $0x34] sm:$0xf]
        %v1592 = vld [vmem:[%s3 + $0x38] sm:$0xf]
        %v1593 = vld [vmem:[%s3 + $0x3c] sm:$0xf]
        %v1594 = vld [vmem:[%s3 + $0x40] sm:$0xf]
        %v1595 = vld [vmem:[%s3 + $0x44] sm:$0xf]
        %v1596 = vld [vmem:[%s3 + $0x48] sm:$0xf]
        %v1597 = vld [vmem:[%s3 + $0x4c] sm:$0xf]
        %v1598 = vld [vmem:[%s3 + $0x50] sm:$0xf]
        %v1599 = vld [vmem:[%s3 + $0x54] sm:$0xf]
        %v1600 = vld [vmem:[%s3 + $0x58] sm:$0xf]
        %v1601 = vld [vmem:[%s3 + $0x5c] sm:$0xf]
        %v1602 = vld [vmem:[%s3 + $0x60] sm:$0xf]
        %v1603 = vld [vmem:[%s3 + $0x64] sm:$0xf]
        %v1604 = vld [vmem:[%s3 + $0x68] sm:$0xf]
        %v1605 = vld [vmem:[%s3 + $0x6c] sm:$0xf]
        %v1606 = vld [vmem:[%s3 + $0x70] sm:$0xf]
        %v1607 = vld [vmem:[%s3 + $0x74] sm:$0xf]
        %v1608 = vld [vmem:[%s3 + $0x78] sm:$0xf]
        %v1609 = vld [vmem:[%s3 + $0x7c] sm:$0xf]
        %v1642 = vunpack.c.l.b16 %v1578
        %v1643 = vunpack.c.l.b16 %v1579
        %v1644 = vunpack.c.l.b16 %v1580
        %v1645 = vunpack.c.l.b16 %v1581
        %v1646 = vunpack.c.l.b16 %v1582
        %v1647 = vunpack.c.l.b16 %v1583
        %v1648 = vunpack.c.l.b16 %v1584
        %v1649 = vunpack.c.l.b16 %v1585
        %v1650 = vunpack.c.l.b16 %v1586
        %v1651 = vunpack.c.l.b16 %v1587
        %v1652 = vunpack.c.l.b16 %v1588
        %v1653 = vunpack.c.l.b16 %v1589
        %v1654 = vunpack.c.l.b16 %v1590
        %v1655 = vunpack.c.l.b16 %v1591
        %v1656 = vunpack.c.l.b16 %v1592
        %v1657 = vunpack.c.l.b16 %v1593
        %v1658 = vunpack.c.l.b16 %v1594
        %v1659 = vunpack.c.l.b16 %v1595
        %v1660 = vunpack.c.l.b16 %v1596
        %v1661 = vunpack.c.l.b16 %v1597
        %v1662 = vunpack.c.l.b16 %v1598
        %v1663 = vunpack.c.l.b16 %v1599
        %v1664 = vunpack.c.l.b16 %v1600
        %v1665 = vunpack.c.l.b16 %v1601
        %v1666 = vunpack.c.l.b16 %v1602
        %v1667 = vunpack.c.l.b16 %v1603
        %v1668 = vunpack.c.l.b16 %v1604
        %v1669 = vunpack.c.l.b16 %v1605
        %v1670 = vunpack.c.l.b16 %v1606
        %v1671 = vunpack.c.l.b16 %v1607
        %v1672 = vunpack.c.l.b16 %v1608
        %v1673 = vunpack.c.l.b16 %v1609
        %v1674 = vpack.c.b16 %v1643, %v1642
        %v1675 = vpack.c.b16 %v1645, %v1644
        %v1676 = vpack.c.b16 %v1647, %v1646
        %v1677 = vpack.c.b16 %v1649, %v1648
        %v1678 = vpack.c.b16 %v1651, %v1650
        %v1679 = vpack.c.b16 %v1653, %v1652
        %v1680 = vpack.c.b16 %v1655, %v1654
        %v1681 = vpack.c.b16 %v1657, %v1656
        %v1682 = vpack.c.b16 %v1659, %v1658
        %v1683 = vpack.c.b16 %v1661, %v1660
        %v1684 = vpack.c.b16 %v1663, %v1662
        %v1685 = vpack.c.b16 %v1665, %v1664
        %v1686 = vpack.c.b16 %v1667, %v1666
        %v1687 = vpack.c.b16 %v1669, %v1668
        %v1688 = vpack.c.b16 %v1671, %v1670
        %v1689 = vpack.c.b16 %v1673, %v1672
        %1706 = vmatprep.subr.bf16.mxu0 0
        %1707 = vmatpush1.bf16.msra.mxu0 %v1674
        %1708 = vmatprep.subr.bf16.mxu0 0
        %1709 = vmatpush1.bf16.msra.mxu0 %v1675
        %1710 = vmatprep.subr.bf16.mxu0 0
        %1711 = vmatpush1.bf16.msra.mxu0 %v1676
        %1712 = vmatprep.subr.bf16.mxu0 0
        %1713 = vmatpush1.bf16.msra.mxu0 %v1677
        %1714 = vmatprep.subr.bf16.mxu0 0
        %1715 = vmatpush1.bf16.msra.mxu0 %v1678
        %1716 = vmatprep.subr.bf16.mxu0 0
        %1717 = vmatpush1.bf16.msra.mxu0 %v1679
        %1718 = vmatprep.subr.bf16.mxu0 0
        %1719 = vmatpush1.bf16.msra.mxu0 %v1680
        %1720 = vmatprep.subr.bf16.mxu0 0
        %1721 = vmatpush1.bf16.msra.mxu0 %v1681
        %1722 = vmatprep.subr.bf16.mxu0 0
        %1723 = vmatpush1.bf16.msra.mxu0 %v1682
        %1724 = vmatprep.subr.bf16.mxu0 0
        %1725 = vmatpush1.bf16.msra.mxu0 %v1683
        %1726 = vmatprep.subr.bf16.mxu0 0
        %1727 = vmatpush1.bf16.msra.mxu0 %v1684
        %1728 = vmatprep.subr.bf16.mxu0 0
        %1729 = vmatpush1.bf16.msra.mxu0 %v1685
        %1730 = vmatprep.subr.bf16.mxu0 0
        %1731 = vmatpush1.bf16.msra.mxu0 %v1686
        %1732 = vmatprep.subr.bf16.mxu0 0
        %1733 = vmatpush1.bf16.msra.mxu0 %v1687
        %1734 = vmatprep.subr.bf16.mxu0 0
        %1735 = vmatpush1.bf16.msra.mxu0 %v1688
        %1736 = vmatprep.subr.bf16.mxu0 0
        %1737 = vmatpush1.bf16.msra.mxu0 %v1689
        %1738 = vmatprep.mubr.bf16.mxu0 %v1577
        %1739 = vmatmul.mubr.bf16.gmra.mrb[0].mxu0 %v1576
        %v1740 = vpop.f32.mrb[0].mxu0
        %v1741 = vadd.f32 0.0, %v1740
        %v1742 = vpop.f32.mrb[0].mxu0
        %v1743 = vpop.f32.mrb[0].mxu0
        %v1744 = vpop.f32.mrb[0].mxu0
        %1745 = vdwg.mxu0
        %1746 = vst [vmem:[#allocation4] sm:$0xff] %v1741
        %s1747 = sand.u32 %s242, 1
        %s1748 = scalar_lea.sflag [#allocation6], %s1747
        %s1749 = sand.u32 %s242, 1
        %s1750 = smul.addr %s1749, 16
        %s1751 = scalar_lea.vmem [#allocation5], %s1750
        // Predicated region
        $region65: #{seq2seq_forward.3} parent=59 // pred_check
          %p1752 = pneg %p252
        $region66: #{seq2seq_forward.3} parent=59 // pred_check_branch
          %1754 = sbr.rel (%p1752) target = $region68
        $region67: #{seq2seq_forward.3} parent=59 // pred_region
          %s1756 = ssub.s32 256, 256
          %1757 = vsyncadd %s1748, %s1756
          %s1758 = smul.addr %s24, 2
          %s1759 = smul.addr %s1758, 128
          %s1760 = scalar_lea.hbm %s10, %s1759
          %s1762 = sshll.u32 %s1751, 4
          %s1763 = int_to_ptr.vmem [resolvable:$true] %s1762
          %1765 = dma.vmem_to_hbm [thread:$0]  %s1763, 256, %s1760, %s1748
        $region68: #{seq2seq_forward.3} parent=59 // pred_fallthru
          _
      $region60: #{seq2seq_forward.3} parent=5 // pred_fallthru
        _
      %p1766 = scmp.le.s32.totalorder 2, %s19
      // Predicated region
      $region69: #{seq2seq_forward.3} parent=5 // pred_check
        %p1767 = pneg %p1766
      $region70: #{seq2seq_forward.3} parent=5 // pred_check_branch
        %1769 = sbr.rel (%p1767) target = $region72
      $region71: #{seq2seq_forward.3} parent=5 // pred_region
        %s1770 = ssub.s32 %s19, 2
        // Predicated region
        $region73: #{seq2seq_forward.3} parent=71 // pred_check
          %p1771 = pneg %p258
        $region74: #{seq2seq_forward.3} parent=71 // pred_check_branch
          %1773 = sbr.rel (%p1771) target = $region76
        $region75: #{seq2seq_forward.3} parent=71 // pred_region
          %s1774 = sand.u32 %s243, 1
          %s1775 = scalar_lea.sflag [#allocation6], %s1774
          %s1776 = sand.u32 %s243, 1
          %s1777 = smul.addr %s1776, 16
          %s1778 = scalar_lea.vmem [#allocation5], %s1777
          %1779 = dma.done %s1775, 256
        $region76: #{seq2seq_forward.3} parent=71 // pred_fallthru
          _
      $region72: #{seq2seq_forward.3} parent=5 // pred_fallthru
        _
    $region6: #{seq2seq_forward.3} parent=1 // loop_footer
      %s23 = sadd.s32 1, %s19
    $region7: #{seq2seq_forward.3} parent=1 // loop_footer_branch
      %18 = sbr.rel target = $region3
    $region8: #{seq2seq_forward.3} parent=1 // loop_exit
      _
    %1780 = vsyncpa [#allocation6], 1
    %s1781 = scalar_lea.sflag [#allocation6], 1
    %1782 = vsyncpa %s1781, 1

</llo_original>
